<compile_context>
chip_gen: v7x
topology: tpu7x:2x2x1
jax: 0.10.0
libtpu: 0.0.40
codegen_flags: <defaults>
</compile_context>

<pallas_src>
import jax
import jax.numpy as jnp
from jax import lax
from jax.experimental import pallas as pl
from jax.experimental.pallas import tpu as pltpu


# ----------------------------- config ---------------------------------------
PAD = 0
SOS = 2
NUM_EMBEDDING = 16      # vocab size  (config.num_embedding)
EMBEDDING_DIM = 32      # config.embedding_dim
HIDDEN_SIZE = 32        # config.hidden_size
MAX_LEN = 8             # config.max_len  -> T = MAX_LEN + 1 decode steps
BATCH = 8               # config.train_batch_size
TEACHER_FORCING_RATIO = 0.5


# ----------------------------- kernel ---------------------------------------
def decoder_kernel(
    ut_ref,        # SMEM int32 [T]      teacher-forcing mask per step
    lab_ref,       # VMEM int32 [B, T]   raw labels
    h0_ref,        # VMEM f32  [B, H]    encoder hidden
    wxi_ref,       # VMEM f32  [V, 3H]   emb @ [W_ir|W_iz|W_in] + [b_r|b_z|b_in]
    wh_ref,        # VMEM f32  [H, 3H]   [W_hr|W_hz|W_hn]
    bhn_ref,       # VMEM f32  [1, H]    b_hn
    wfc_ref,       # VMEM f32  [H, V]
    bfc_ref,       # VMEM f32  [1, V]
    out_ref,       # VMEM f32  [B, T*V]  log-probs, lane-dense
    hout_ref,      # VMEM f32  [B, H]    final hidden
):
    B, H = h0_ref.shape
    T = lab_ref.shape[1]
    V = wfc_ref.shape[1]

    # Tiny fused weights loaded into vregs once, reused across all steps.
    wxi = wxi_ref[...]
    wh = wh_ref[...]
    wfc = wfc_ref[...]

    # Hoisted loop invariants (JAX does not CSE broadcasts/iotas per use).
    bhn = jnp.broadcast_to(bhn_ref[...], (B, H))
    bfc = jnp.broadcast_to(bfc_ref[...], (B, V))
    col = lax.broadcasted_iota(jnp.int32, (B, V), 1)

    h = h0_ref[...]                                   # [B, H]
    x = (col == SOS).astype(jnp.float32)              # SOS one-hot, built in-kernel

    logits_steps = []

    # Fully unrolled recurrence (T = 9), static offsets everywhere.
    for t in range(T):
        # fused (embedding + input gates, bias folded) and hidden gates:
        # 2 matmuls per step on the serial chain.
        xg = jnp.dot(x, wxi, preferred_element_type=jnp.float32)   # [B, 3H]
        hg = jnp.dot(h, wh, preferred_element_type=jnp.float32)    # [B, 3H]

        r = jax.nn.sigmoid(xg[:, 0:H] + hg[:, 0:H])
        z = jax.nn.sigmoid(xg[:, H:2 * H] + hg[:, H:2 * H])
        n = jnp.tanh(xg[:, 2 * H:3 * H] + r * (hg[:, 2 * H:3 * H] + bhn))
        h = (1.0 - z) * n + z * h

        # fc logits; log_softmax is deferred off the recurrence.
        logits = jnp.dot(h, wfc, preferred_element_type=jnp.float32) + bfc
        logits_steps.append(logits)

        # greedy next input: first argmax (matches jnp.argmax tie-breaking)
        m = jnp.max(logits, axis=-1, keepdims=True)
        idx = jnp.min(jnp.where(logits == m, col, V), axis=-1, keepdims=True)
        pred_onehot = (col == idx).astype(jnp.float32)

        # teacher one-hot built in-kernel from raw labels; scalar select.
        teach_onehot = (col == lab_ref[:, t:t + 1]).astype(jnp.float32)
        x = jnp.where(ut_ref[t] > 0, teach_onehot, pred_onehot)

    hout_ref[...] = h

    # Deferred log-softmax + lane-dense output stores (off the recurrence).
    for t in range(T):
        lg = logits_steps[t]
        m = jnp.max(lg, axis=-1, keepdims=True)
        lse = m + jnp.log(jnp.sum(jnp.exp(lg - m), axis=-1, keepdims=True))
        out_ref[:, t * V:(t + 1) * V] = lg - lse


# ----------------------------- wrapper ---------------------------------------
@jax.jit
def num_decoder_forward(label, encoder_hidden, use_teacher, params):
    """label: int32 [B, T]; encoder_hidden: f32 [1, B, H]; use_teacher: int32 [T]."""
    B, T = label.shape
    H = encoder_hidden.shape[-1]
    V = NUM_EMBEDDING

    (emb, wir, wiz, win, whr, whz, whn, br, bz, bin_, bhn, wfc, bfc) = params

    # Fuse gate weights, fold the one-hot embedding AND the input bias into
    # the input path (exact: x is strictly one-hot, row-sum == 1).
    w_i = jnp.concatenate([wir, wiz, win], axis=1)                     # [E, 3H]
    b_i = jnp.concatenate([br, bz, bin_], axis=1)                      # [1, 3H]
    w_xi = jnp.dot(emb, w_i) + b_i                                     # [V, 3H]
    w_h = jnp.concatenate([whr, whz, whn], axis=1)                     # [H, 3H]

    h0 = encoder_hidden[0]                                             # [B, H]

    vmem = pl.BlockSpec(memory_space=pltpu.MemorySpace.VMEM)
    smem = pl.BlockSpec(memory_space=pltpu.MemorySpace.SMEM)

    out_flat, h_last = pl.pallas_call(
        decoder_kernel,
        out_shape=(
            jax.ShapeDtypeStruct((B, T * V), jnp.float32),
            jax.ShapeDtypeStruct((B, H), jnp.float32),
        ),
        in_specs=[smem, vmem, vmem, vmem, vmem, vmem, vmem, vmem],
        out_specs=(vmem, vmem),
    )(use_teacher, label, h0, w_xi, w_h, bhn, wfc, bfc)

    decoder_outputs = out_flat.reshape(B, T, V)     # free row-major split
    decoder_hidden = h_last[None]                   # [1, B, H]
    return decoder_outputs, decoder_hidden


# -------------------------- pure-JAX reference --------------------------------
def num_decoder_reference(label, encoder_hidden, use_teacher, params):
    (emb, wir, wiz, win, whr, whz, whn, br, bz, bin_, bhn, wfc, bfc) = params
    B, T = label.shape
    V = NUM_EMBEDDING
    h = encoder_hidden[0]
    x_onehot = jax.nn.one_hot(jnp.full((B,), SOS, jnp.int32), V, dtype=jnp.float32)
    outs = []
    for t in range(T):
        x = x_onehot @ emb
        r = jax.nn.sigmoid(x @ wir + h @ whr + br)
        z = jax.nn.sigmoid(x @ wiz + h @ whz + bz)
        n = jnp.tanh(x @ win + bin_ + r * (h @ whn + bhn))
        h = (1.0 - z) * n + z * h
        logits = h @ wfc + bfc
        logp = jax.nn.log_softmax(logits, axis=-1)
        outs.append(logp)
        pred = jnp.argmax(logp, axis=-1)
        nxt_teacher = jax.nn.one_hot(label[:, t], V, dtype=jnp.float32)
        nxt_pred = jax.nn.one_hot(pred, V, dtype=jnp.float32)
        x_onehot = jnp.where(use_teacher[t] > 0, nxt_teacher, nxt_pred)
    return jnp.stack(outs, axis=1), h[None]


# ----------------------------- params init ------------------------------------
def init_params(key):
    V, E, H = NUM_EMBEDDING, EMBEDDING_DIM, HIDDEN_SIZE
    ks = jax.random.split(key, 13)
    u = lambda k, shape, s: jax.random.uniform(k, shape, jnp.float32, -s, s)
    emb = jax.random.normal(ks[0], (V, E), jnp.float32)
    emb = emb.at[PAD].set(0.0)                      # padding_idx row is zero
    s = 1.0 / jnp.sqrt(jnp.float32(H))
    wir, wiz, win = (u(ks[i], (E, H), s) for i in (1, 2, 3))
    whr, whz, whn = (u(ks[i], (H, H), s) for i in (4, 5, 6))
    br, bz, bin_, bhn = (u(ks[i], (1, H), s) for i in (7, 8, 9, 10))
    wfc = u(ks[11], (H, V), s)
    bfc = u(ks[12], (1, V), s)
    return (emb, wir, wiz, win, whr, whz, whn, br, bz, bin_, bhn, wfc, bfc)


# --------------------------------- main ----------------------------------------
if __name__ == "__main__":
    key = jax.random.PRNGKey(0)
    k_lab, k_hid, k_tf, k_par = jax.random.split(key, 4)

    T = MAX_LEN + 1
    label = jax.random.randint(k_lab, (BATCH, T), 0, NUM_EMBEDDING, dtype=jnp.int32)
    encoder_hidden = jax.random.normal(k_hid, (1, BATCH, HIDDEN_SIZE), jnp.float32)
    # deterministic replacement for random.random() > teacher_forcing_ratio
    use_teacher = (jax.random.uniform(k_tf, (T,)) > TEACHER_FORCING_RATIO).astype(jnp.int32)
    params = init_params(k_par)

    outs, h_last = num_decoder_forward(label, encoder_hidden, use_teacher, params)
    jax.block_until_ready((outs, h_last))

    ref_outs, ref_h = num_decoder_reference(label, encoder_hidden, use_teacher, params)
    assert outs.shape == (BATCH, T, NUM_EMBEDDING)
    assert h_last.shape == (1, BATCH, HIDDEN_SIZE)
    assert jnp.allclose(outs, ref_outs, atol=2e-3, rtol=2e-3)
    assert jnp.allclose(h_last, ref_h, atol=2e-3, rtol=2e-3)

    print("KERNEL_OK")
</pallas_src>

<mosaic_0001>
module attributes {stable_mosaic.version = 11 : i64} {
  func.func @decoder_kernel(%arg0: memref<9xi32, #tpu.memory_space<smem>>, %arg1: memref<8x9xi32, #tpu.memory_space<vmem>>, %arg2: memref<8x32xf32, #tpu.memory_space<vmem>>, %arg3: memref<16x96xf32, #tpu.memory_space<vmem>>, %arg4: memref<32x96xf32, #tpu.memory_space<vmem>>, %arg5: memref<1x32xf32, #tpu.memory_space<vmem>>, %arg6: memref<32x16xf32, #tpu.memory_space<vmem>>, %arg7: memref<1x16xf32, #tpu.memory_space<vmem>>, %arg8: memref<8x144xf32, #tpu.memory_space<vmem>>, %arg9: memref<8x32xf32, #tpu.memory_space<vmem>>) attributes {dimension_semantics = [], scalar_prefetch = 0 : i64, scratch_operands = 0 : i64, tpu.core_type = #tpu.core_type<tc>} {
    %c0 = arith.constant 0 : index
    %c0_0 = arith.constant 0 : index
    %0 = vector.load %arg3[%c0, %c0_0] : memref<16x96xf32, #tpu.memory_space<vmem>>, vector<16x96xf32>
    %c0_1 = arith.constant 0 : index
    %c0_2 = arith.constant 0 : index
    %1 = vector.load %arg4[%c0_1, %c0_2] : memref<32x96xf32, #tpu.memory_space<vmem>>, vector<32x96xf32>
    %c0_3 = arith.constant 0 : index
    %c0_4 = arith.constant 0 : index
    %2 = vector.load %arg6[%c0_3, %c0_4] : memref<32x16xf32, #tpu.memory_space<vmem>>, vector<32x16xf32>
    %c0_5 = arith.constant 0 : index
    %c0_6 = arith.constant 0 : index
    %3 = vector.load %arg5[%c0_5, %c0_6] : memref<1x32xf32, #tpu.memory_space<vmem>>, vector<1x32xf32>
    %4 = vector.shape_cast %3 : vector<1x32xf32> to vector<1x32xf32>
    %5 = vector.broadcast %4 : vector<1x32xf32> to vector<8x32xf32>
    %c0_7 = arith.constant 0 : index
    %c0_8 = arith.constant 0 : index
    %6 = vector.load %arg7[%c0_7, %c0_8] : memref<1x16xf32, #tpu.memory_space<vmem>>, vector<1x16xf32>
    %7 = vector.shape_cast %6 : vector<1x16xf32> to vector<1x16xf32>
    %8 = vector.broadcast %7 : vector<1x16xf32> to vector<8x16xf32>
    %9 = tpu.iota {dimensions = array<i32: 1>} : vector<8x16xi32>
    %c0_9 = arith.constant 0 : index
    %c0_10 = arith.constant 0 : index
    %10 = vector.load %arg2[%c0_9, %c0_10] : memref<8x32xf32, #tpu.memory_space<vmem>>, vector<8x32xf32>
    %c2_i32 = arith.constant 2 : i32
    %11 = vector.broadcast %c2_i32 : i32 to vector<8x16xi32>
    %12 = arith.cmpi eq, %9, %11 : vector<8x16xi32>
    %13 = arith.extui %12 : vector<8x16xi1> to vector<8x16xi32>
    %14 = arith.sitofp %13 : vector<8x16xi32> to vector<8x16xf32>
    %cst = arith.constant dense<0.000000e+00> : vector<8x96xf32>
    %15 = tpu.matmul %14, %0, %cst {dimension_numbers = #tpu.dot_dimension_numbers<[1], [0], [0], [1], [0, 0, 1, 1], [], []>} : vector<8x16xf32>, vector<16x96xf32>, vector<8x96xf32> -> vector<8x96xf32>
    %cst_11 = arith.constant dense<0.000000e+00> : vector<8x96xf32>
    %16 = tpu.matmul %10, %1, %cst_11 {dimension_numbers = #tpu.dot_dimension_numbers<[1], [0], [0], [1], [0, 0, 1, 1], [], []>} : vector<8x32xf32>, vector<32x96xf32>, vector<8x96xf32> -> vector<8x96xf32>
    %17 = vector.extract_strided_slice %15 {offsets = [0, 0], sizes = [8, 32], strides = [1, 1]} : vector<8x96xf32> to vector<8x32xf32>
    %18 = vector.extract_strided_slice %16 {offsets = [0, 0], sizes = [8, 32], strides = [1, 1]} : vector<8x96xf32> to vector<8x32xf32>
    %19 = arith.addf %17, %18 : vector<8x32xf32>
    %20 = arith.negf %19 : vector<8x32xf32>
    %21 = math.exp %20 : vector<8x32xf32>
    %cst_12 = arith.constant 1.000000e+00 : f32
    %22 = vector.broadcast %cst_12 : f32 to vector<8x32xf32>
    %23 = arith.addf %22, %21 : vector<8x32xf32>
    %24 = arith.divf %22, %23 : vector<8x32xf32>
    %25 = vector.extract_strided_slice %15 {offsets = [0, 32], sizes = [8, 32], strides = [1, 1]} : vector<8x96xf32> to vector<8x32xf32>
    %26 = vector.extract_strided_slice %16 {offsets = [0, 32], sizes = [8, 32], strides = [1, 1]} : vector<8x96xf32> to vector<8x32xf32>
    %27 = arith.addf %25, %26 : vector<8x32xf32>
    %28 = arith.negf %27 : vector<8x32xf32>
    %29 = math.exp %28 : vector<8x32xf32>
    %cst_13 = arith.constant 1.000000e+00 : f32
    %30 = vector.broadcast %cst_13 : f32 to vector<8x32xf32>
    %31 = arith.addf %30, %29 : vector<8x32xf32>
    %32 = arith.divf %30, %31 : vector<8x32xf32>
    %33 = vector.extract_strided_slice %15 {offsets = [0, 64], sizes = [8, 32], strides = [1, 1]} : vector<8x96xf32> to vector<8x32xf32>
    %34 = vector.extract_strided_slice %16 {offsets = [0, 64], sizes = [8, 32], strides = [1, 1]} : vector<8x96xf32> to vector<8x32xf32>
    %35 = arith.addf %34, %5 : vector<8x32xf32>
    %36 = arith.mulf %24, %35 : vector<8x32xf32>
    %37 = arith.addf %33, %36 : vector<8x32xf32>
    %38 = math.tanh %37 : vector<8x32xf32>
    %cst_14 = arith.constant 1.000000e+00 : f32
    %39 = vector.broadcast %cst_14 : f32 to vector<8x32xf32>
    %40 = arith.subf %39, %32 : vector<8x32xf32>
    %41 = arith.mulf %40, %38 : vector<8x32xf32>
    %42 = arith.mulf %32, %10 : vector<8x32xf32>
    %43 = arith.addf %41, %42 : vector<8x32xf32>
    %cst_15 = arith.constant dense<0.000000e+00> : vector<8x16xf32>
    %44 = tpu.matmul %43, %2, %cst_15 {dimension_numbers = #tpu.dot_dimension_numbers<[1], [0], [0], [1], [0, 0, 1, 1], [], []>} : vector<8x32xf32>, vector<32x16xf32>, vector<8x16xf32> -> vector<8x16xf32>
    %45 = arith.addf %44, %8 : vector<8x16xf32>
    %cst_16 = arith.constant dense<0xFF800000> : vector<8xf32>
    %46 = vector.multi_reduction <maximumf>, %45, %cst_16 [1] : vector<8x16xf32> to vector<8xf32>
    %47 = vector.shape_cast %46 : vector<8xf32> to vector<8x1xf32>
    %48 = vector.broadcast %47 : vector<8x1xf32> to vector<8x16xf32>
    %49 = arith.cmpf oeq, %45, %48 : vector<8x16xf32>
    %c16_i32 = arith.constant 16 : i32
    %50 = vector.broadcast %c16_i32 : i32 to vector<8x16xi32>
    %51 = arith.select %49, %9, %50 : vector<8x16xi1>, vector<8x16xi32>
    %cst_17 = arith.constant dense<2147483647> : vector<8xi32>
    %52 = vector.multi_reduction <minsi>, %51, %cst_17 [1] : vector<8x16xi32> to vector<8xi32>
    %53 = vector.shape_cast %52 : vector<8xi32> to vector<8x1xi32>
    %54 = vector.broadcast %53 : vector<8x1xi32> to vector<8x16xi32>
    %55 = arith.cmpi eq, %9, %54 : vector<8x16xi32>
    %56 = arith.extui %55 : vector<8x16xi1> to vector<8x16xi32>
    %57 = arith.sitofp %56 : vector<8x16xi32> to vector<8x16xf32>
    %c0_18 = arith.constant 0 : index
    %c0_19 = arith.constant 0 : index
    %58 = vector.load %arg1[%c0_18, %c0_19] : memref<8x9xi32, #tpu.memory_space<vmem>>, vector<8x1xi32>
    %59 = vector.broadcast %58 : vector<8x1xi32> to vector<8x16xi32>
    %60 = arith.cmpi eq, %9, %59 : vector<8x16xi32>
    %61 = arith.extui %60 : vector<8x16xi1> to vector<8x16xi32>
    %62 = arith.sitofp %61 : vector<8x16xi32> to vector<8x16xf32>
    %c0_20 = arith.constant 0 : index
    %63 = memref.load %arg0[%c0_20] : memref<9xi32, #tpu.memory_space<smem>>
    %c0_i32 = arith.constant 0 : i32
    %64 = arith.cmpi sgt, %63, %c0_i32 : i32
    %65 = arith.select %64, %62, %57 : vector<8x16xf32>
    %cst_21 = arith.constant dense<0.000000e+00> : vector<8x96xf32>
    %66 = tpu.matmul %65, %0, %cst_21 {dimension_numbers = #tpu.dot_dimension_numbers<[1], [0], [0], [1], [0, 0, 1, 1], [], []>} : vector<8x16xf32>, vector<16x96xf32>, vector<8x96xf32> -> vector<8x96xf32>
    %cst_22 = arith.constant dense<0.000000e+00> : vector<8x96xf32>
    %67 = tpu.matmul %43, %1, %cst_22 {dimension_numbers = #tpu.dot_dimension_numbers<[1], [0], [0], [1], [0, 0, 1, 1], [], []>} : vector<8x32xf32>, vector<32x96xf32>, vector<8x96xf32> -> vector<8x96xf32>
    %68 = vector.extract_strided_slice %66 {offsets = [0, 0], sizes = [8, 32], strides = [1, 1]} : vector<8x96xf32> to vector<8x32xf32>
    %69 = vector.extract_strided_slice %67 {offsets = [0, 0], sizes = [8, 32], strides = [1, 1]} : vector<8x96xf32> to vector<8x32xf32>
    %70 = arith.addf %68, %69 : vector<8x32xf32>
    %71 = arith.negf %70 : vector<8x32xf32>
    %72 = math.exp %71 : vector<8x32xf32>
    %cst_23 = arith.constant 1.000000e+00 : f32
    %73 = vector.broadcast %cst_23 : f32 to vector<8x32xf32>
    %74 = arith.addf %73, %72 : vector<8x32xf32>
    %75 = arith.divf %73, %74 : vector<8x32xf32>
    %76 = vector.extract_strided_slice %66 {offsets = [0, 32], sizes = [8, 32], strides = [1, 1]} : vector<8x96xf32> to vector<8x32xf32>
    %77 = vector.extract_strided_slice %67 {offsets = [0, 32], sizes = [8, 32], strides = [1, 1]} : vector<8x96xf32> to vector<8x32xf32>
    %78 = arith.addf %76, %77 : vector<8x32xf32>
    %79 = arith.negf %78 : vector<8x32xf32>
    %80 = math.exp %79 : vector<8x32xf32>
    %cst_24 = arith.constant 1.000000e+00 : f32
    %81 = vector.broadcast %cst_24 : f32 to vector<8x32xf32>
    %82 = arith.addf %81, %80 : vector<8x32xf32>
    %83 = arith.divf %81, %82 : vector<8x32xf32>
    %84 = vector.extract_strided_slice %66 {offsets = [0, 64], sizes = [8, 32], strides = [1, 1]} : vector<8x96xf32> to vector<8x32xf32>
    %85 = vector.extract_strided_slice %67 {offsets = [0, 64], sizes = [8, 32], strides = [1, 1]} : vector<8x96xf32> to vector<8x32xf32>
    %86 = arith.addf %85, %5 : vector<8x32xf32>
    %87 = arith.mulf %75, %86 : vector<8x32xf32>
    %88 = arith.addf %84, %87 : vector<8x32xf32>
    %89 = math.tanh %88 : vector<8x32xf32>
    %cst_25 = arith.constant 1.000000e+00 : f32
    %90 = vector.broadcast %cst_25 : f32 to vector<8x32xf32>
    %91 = arith.subf %90, %83 : vector<8x32xf32>
    %92 = arith.mulf %91, %89 : vector<8x32xf32>
    %93 = arith.mulf %83, %43 : vector<8x32xf32>
    %94 = arith.addf %92, %93 : vector<8x32xf32>
    %cst_26 = arith.constant dense<0.000000e+00> : vector<8x16xf32>
    %95 = tpu.matmul %94, %2, %cst_26 {dimension_numbers = #tpu.dot_dimension_numbers<[1], [0], [0], [1], [0, 0, 1, 1], [], []>} : vector<8x32xf32>, vector<32x16xf32>, vector<8x16xf32> -> vector<8x16xf32>
    %96 = arith.addf %95, %8 : vector<8x16xf32>
    %cst_27 = arith.constant dense<0xFF800000> : vector<8xf32>
    %97 = vector.multi_reduction <maximumf>, %96, %cst_27 [1] : vector<8x16xf32> to vector<8xf32>
    %98 = vector.shape_cast %97 : vector<8xf32> to vector<8x1xf32>
    %99 = vector.broadcast %98 : vector<8x1xf32> to vector<8x16xf32>
    %100 = arith.cmpf oeq, %96, %99 : vector<8x16xf32>
    %c16_i32_28 = arith.constant 16 : i32
    %101 = vector.broadcast %c16_i32_28 : i32 to vector<8x16xi32>
    %102 = arith.select %100, %9, %101 : vector<8x16xi1>, vector<8x16xi32>
    %cst_29 = arith.constant dense<2147483647> : vector<8xi32>
    %103 = vector.multi_reduction <minsi>, %102, %cst_29 [1] : vector<8x16xi32> to vector<8xi32>
    %104 = vector.shape_cast %103 : vector<8xi32> to vector<8x1xi32>
    %105 = vector.broadcast %104 : vector<8x1xi32> to vector<8x16xi32>
    %106 = arith.cmpi eq, %9, %105 : vector<8x16xi32>
    %107 = arith.extui %106 : vector<8x16xi1> to vector<8x16xi32>
    %108 = arith.sitofp %107 : vector<8x16xi32> to vector<8x16xf32>
    %c0_30 = arith.constant 0 : index
    %c1 = arith.constant 1 : index
    %109 = vector.load %arg1[%c0_30, %c1] : memref<8x9xi32, #tpu.memory_space<vmem>>, vector<8x1xi32>
    %110 = vector.broadcast %109 : vector<8x1xi32> to vector<8x16xi32>
    %111 = arith.cmpi eq, %9, %110 : vector<8x16xi32>
    %112 = arith.extui %111 : vector<8x16xi1> to vector<8x16xi32>
    %113 = arith.sitofp %112 : vector<8x16xi32> to vector<8x16xf32>
    %c1_31 = arith.constant 1 : index
    %114 = memref.load %arg0[%c1_31] : memref<9xi32, #tpu.memory_space<smem>>
    %c0_i32_32 = arith.constant 0 : i32
    %115 = arith.cmpi sgt, %114, %c0_i32_32 : i32
    %116 = arith.select %115, %113, %108 : vector<8x16xf32>
    %cst_33 = arith.constant dense<0.000000e+00> : vector<8x96xf32>
    %117 = tpu.matmul %116, %0, %cst_33 {dimension_numbers = #tpu.dot_dimension_numbers<[1], [0], [0], [1], [0, 0, 1, 1], [], []>} : vector<8x16xf32>, vector<16x96xf32>, vector<8x96xf32> -> vector<8x96xf32>
    %cst_34 = arith.constant dense<0.000000e+00> : vector<8x96xf32>
    %118 = tpu.matmul %94, %1, %cst_34 {dimension_numbers = #tpu.dot_dimension_numbers<[1], [0], [0], [1], [0, 0, 1, 1], [], []>} : vector<8x32xf32>, vector<32x96xf32>, vector<8x96xf32> -> vector<8x96xf32>
    %119 = vector.extract_strided_slice %117 {offsets = [0, 0], sizes = [8, 32], strides = [1, 1]} : vector<8x96xf32> to vector<8x32xf32>
    %120 = vector.extract_strided_slice %118 {offsets = [0, 0], sizes = [8, 32], strides = [1, 1]} : vector<8x96xf32> to vector<8x32xf32>
    %121 = arith.addf %119, %120 : vector<8x32xf32>
    %122 = arith.negf %121 : vector<8x32xf32>
    %123 = math.exp %122 : vector<8x32xf32>
    %cst_35 = arith.constant 1.000000e+00 : f32
    %124 = vector.broadcast %cst_35 : f32 to vector<8x32xf32>
    %125 = arith.addf %124, %123 : vector<8x32xf32>
    %126 = arith.divf %124, %125 : vector<8x32xf32>
    %127 = vector.extract_strided_slice %117 {offsets = [0, 32], sizes = [8, 32], strides = [1, 1]} : vector<8x96xf32> to vector<8x32xf32>
    %128 = vector.extract_strided_slice %118 {offsets = [0, 32], sizes = [8, 32], strides = [1, 1]} : vector<8x96xf32> to vector<8x32xf32>
    %129 = arith.addf %127, %128 : vector<8x32xf32>
    %130 = arith.negf %129 : vector<8x32xf32>
    %131 = math.exp %130 : vector<8x32xf32>
    %cst_36 = arith.constant 1.000000e+00 : f32
    %132 = vector.broadcast %cst_36 : f32 to vector<8x32xf32>
    %133 = arith.addf %132, %131 : vector<8x32xf32>
    %134 = arith.divf %132, %133 : vector<8x32xf32>
    %135 = vector.extract_strided_slice %117 {offsets = [0, 64], sizes = [8, 32], strides = [1, 1]} : vector<8x96xf32> to vector<8x32xf32>
    %136 = vector.extract_strided_slice %118 {offsets = [0, 64], sizes = [8, 32], strides = [1, 1]} : vector<8x96xf32> to vector<8x32xf32>
    %137 = arith.addf %136, %5 : vector<8x32xf32>
    %138 = arith.mulf %126, %137 : vector<8x32xf32>
    %139 = arith.addf %135, %138 : vector<8x32xf32>
    %140 = math.tanh %139 : vector<8x32xf32>
    %cst_37 = arith.constant 1.000000e+00 : f32
    %141 = vector.broadcast %cst_37 : f32 to vector<8x32xf32>
    %142 = arith.subf %141, %134 : vector<8x32xf32>
    %143 = arith.mulf %142, %140 : vector<8x32xf32>
    %144 = arith.mulf %134, %94 : vector<8x32xf32>
    %145 = arith.addf %143, %144 : vector<8x32xf32>
    %cst_38 = arith.constant dense<0.000000e+00> : vector<8x16xf32>
    %146 = tpu.matmul %145, %2, %cst_38 {dimension_numbers = #tpu.dot_dimension_numbers<[1], [0], [0], [1], [0, 0, 1, 1], [], []>} : vector<8x32xf32>, vector<32x16xf32>, vector<8x16xf32> -> vector<8x16xf32>
    %147 = arith.addf %146, %8 : vector<8x16xf32>
    %cst_39 = arith.constant dense<0xFF800000> : vector<8xf32>
    %148 = vector.multi_reduction <maximumf>, %147, %cst_39 [1] : vector<8x16xf32> to vector<8xf32>
    %149 = vector.shape_cast %148 : vector<8xf32> to vector<8x1xf32>
    %150 = vector.broadcast %149 : vector<8x1xf32> to vector<8x16xf32>
    %151 = arith.cmpf oeq, %147, %150 : vector<8x16xf32>
    %c16_i32_40 = arith.constant 16 : i32
    %152 = vector.broadcast %c16_i32_40 : i32 to vector<8x16xi32>
    %153 = arith.select %151, %9, %152 : vector<8x16xi1>, vector<8x16xi32>
    %cst_41 = arith.constant dense<2147483647> : vector<8xi32>
    %154 = vector.multi_reduction <minsi>, %153, %cst_41 [1] : vector<8x16xi32> to vector<8xi32>
    %155 = vector.shape_cast %154 : vector<8xi32> to vector<8x1xi32>
    %156 = vector.broadcast %155 : vector<8x1xi32> to vector<8x16xi32>
    %157 = arith.cmpi eq, %9, %156 : vector<8x16xi32>
    %158 = arith.extui %157 : vector<8x16xi1> to vector<8x16xi32>
    %159 = arith.sitofp %158 : vector<8x16xi32> to vector<8x16xf32>
    %c0_42 = arith.constant 0 : index
    %c2 = arith.constant 2 : index
    %160 = vector.load %arg1[%c0_42, %c2] : memref<8x9xi32, #tpu.memory_space<vmem>>, vector<8x1xi32>
    %161 = vector.broadcast %160 : vector<8x1xi32> to vector<8x16xi32>
    %162 = arith.cmpi eq, %9, %161 : vector<8x16xi32>
    %163 = arith.extui %162 : vector<8x16xi1> to vector<8x16xi32>
    %164 = arith.sitofp %163 : vector<8x16xi32> to vector<8x16xf32>
    %c2_43 = arith.constant 2 : index
    %165 = memref.load %arg0[%c2_43] : memref<9xi32, #tpu.memory_space<smem>>
    %c0_i32_44 = arith.constant 0 : i32
    %166 = arith.cmpi sgt, %165, %c0_i32_44 : i32
    %167 = arith.select %166, %164, %159 : vector<8x16xf32>
    %cst_45 = arith.constant dense<0.000000e+00> : vector<8x96xf32>
    %168 = tpu.matmul %167, %0, %cst_45 {dimension_numbers = #tpu.dot_dimension_numbers<[1], [0], [0], [1], [0, 0, 1, 1], [], []>} : vector<8x16xf32>, vector<16x96xf32>, vector<8x96xf32> -> vector<8x96xf32>
    %cst_46 = arith.constant dense<0.000000e+00> : vector<8x96xf32>
    %169 = tpu.matmul %145, %1, %cst_46 {dimension_numbers = #tpu.dot_dimension_numbers<[1], [0], [0], [1], [0, 0, 1, 1], [], []>} : vector<8x32xf32>, vector<32x96xf32>, vector<8x96xf32> -> vector<8x96xf32>
    %170 = vector.extract_strided_slice %168 {offsets = [0, 0], sizes = [8, 32], strides = [1, 1]} : vector<8x96xf32> to vector<8x32xf32>
    %171 = vector.extract_strided_slice %169 {offsets = [0, 0], sizes = [8, 32], strides = [1, 1]} : vector<8x96xf32> to vector<8x32xf32>
    %172 = arith.addf %170, %171 : vector<8x32xf32>
    %173 = arith.negf %172 : vector<8x32xf32>
    %174 = math.exp %173 : vector<8x32xf32>
    %cst_47 = arith.constant 1.000000e+00 : f32
    %175 = vector.broadcast %cst_47 : f32 to vector<8x32xf32>
    %176 = arith.addf %175, %174 : vector<8x32xf32>
    %177 = arith.divf %175, %176 : vector<8x32xf32>
    %178 = vector.extract_strided_slice %168 {offsets = [0, 32], sizes = [8, 32], strides = [1, 1]} : vector<8x96xf32> to vector<8x32xf32>
    %179 = vector.extract_strided_slice %169 {offsets = [0, 32], sizes = [8, 32], strides = [1, 1]} : vector<8x96xf32> to vector<8x32xf32>
    %180 = arith.addf %178, %179 : vector<8x32xf32>
    %181 = arith.negf %180 : vector<8x32xf32>
    %182 = math.exp %181 : vector<8x32xf32>
    %cst_48 = arith.constant 1.000000e+00 : f32
    %183 = vector.broadcast %cst_48 : f32 to vector<8x32xf32>
    %184 = arith.addf %183, %182 : vector<8x32xf32>
    %185 = arith.divf %183, %184 : vector<8x32xf32>
    %186 = vector.extract_strided_slice %168 {offsets = [0, 64], sizes = [8, 32], strides = [1, 1]} : vector<8x96xf32> to vector<8x32xf32>
    %187 = vector.extract_strided_slice %169 {offsets = [0, 64], sizes = [8, 32], strides = [1, 1]} : vector<8x96xf32> to vector<8x32xf32>
    %188 = arith.addf %187, %5 : vector<8x32xf32>
    %189 = arith.mulf %177, %188 : vector<8x32xf32>
    %190 = arith.addf %186, %189 : vector<8x32xf32>
    %191 = math.tanh %190 : vector<8x32xf32>
    %cst_49 = arith.constant 1.000000e+00 : f32
    %192 = vector.broadcast %cst_49 : f32 to vector<8x32xf32>
    %193 = arith.subf %192, %185 : vector<8x32xf32>
    %194 = arith.mulf %193, %191 : vector<8x32xf32>
    %195 = arith.mulf %185, %145 : vector<8x32xf32>
    %196 = arith.addf %194, %195 : vector<8x32xf32>
    %cst_50 = arith.constant dense<0.000000e+00> : vector<8x16xf32>
    %197 = tpu.matmul %196, %2, %cst_50 {dimension_numbers = #tpu.dot_dimension_numbers<[1], [0], [0], [1], [0, 0, 1, 1], [], []>} : vector<8x32xf32>, vector<32x16xf32>, vector<8x16xf32> -> vector<8x16xf32>
    %198 = arith.addf %197, %8 : vector<8x16xf32>
    %cst_51 = arith.constant dense<0xFF800000> : vector<8xf32>
    %199 = vector.multi_reduction <maximumf>, %198, %cst_51 [1] : vector<8x16xf32> to vector<8xf32>
    %200 = vector.shape_cast %199 : vector<8xf32> to vector<8x1xf32>
    %201 = vector.broadcast %200 : vector<8x1xf32> to vector<8x16xf32>
    %202 = arith.cmpf oeq, %198, %201 : vector<8x16xf32>
    %c16_i32_52 = arith.constant 16 : i32
    %203 = vector.broadcast %c16_i32_52 : i32 to vector<8x16xi32>
    %204 = arith.select %202, %9, %203 : vector<8x16xi1>, vector<8x16xi32>
    %cst_53 = arith.constant dense<2147483647> : vector<8xi32>
    %205 = vector.multi_reduction <minsi>, %204, %cst_53 [1] : vector<8x16xi32> to vector<8xi32>
    %206 = vector.shape_cast %205 : vector<8xi32> to vector<8x1xi32>
    %207 = vector.broadcast %206 : vector<8x1xi32> to vector<8x16xi32>
    %208 = arith.cmpi eq, %9, %207 : vector<8x16xi32>
    %209 = arith.extui %208 : vector<8x16xi1> to vector<8x16xi32>
    %210 = arith.sitofp %209 : vector<8x16xi32> to vector<8x16xf32>
    %c0_54 = arith.constant 0 : index
    %c3 = arith.constant 3 : index
    %211 = vector.load %arg1[%c0_54, %c3] : memref<8x9xi32, #tpu.memory_space<vmem>>, vector<8x1xi32>
    %212 = vector.broadcast %211 : vector<8x1xi32> to vector<8x16xi32>
    %213 = arith.cmpi eq, %9, %212 : vector<8x16xi32>
    %214 = arith.extui %213 : vector<8x16xi1> to vector<8x16xi32>
    %215 = arith.sitofp %214 : vector<8x16xi32> to vector<8x16xf32>
    %c3_55 = arith.constant 3 : index
    %216 = memref.load %arg0[%c3_55] : memref<9xi32, #tpu.memory_space<smem>>
    %c0_i32_56 = arith.constant 0 : i32
    %217 = arith.cmpi sgt, %216, %c0_i32_56 : i32
    %218 = arith.select %217, %215, %210 : vector<8x16xf32>
    %cst_57 = arith.constant dense<0.000000e+00> : vector<8x96xf32>
    %219 = tpu.matmul %218, %0, %cst_57 {dimension_numbers = #tpu.dot_dimension_numbers<[1], [0], [0], [1], [0, 0, 1, 1], [], []>} : vector<8x16xf32>, vector<16x96xf32>, vector<8x96xf32> -> vector<8x96xf32>
    %cst_58 = arith.constant dense<0.000000e+00> : vector<8x96xf32>
    %220 = tpu.matmul %196, %1, %cst_58 {dimension_numbers = #tpu.dot_dimension_numbers<[1], [0], [0], [1], [0, 0, 1, 1], [], []>} : vector<8x32xf32>, vector<32x96xf32>, vector<8x96xf32> -> vector<8x96xf32>
    %221 = vector.extract_strided_slice %219 {offsets = [0, 0], sizes = [8, 32], strides = [1, 1]} : vector<8x96xf32> to vector<8x32xf32>
    %222 = vector.extract_strided_slice %220 {offsets = [0, 0], sizes = [8, 32], strides = [1, 1]} : vector<8x96xf32> to vector<8x32xf32>
    %223 = arith.addf %221, %222 : vector<8x32xf32>
    %224 = arith.negf %223 : vector<8x32xf32>
    %225 = math.exp %224 : vector<8x32xf32>
    %cst_59 = arith.constant 1.000000e+00 : f32
    %226 = vector.broadcast %cst_59 : f32 to vector<8x32xf32>
    %227 = arith.addf %226, %225 : vector<8x32xf32>
    %228 = arith.divf %226, %227 : vector<8x32xf32>
    %229 = vector.extract_strided_slice %219 {offsets = [0, 32], sizes = [8, 32], strides = [1, 1]} : vector<8x96xf32> to vector<8x32xf32>
    %230 = vector.extract_strided_slice %220 {offsets = [0, 32], sizes = [8, 32], strides = [1, 1]} : vector<8x96xf32> to vector<8x32xf32>
    %231 = arith.addf %229, %230 : vector<8x32xf32>
    %232 = arith.negf %231 : vector<8x32xf32>
    %233 = math.exp %232 : vector<8x32xf32>
    %cst_60 = arith.constant 1.000000e+00 : f32
    %234 = vector.broadcast %cst_60 : f32 to vector<8x32xf32>
    %235 = arith.addf %234, %233 : vector<8x32xf32>
    %236 = arith.divf %234, %235 : vector<8x32xf32>
    %237 = vector.extract_strided_slice %219 {offsets = [0, 64], sizes = [8, 32], strides = [1, 1]} : vector<8x96xf32> to vector<8x32xf32>
    %238 = vector.extract_strided_slice %220 {offsets = [0, 64], sizes = [8, 32], strides = [1, 1]} : vector<8x96xf32> to vector<8x32xf32>
    %239 = arith.addf %238, %5 : vector<8x32xf32>
    %240 = arith.mulf %228, %239 : vector<8x32xf32>
    %241 = arith.addf %237, %240 : vector<8x32xf32>
    %242 = math.tanh %241 : vector<8x32xf32>
    %cst_61 = arith.constant 1.000000e+00 : f32
    %243 = vector.broadcast %cst_61 : f32 to vector<8x32xf32>
    %244 = arith.subf %243, %236 : vector<8x32xf32>
    %245 = arith.mulf %244, %242 : vector<8x32xf32>
    %246 = arith.mulf %236, %196 : vector<8x32xf32>
    %247 = arith.addf %245, %246 : vector<8x32xf32>
    %cst_62 = arith.constant dense<0.000000e+00> : vector<8x16xf32>
    %248 = tpu.matmul %247, %2, %cst_62 {dimension_numbers = #tpu.dot_dimension_numbers<[1], [0], [0], [1], [0, 0, 1, 1], [], []>} : vector<8x32xf32>, vector<32x16xf32>, vector<8x16xf32> -> vector<8x16xf32>
    %249 = arith.addf %248, %8 : vector<8x16xf32>
    %cst_63 = arith.constant dense<0xFF800000> : vector<8xf32>
    %250 = vector.multi_reduction <maximumf>, %249, %cst_63 [1] : vector<8x16xf32> to vector<8xf32>
    %251 = vector.shape_cast %250 : vector<8xf32> to vector<8x1xf32>
    %252 = vector.broadcast %251 : vector<8x1xf32> to vector<8x16xf32>
    %253 = arith.cmpf oeq, %249, %252 : vector<8x16xf32>
    %c16_i32_64 = arith.constant 16 : i32
    %254 = vector.broadcast %c16_i32_64 : i32 to vector<8x16xi32>
    %255 = arith.select %253, %9, %254 : vector<8x16xi1>, vector<8x16xi32>
    %cst_65 = arith.constant dense<2147483647> : vector<8xi32>
    %256 = vector.multi_reduction <minsi>, %255, %cst_65 [1] : vector<8x16xi32> to vector<8xi32>
    %257 = vector.shape_cast %256 : vector<8xi32> to vector<8x1xi32>
    %258 = vector.broadcast %257 : vector<8x1xi32> to vector<8x16xi32>
    %259 = arith.cmpi eq, %9, %258 : vector<8x16xi32>
    %260 = arith.extui %259 : vector<8x16xi1> to vector<8x16xi32>
    %261 = arith.sitofp %260 : vector<8x16xi32> to vector<8x16xf32>
    %c0_66 = arith.constant 0 : index
    %c4 = arith.constant 4 : index
    %262 = vector.load %arg1[%c0_66, %c4] : memref<8x9xi32, #tpu.memory_space<vmem>>, vector<8x1xi32>
    %263 = vector.broadcast %262 : vector<8x1xi32> to vector<8x16xi32>
    %264 = arith.cmpi eq, %9, %263 : vector<8x16xi32>
    %265 = arith.extui %264 : vector<8x16xi1> to vector<8x16xi32>
    %266 = arith.sitofp %265 : vector<8x16xi32> to vector<8x16xf32>
    %c4_67 = arith.constant 4 : index
    %267 = memref.load %arg0[%c4_67] : memref<9xi32, #tpu.memory_space<smem>>
    %c0_i32_68 = arith.constant 0 : i32
    %268 = arith.cmpi sgt, %267, %c0_i32_68 : i32
    %269 = arith.select %268, %266, %261 : vector<8x16xf32>
    %cst_69 = arith.constant dense<0.000000e+00> : vector<8x96xf32>
    %270 = tpu.matmul %269, %0, %cst_69 {dimension_numbers = #tpu.dot_dimension_numbers<[1], [0], [0], [1], [0, 0, 1, 1], [], []>} : vector<8x16xf32>, vector<16x96xf32>, vector<8x96xf32> -> vector<8x96xf32>
    %cst_70 = arith.constant dense<0.000000e+00> : vector<8x96xf32>
    %271 = tpu.matmul %247, %1, %cst_70 {dimension_numbers = #tpu.dot_dimension_numbers<[1], [0], [0], [1], [0, 0, 1, 1], [], []>} : vector<8x32xf32>, vector<32x96xf32>, vector<8x96xf32> -> vector<8x96xf32>
    %272 = vector.extract_strided_slice %270 {offsets = [0, 0], sizes = [8, 32], strides = [1, 1]} : vector<8x96xf32> to vector<8x32xf32>
    %273 = vector.extract_strided_slice %271 {offsets = [0, 0], sizes = [8, 32], strides = [1, 1]} : vector<8x96xf32> to vector<8x32xf32>
    %274 = arith.addf %272, %273 : vector<8x32xf32>
    %275 = arith.negf %274 : vector<8x32xf32>
    %276 = math.exp %275 : vector<8x32xf32>
    %cst_71 = arith.constant 1.000000e+00 : f32
    %277 = vector.broadcast %cst_71 : f32 to vector<8x32xf32>
    %278 = arith.addf %277, %276 : vector<8x32xf32>
    %279 = arith.divf %277, %278 : vector<8x32xf32>
    %280 = vector.extract_strided_slice %270 {offsets = [0, 32], sizes = [8, 32], strides = [1, 1]} : vector<8x96xf32> to vector<8x32xf32>
    %281 = vector.extract_strided_slice %271 {offsets = [0, 32], sizes = [8, 32], strides = [1, 1]} : vector<8x96xf32> to vector<8x32xf32>
    %282 = arith.addf %280, %281 : vector<8x32xf32>
    %283 = arith.negf %282 : vector<8x32xf32>
    %284 = math.exp %283 : vector<8x32xf32>
    %cst_72 = arith.constant 1.000000e+00 : f32
    %285 = vector.broadcast %cst_72 : f32 to vector<8x32xf32>
    %286 = arith.addf %285, %284 : vector<8x32xf32>
    %287 = arith.divf %285, %286 : vector<8x32xf32>
    %288 = vector.extract_strided_slice %270 {offsets = [0, 64], sizes = [8, 32], strides = [1, 1]} : vector<8x96xf32> to vector<8x32xf32>
    %289 = vector.extract_strided_slice %271 {offsets = [0, 64], sizes = [8, 32], strides = [1, 1]} : vector<8x96xf32> to vector<8x32xf32>
    %290 = arith.addf %289, %5 : vector<8x32xf32>
    %291 = arith.mulf %279, %290 : vector<8x32xf32>
    %292 = arith.addf %288, %291 : vector<8x32xf32>
    %293 = math.tanh %292 : vector<8x32xf32>
    %cst_73 = arith.constant 1.000000e+00 : f32
    %294 = vector.broadcast %cst_73 : f32 to vector<8x32xf32>
    %295 = arith.subf %294, %287 : vector<8x32xf32>
    %296 = arith.mulf %295, %293 : vector<8x32xf32>
    %297 = arith.mulf %287, %247 : vector<8x32xf32>
    %298 = arith.addf %296, %297 : vector<8x32xf32>
    %cst_74 = arith.constant dense<0.000000e+00> : vector<8x16xf32>
    %299 = tpu.matmul %298, %2, %cst_74 {dimension_numbers = #tpu.dot_dimension_numbers<[1], [0], [0], [1], [0, 0, 1, 1], [], []>} : vector<8x32xf32>, vector<32x16xf32>, vector<8x16xf32> -> vector<8x16xf32>
    %300 = arith.addf %299, %8 : vector<8x16xf32>
    %cst_75 = arith.constant dense<0xFF800000> : vector<8xf32>
    %301 = vector.multi_reduction <maximumf>, %300, %cst_75 [1] : vector<8x16xf32> to vector<8xf32>
    %302 = vector.shape_cast %301 : vector<8xf32> to vector<8x1xf32>
    %303 = vector.broadcast %302 : vector<8x1xf32> to vector<8x16xf32>
    %304 = arith.cmpf oeq, %300, %303 : vector<8x16xf32>
    %c16_i32_76 = arith.constant 16 : i32
    %305 = vector.broadcast %c16_i32_76 : i32 to vector<8x16xi32>
    %306 = arith.select %304, %9, %305 : vector<8x16xi1>, vector<8x16xi32>
    %cst_77 = arith.constant dense<2147483647> : vector<8xi32>
    %307 = vector.multi_reduction <minsi>, %306, %cst_77 [1] : vector<8x16xi32> to vector<8xi32>
    %308 = vector.shape_cast %307 : vector<8xi32> to vector<8x1xi32>
    %309 = vector.broadcast %308 : vector<8x1xi32> to vector<8x16xi32>
    %310 = arith.cmpi eq, %9, %309 : vector<8x16xi32>
    %311 = arith.extui %310 : vector<8x16xi1> to vector<8x16xi32>
    %312 = arith.sitofp %311 : vector<8x16xi32> to vector<8x16xf32>
    %c0_78 = arith.constant 0 : index
    %c5 = arith.constant 5 : index
    %313 = vector.load %arg1[%c0_78, %c5] : memref<8x9xi32, #tpu.memory_space<vmem>>, vector<8x1xi32>
    %314 = vector.broadcast %313 : vector<8x1xi32> to vector<8x16xi32>
    %315 = arith.cmpi eq, %9, %314 : vector<8x16xi32>
    %316 = arith.extui %315 : vector<8x16xi1> to vector<8x16xi32>
    %317 = arith.sitofp %316 : vector<8x16xi32> to vector<8x16xf32>
    %c5_79 = arith.constant 5 : index
    %318 = memref.load %arg0[%c5_79] : memref<9xi32, #tpu.memory_space<smem>>
    %c0_i32_80 = arith.constant 0 : i32
    %319 = arith.cmpi sgt, %318, %c0_i32_80 : i32
    %320 = arith.select %319, %317, %312 : vector<8x16xf32>
    %cst_81 = arith.constant dense<0.000000e+00> : vector<8x96xf32>
    %321 = tpu.matmul %320, %0, %cst_81 {dimension_numbers = #tpu.dot_dimension_numbers<[1], [0], [0], [1], [0, 0, 1, 1], [], []>} : vector<8x16xf32>, vector<16x96xf32>, vector<8x96xf32> -> vector<8x96xf32>
    %cst_82 = arith.constant dense<0.000000e+00> : vector<8x96xf32>
    %322 = tpu.matmul %298, %1, %cst_82 {dimension_numbers = #tpu.dot_dimension_numbers<[1], [0], [0], [1], [0, 0, 1, 1], [], []>} : vector<8x32xf32>, vector<32x96xf32>, vector<8x96xf32> -> vector<8x96xf32>
    %323 = vector.extract_strided_slice %321 {offsets = [0, 0], sizes = [8, 32], strides = [1, 1]} : vector<8x96xf32> to vector<8x32xf32>
    %324 = vector.extract_strided_slice %322 {offsets = [0, 0], sizes = [8, 32], strides = [1, 1]} : vector<8x96xf32> to vector<8x32xf32>
    %325 = arith.addf %323, %324 : vector<8x32xf32>
    %326 = arith.negf %325 : vector<8x32xf32>
    %327 = math.exp %326 : vector<8x32xf32>
    %cst_83 = arith.constant 1.000000e+00 : f32
    %328 = vector.broadcast %cst_83 : f32 to vector<8x32xf32>
    %329 = arith.addf %328, %327 : vector<8x32xf32>
    %330 = arith.divf %328, %329 : vector<8x32xf32>
    %331 = vector.extract_strided_slice %321 {offsets = [0, 32], sizes = [8, 32], strides = [1, 1]} : vector<8x96xf32> to vector<8x32xf32>
    %332 = vector.extract_strided_slice %322 {offsets = [0, 32], sizes = [8, 32], strides = [1, 1]} : vector<8x96xf32> to vector<8x32xf32>
    %333 = arith.addf %331, %332 : vector<8x32xf32>
    %334 = arith.negf %333 : vector<8x32xf32>
    %335 = math.exp %334 : vector<8x32xf32>
    %cst_84 = arith.constant 1.000000e+00 : f32
    %336 = vector.broadcast %cst_84 : f32 to vector<8x32xf32>
    %337 = arith.addf %336, %335 : vector<8x32xf32>
    %338 = arith.divf %336, %337 : vector<8x32xf32>
    %339 = vector.extract_strided_slice %321 {offsets = [0, 64], sizes = [8, 32], strides = [1, 1]} : vector<8x96xf32> to vector<8x32xf32>
    %340 = vector.extract_strided_slice %322 {offsets = [0, 64], sizes = [8, 32], strides = [1, 1]} : vector<8x96xf32> to vector<8x32xf32>
    %341 = arith.addf %340, %5 : vector<8x32xf32>
    %342 = arith.mulf %330, %341 : vector<8x32xf32>
    %343 = arith.addf %339, %342 : vector<8x32xf32>
    %344 = math.tanh %343 : vector<8x32xf32>
    %cst_85 = arith.constant 1.000000e+00 : f32
    %345 = vector.broadcast %cst_85 : f32 to vector<8x32xf32>
    %346 = arith.subf %345, %338 : vector<8x32xf32>
    %347 = arith.mulf %346, %344 : vector<8x32xf32>
    %348 = arith.mulf %338, %298 : vector<8x32xf32>
    %349 = arith.addf %347, %348 : vector<8x32xf32>
    %cst_86 = arith.constant dense<0.000000e+00> : vector<8x16xf32>
    %350 = tpu.matmul %349, %2, %cst_86 {dimension_numbers = #tpu.dot_dimension_numbers<[1], [0], [0], [1], [0, 0, 1, 1], [], []>} : vector<8x32xf32>, vector<32x16xf32>, vector<8x16xf32> -> vector<8x16xf32>
    %351 = arith.addf %350, %8 : vector<8x16xf32>
    %cst_87 = arith.constant dense<0xFF800000> : vector<8xf32>
    %352 = vector.multi_reduction <maximumf>, %351, %cst_87 [1] : vector<8x16xf32> to vector<8xf32>
    %353 = vector.shape_cast %352 : vector<8xf32> to vector<8x1xf32>
    %354 = vector.broadcast %353 : vector<8x1xf32> to vector<8x16xf32>
    %355 = arith.cmpf oeq, %351, %354 : vector<8x16xf32>
    %c16_i32_88 = arith.constant 16 : i32
    %356 = vector.broadcast %c16_i32_88 : i32 to vector<8x16xi32>
    %357 = arith.select %355, %9, %356 : vector<8x16xi1>, vector<8x16xi32>
    %cst_89 = arith.constant dense<2147483647> : vector<8xi32>
    %358 = vector.multi_reduction <minsi>, %357, %cst_89 [1] : vector<8x16xi32> to vector<8xi32>
    %359 = vector.shape_cast %358 : vector<8xi32> to vector<8x1xi32>
    %360 = vector.broadcast %359 : vector<8x1xi32> to vector<8x16xi32>
    %361 = arith.cmpi eq, %9, %360 : vector<8x16xi32>
    %362 = arith.extui %361 : vector<8x16xi1> to vector<8x16xi32>
    %363 = arith.sitofp %362 : vector<8x16xi32> to vector<8x16xf32>
    %c0_90 = arith.constant 0 : index
    %c6 = arith.constant 6 : index
    %364 = vector.load %arg1[%c0_90, %c6] : memref<8x9xi32, #tpu.memory_space<vmem>>, vector<8x1xi32>
    %365 = vector.broadcast %364 : vector<8x1xi32> to vector<8x16xi32>
    %366 = arith.cmpi eq, %9, %365 : vector<8x16xi32>
    %367 = arith.extui %366 : vector<8x16xi1> to vector<8x16xi32>
    %368 = arith.sitofp %367 : vector<8x16xi32> to vector<8x16xf32>
    %c6_91 = arith.constant 6 : index
    %369 = memref.load %arg0[%c6_91] : memref<9xi32, #tpu.memory_space<smem>>
    %c0_i32_92 = arith.constant 0 : i32
    %370 = arith.cmpi sgt, %369, %c0_i32_92 : i32
    %371 = arith.select %370, %368, %363 : vector<8x16xf32>
    %cst_93 = arith.constant dense<0.000000e+00> : vector<8x96xf32>
    %372 = tpu.matmul %371, %0, %cst_93 {dimension_numbers = #tpu.dot_dimension_numbers<[1], [0], [0], [1], [0, 0, 1, 1], [], []>} : vector<8x16xf32>, vector<16x96xf32>, vector<8x96xf32> -> vector<8x96xf32>
    %cst_94 = arith.constant dense<0.000000e+00> : vector<8x96xf32>
    %373 = tpu.matmul %349, %1, %cst_94 {dimension_numbers = #tpu.dot_dimension_numbers<[1], [0], [0], [1], [0, 0, 1, 1], [], []>} : vector<8x32xf32>, vector<32x96xf32>, vector<8x96xf32> -> vector<8x96xf32>
    %374 = vector.extract_strided_slice %372 {offsets = [0, 0], sizes = [8, 32], strides = [1, 1]} : vector<8x96xf32> to vector<8x32xf32>
    %375 = vector.extract_strided_slice %373 {offsets = [0, 0], sizes = [8, 32], strides = [1, 1]} : vector<8x96xf32> to vector<8x32xf32>
    %376 = arith.addf %374, %375 : vector<8x32xf32>
    %377 = arith.negf %376 : vector<8x32xf32>
    %378 = math.exp %377 : vector<8x32xf32>
    %cst_95 = arith.constant 1.000000e+00 : f32
    %379 = vector.broadcast %cst_95 : f32 to vector<8x32xf32>
    %380 = arith.addf %379, %378 : vector<8x32xf32>
    %381 = arith.divf %379, %380 : vector<8x32xf32>
    %382 = vector.extract_strided_slice %372 {offsets = [0, 32], sizes = [8, 32], strides = [1, 1]} : vector<8x96xf32> to vector<8x32xf32>
    %383 = vector.extract_strided_slice %373 {offsets = [0, 32], sizes = [8, 32], strides = [1, 1]} : vector<8x96xf32> to vector<8x32xf32>
    %384 = arith.addf %382, %383 : vector<8x32xf32>
    %385 = arith.negf %384 : vector<8x32xf32>
    %386 = math.exp %385 : vector<8x32xf32>
    %cst_96 = arith.constant 1.000000e+00 : f32
    %387 = vector.broadcast %cst_96 : f32 to vector<8x32xf32>
    %388 = arith.addf %387, %386 : vector<8x32xf32>
    %389 = arith.divf %387, %388 : vector<8x32xf32>
    %390 = vector.extract_strided_slice %372 {offsets = [0, 64], sizes = [8, 32], strides = [1, 1]} : vector<8x96xf32> to vector<8x32xf32>
    %391 = vector.extract_strided_slice %373 {offsets = [0, 64], sizes = [8, 32], strides = [1, 1]} : vector<8x96xf32> to vector<8x32xf32>
    %392 = arith.addf %391, %5 : vector<8x32xf32>
    %393 = arith.mulf %381, %392 : vector<8x32xf32>
    %394 = arith.addf %390, %393 : vector<8x32xf32>
    %395 = math.tanh %394 : vector<8x32xf32>
    %cst_97 = arith.constant 1.000000e+00 : f32
    %396 = vector.broadcast %cst_97 : f32 to vector<8x32xf32>
    %397 = arith.subf %396, %389 : vector<8x32xf32>
    %398 = arith.mulf %397, %395 : vector<8x32xf32>
    %399 = arith.mulf %389, %349 : vector<8x32xf32>
    %400 = arith.addf %398, %399 : vector<8x32xf32>
    %cst_98 = arith.constant dense<0.000000e+00> : vector<8x16xf32>
    %401 = tpu.matmul %400, %2, %cst_98 {dimension_numbers = #tpu.dot_dimension_numbers<[1], [0], [0], [1], [0, 0, 1, 1], [], []>} : vector<8x32xf32>, vector<32x16xf32>, vector<8x16xf32> -> vector<8x16xf32>
    %402 = arith.addf %401, %8 : vector<8x16xf32>
    %cst_99 = arith.constant dense<0xFF800000> : vector<8xf32>
    %403 = vector.multi_reduction <maximumf>, %402, %cst_99 [1] : vector<8x16xf32> to vector<8xf32>
    %404 = vector.shape_cast %403 : vector<8xf32> to vector<8x1xf32>
    %405 = vector.broadcast %404 : vector<8x1xf32> to vector<8x16xf32>
    %406 = arith.cmpf oeq, %402, %405 : vector<8x16xf32>
    %c16_i32_100 = arith.constant 16 : i32
    %407 = vector.broadcast %c16_i32_100 : i32 to vector<8x16xi32>
    %408 = arith.select %406, %9, %407 : vector<8x16xi1>, vector<8x16xi32>
    %cst_101 = arith.constant dense<2147483647> : vector<8xi32>
    %409 = vector.multi_reduction <minsi>, %408, %cst_101 [1] : vector<8x16xi32> to vector<8xi32>
    %410 = vector.shape_cast %409 : vector<8xi32> to vector<8x1xi32>
    %411 = vector.broadcast %410 : vector<8x1xi32> to vector<8x16xi32>
    %412 = arith.cmpi eq, %9, %411 : vector<8x16xi32>
    %413 = arith.extui %412 : vector<8x16xi1> to vector<8x16xi32>
    %414 = arith.sitofp %413 : vector<8x16xi32> to vector<8x16xf32>
    %c0_102 = arith.constant 0 : index
    %c7 = arith.constant 7 : index
    %415 = vector.load %arg1[%c0_102, %c7] : memref<8x9xi32, #tpu.memory_space<vmem>>, vector<8x1xi32>
    %416 = vector.broadcast %415 : vector<8x1xi32> to vector<8x16xi32>
    %417 = arith.cmpi eq, %9, %416 : vector<8x16xi32>
    %418 = arith.extui %417 : vector<8x16xi1> to vector<8x16xi32>
    %419 = arith.sitofp %418 : vector<8x16xi32> to vector<8x16xf32>
    %c7_103 = arith.constant 7 : index
    %420 = memref.load %arg0[%c7_103] : memref<9xi32, #tpu.memory_space<smem>>
    %c0_i32_104 = arith.constant 0 : i32
    %421 = arith.cmpi sgt, %420, %c0_i32_104 : i32
    %422 = arith.select %421, %419, %414 : vector<8x16xf32>
    %cst_105 = arith.constant dense<0.000000e+00> : vector<8x96xf32>
    %423 = tpu.matmul %422, %0, %cst_105 {dimension_numbers = #tpu.dot_dimension_numbers<[1], [0], [0], [1], [0, 0, 1, 1], [], []>} : vector<8x16xf32>, vector<16x96xf32>, vector<8x96xf32> -> vector<8x96xf32>
    %cst_106 = arith.constant dense<0.000000e+00> : vector<8x96xf32>
    %424 = tpu.matmul %400, %1, %cst_106 {dimension_numbers = #tpu.dot_dimension_numbers<[1], [0], [0], [1], [0, 0, 1, 1], [], []>} : vector<8x32xf32>, vector<32x96xf32>, vector<8x96xf32> -> vector<8x96xf32>
    %425 = vector.extract_strided_slice %423 {offsets = [0, 0], sizes = [8, 32], strides = [1, 1]} : vector<8x96xf32> to vector<8x32xf32>
    %426 = vector.extract_strided_slice %424 {offsets = [0, 0], sizes = [8, 32], strides = [1, 1]} : vector<8x96xf32> to vector<8x32xf32>
    %427 = arith.addf %425, %426 : vector<8x32xf32>
    %428 = arith.negf %427 : vector<8x32xf32>
    %429 = math.exp %428 : vector<8x32xf32>
    %cst_107 = arith.constant 1.000000e+00 : f32
    %430 = vector.broadcast %cst_107 : f32 to vector<8x32xf32>
    %431 = arith.addf %430, %429 : vector<8x32xf32>
    %432 = arith.divf %430, %431 : vector<8x32xf32>
    %433 = vector.extract_strided_slice %423 {offsets = [0, 32], sizes = [8, 32], strides = [1, 1]} : vector<8x96xf32> to vector<8x32xf32>
    %434 = vector.extract_strided_slice %424 {offsets = [0, 32], sizes = [8, 32], strides = [1, 1]} : vector<8x96xf32> to vector<8x32xf32>
    %435 = arith.addf %433, %434 : vector<8x32xf32>
    %436 = arith.negf %435 : vector<8x32xf32>
    %437 = math.exp %436 : vector<8x32xf32>
    %cst_108 = arith.constant 1.000000e+00 : f32
    %438 = vector.broadcast %cst_108 : f32 to vector<8x32xf32>
    %439 = arith.addf %438, %437 : vector<8x32xf32>
    %440 = arith.divf %438, %439 : vector<8x32xf32>
    %441 = vector.extract_strided_slice %423 {offsets = [0, 64], sizes = [8, 32], strides = [1, 1]} : vector<8x96xf32> to vector<8x32xf32>
    %442 = vector.extract_strided_slice %424 {offsets = [0, 64], sizes = [8, 32], strides = [1, 1]} : vector<8x96xf32> to vector<8x32xf32>
    %443 = arith.addf %442, %5 : vector<8x32xf32>
    %444 = arith.mulf %432, %443 : vector<8x32xf32>
    %445 = arith.addf %441, %444 : vector<8x32xf32>
    %446 = math.tanh %445 : vector<8x32xf32>
    %cst_109 = arith.constant 1.000000e+00 : f32
    %447 = vector.broadcast %cst_109 : f32 to vector<8x32xf32>
    %448 = arith.subf %447, %440 : vector<8x32xf32>
    %449 = arith.mulf %448, %446 : vector<8x32xf32>
    %450 = arith.mulf %440, %400 : vector<8x32xf32>
    %451 = arith.addf %449, %450 : vector<8x32xf32>
    %cst_110 = arith.constant dense<0.000000e+00> : vector<8x16xf32>
    %452 = tpu.matmul %451, %2, %cst_110 {dimension_numbers = #tpu.dot_dimension_numbers<[1], [0], [0], [1], [0, 0, 1, 1], [], []>} : vector<8x32xf32>, vector<32x16xf32>, vector<8x16xf32> -> vector<8x16xf32>
    %453 = arith.addf %452, %8 : vector<8x16xf32>
    %c0_111 = arith.constant 0 : index
    %c0_112 = arith.constant 0 : index
    %454 = vector.load %arg9[%c0_111, %c0_112] : memref<8x32xf32, #tpu.memory_space<vmem>>, vector<8x32xf32>
    tpu.vector_store %arg9[%c0_111, %c0_112], %451 {strides = array<i32>} : memref<8x32xf32, #tpu.memory_space<vmem>>, vector<8x32xf32>,
    %cst_113 = arith.constant dense<0xFF800000> : vector<8xf32>
    %455 = vector.multi_reduction <maximumf>, %45, %cst_113 [1] : vector<8x16xf32> to vector<8xf32>
    %456 = vector.shape_cast %455 : vector<8xf32> to vector<8x1xf32>
    %457 = vector.broadcast %456 : vector<8x1xf32> to vector<8x16xf32>
    %458 = arith.subf %45, %457 : vector<8x16xf32>
    %459 = math.exp %458 : vector<8x16xf32>
    %cst_114 = arith.constant dense<0.000000e+00> : vector<8xf32>
    %460 = vector.multi_reduction <add>, %459, %cst_114 [1] : vector<8x16xf32> to vector<8xf32>
    %461 = vector.shape_cast %460 : vector<8xf32> to vector<8x1xf32>
    %462 = math.log %461 : vector<8x1xf32>
    %463 = arith.addf %456, %462 : vector<8x1xf32>
    %464 = vector.broadcast %463 : vector<8x1xf32> to vector<8x16xf32>
    %465 = arith.subf %45, %464 : vector<8x16xf32>
    %c0_115 = arith.constant 0 : index
    %c0_116 = arith.constant 0 : index
    %466 = vector.load %arg8[%c0_115, %c0_116] : memref<8x144xf32, #tpu.memory_space<vmem>>, vector<8x16xf32>
    tpu.vector_store %arg8[%c0_115, %c0_116], %465 {strides = array<i32>} : memref<8x144xf32, #tpu.memory_space<vmem>>, vector<8x16xf32>,
    %cst_117 = arith.constant dense<0xFF800000> : vector<8xf32>
    %467 = vector.multi_reduction <maximumf>, %96, %cst_117 [1] : vector<8x16xf32> to vector<8xf32>
    %468 = vector.shape_cast %467 : vector<8xf32> to vector<8x1xf32>
    %469 = vector.broadcast %468 : vector<8x1xf32> to vector<8x16xf32>
    %470 = arith.subf %96, %469 : vector<8x16xf32>
    %471 = math.exp %470 : vector<8x16xf32>
    %cst_118 = arith.constant dense<0.000000e+00> : vector<8xf32>
    %472 = vector.multi_reduction <add>, %471, %cst_118 [1] : vector<8x16xf32> to vector<8xf32>
    %473 = vector.shape_cast %472 : vector<8xf32> to vector<8x1xf32>
    %474 = math.log %473 : vector<8x1xf32>
    %475 = arith.addf %468, %474 : vector<8x1xf32>
    %476 = vector.broadcast %475 : vector<8x1xf32> to vector<8x16xf32>
    %477 = arith.subf %96, %476 : vector<8x16xf32>
    %c0_119 = arith.constant 0 : index
    %c16 = arith.constant 16 : index
    %478 = vector.load %arg8[%c0_119, %c16] : memref<8x144xf32, #tpu.memory_space<vmem>>, vector<8x16xf32>
    tpu.vector_store %arg8[%c0_119, %c16], %477 {strides = array<i32>} : memref<8x144xf32, #tpu.memory_space<vmem>>, vector<8x16xf32>,
    %cst_120 = arith.constant dense<0xFF800000> : vector<8xf32>
    %479 = vector.multi_reduction <maximumf>, %147, %cst_120 [1] : vector<8x16xf32> to vector<8xf32>
    %480 = vector.shape_cast %479 : vector<8xf32> to vector<8x1xf32>
    %481 = vector.broadcast %480 : vector<8x1xf32> to vector<8x16xf32>
    %482 = arith.subf %147, %481 : vector<8x16xf32>
    %483 = math.exp %482 : vector<8x16xf32>
    %cst_121 = arith.constant dense<0.000000e+00> : vector<8xf32>
    %484 = vector.multi_reduction <add>, %483, %cst_121 [1] : vector<8x16xf32> to vector<8xf32>
    %485 = vector.shape_cast %484 : vector<8xf32> to vector<8x1xf32>
    %486 = math.log %485 : vector<8x1xf32>
    %487 = arith.addf %480, %486 : vector<8x1xf32>
    %488 = vector.broadcast %487 : vector<8x1xf32> to vector<8x16xf32>
    %489 = arith.subf %147, %488 : vector<8x16xf32>
    %c0_122 = arith.constant 0 : index
    %c32 = arith.constant 32 : index
    %490 = vector.load %arg8[%c0_122, %c32] : memref<8x144xf32, #tpu.memory_space<vmem>>, vector<8x16xf32>
    tpu.vector_store %arg8[%c0_122, %c32], %489 {strides = array<i32>} : memref<8x144xf32, #tpu.memory_space<vmem>>, vector<8x16xf32>,
    %cst_123 = arith.constant dense<0xFF800000> : vector<8xf32>
    %491 = vector.multi_reduction <maximumf>, %198, %cst_123 [1] : vector<8x16xf32> to vector<8xf32>
    %492 = vector.shape_cast %491 : vector<8xf32> to vector<8x1xf32>
    %493 = vector.broadcast %492 : vector<8x1xf32> to vector<8x16xf32>
    %494 = arith.subf %198, %493 : vector<8x16xf32>
    %495 = math.exp %494 : vector<8x16xf32>
    %cst_124 = arith.constant dense<0.000000e+00> : vector<8xf32>
    %496 = vector.multi_reduction <add>, %495, %cst_124 [1] : vector<8x16xf32> to vector<8xf32>
    %497 = vector.shape_cast %496 : vector<8xf32> to vector<8x1xf32>
    %498 = math.log %497 : vector<8x1xf32>
    %499 = arith.addf %492, %498 : vector<8x1xf32>
    %500 = vector.broadcast %499 : vector<8x1xf32> to vector<8x16xf32>
    %501 = arith.subf %198, %500 : vector<8x16xf32>
    %c0_125 = arith.constant 0 : index
    %c48 = arith.constant 48 : index
    %502 = vector.load %arg8[%c0_125, %c48] : memref<8x144xf32, #tpu.memory_space<vmem>>, vector<8x16xf32>
    tpu.vector_store %arg8[%c0_125, %c48], %501 {strides = array<i32>} : memref<8x144xf32, #tpu.memory_space<vmem>>, vector<8x16xf32>,
    %cst_126 = arith.constant dense<0xFF800000> : vector<8xf32>
    %503 = vector.multi_reduction <maximumf>, %249, %cst_126 [1] : vector<8x16xf32> to vector<8xf32>
    %504 = vector.shape_cast %503 : vector<8xf32> to vector<8x1xf32>
    %505 = vector.broadcast %504 : vector<8x1xf32> to vector<8x16xf32>
    %506 = arith.subf %249, %505 : vector<8x16xf32>
    %507 = math.exp %506 : vector<8x16xf32>
    %cst_127 = arith.constant dense<0.000000e+00> : vector<8xf32>
    %508 = vector.multi_reduction <add>, %507, %cst_127 [1] : vector<8x16xf32> to vector<8xf32>
    %509 = vector.shape_cast %508 : vector<8xf32> to vector<8x1xf32>
    %510 = math.log %509 : vector<8x1xf32>
    %511 = arith.addf %504, %510 : vector<8x1xf32>
    %512 = vector.broadcast %511 : vector<8x1xf32> to vector<8x16xf32>
    %513 = arith.subf %249, %512 : vector<8x16xf32>
    %c0_128 = arith.constant 0 : index
    %c64 = arith.constant 64 : index
    %514 = vector.load %arg8[%c0_128, %c64] : memref<8x144xf32, #tpu.memory_space<vmem>>, vector<8x16xf32>
    tpu.vector_store %arg8[%c0_128, %c64], %513 {strides = array<i32>} : memref<8x144xf32, #tpu.memory_space<vmem>>, vector<8x16xf32>,
    %cst_129 = arith.constant dense<0xFF800000> : vector<8xf32>
    %515 = vector.multi_reduction <maximumf>, %300, %cst_129 [1] : vector<8x16xf32> to vector<8xf32>
    %516 = vector.shape_cast %515 : vector<8xf32> to vector<8x1xf32>
    %517 = vector.broadcast %516 : vector<8x1xf32> to vector<8x16xf32>
    %518 = arith.subf %300, %517 : vector<8x16xf32>
    %519 = math.exp %518 : vector<8x16xf32>
    %cst_130 = arith.constant dense<0.000000e+00> : vector<8xf32>
    %520 = vector.multi_reduction <add>, %519, %cst_130 [1] : vector<8x16xf32> to vector<8xf32>
    %521 = vector.shape_cast %520 : vector<8xf32> to vector<8x1xf32>
    %522 = math.log %521 : vector<8x1xf32>
    %523 = arith.addf %516, %522 : vector<8x1xf32>
    %524 = vector.broadcast %523 : vector<8x1xf32> to vector<8x16xf32>
    %525 = arith.subf %300, %524 : vector<8x16xf32>
    %c0_131 = arith.constant 0 : index
    %c80 = arith.constant 80 : index
    %526 = vector.load %arg8[%c0_131, %c80] : memref<8x144xf32, #tpu.memory_space<vmem>>, vector<8x16xf32>
    tpu.vector_store %arg8[%c0_131, %c80], %525 {strides = array<i32>} : memref<8x144xf32, #tpu.memory_space<vmem>>, vector<8x16xf32>,
    %cst_132 = arith.constant dense<0xFF800000> : vector<8xf32>
    %527 = vector.multi_reduction <maximumf>, %351, %cst_132 [1] : vector<8x16xf32> to vector<8xf32>
    %528 = vector.shape_cast %527 : vector<8xf32> to vector<8x1xf32>
    %529 = vector.broadcast %528 : vector<8x1xf32> to vector<8x16xf32>
    %530 = arith.subf %351, %529 : vector<8x16xf32>
    %531 = math.exp %530 : vector<8x16xf32>
    %cst_133 = arith.constant dense<0.000000e+00> : vector<8xf32>
    %532 = vector.multi_reduction <add>, %531, %cst_133 [1] : vector<8x16xf32> to vector<8xf32>
    %533 = vector.shape_cast %532 : vector<8xf32> to vector<8x1xf32>
    %534 = math.log %533 : vector<8x1xf32>
    %535 = arith.addf %528, %534 : vector<8x1xf32>
    %536 = vector.broadcast %535 : vector<8x1xf32> to vector<8x16xf32>
    %537 = arith.subf %351, %536 : vector<8x16xf32>
    %c0_134 = arith.constant 0 : index
    %c96 = arith.constant 96 : index
    %538 = vector.load %arg8[%c0_134, %c96] : memref<8x144xf32, #tpu.memory_space<vmem>>, vector<8x16xf32>
    tpu.vector_store %arg8[%c0_134, %c96], %537 {strides = array<i32>} : memref<8x144xf32, #tpu.memory_space<vmem>>, vector<8x16xf32>,
    %cst_135 = arith.constant dense<0xFF800000> : vector<8xf32>
    %539 = vector.multi_reduction <maximumf>, %402, %cst_135 [1] : vector<8x16xf32> to vector<8xf32>
    %540 = vector.shape_cast %539 : vector<8xf32> to vector<8x1xf32>
    %541 = vector.broadcast %540 : vector<8x1xf32> to vector<8x16xf32>
    %542 = arith.subf %402, %541 : vector<8x16xf32>
    %543 = math.exp %542 : vector<8x16xf32>
    %cst_136 = arith.constant dense<0.000000e+00> : vector<8xf32>
    %544 = vector.multi_reduction <add>, %543, %cst_136 [1] : vector<8x16xf32> to vector<8xf32>
    %545 = vector.shape_cast %544 : vector<8xf32> to vector<8x1xf32>
    %546 = math.log %545 : vector<8x1xf32>
    %547 = arith.addf %540, %546 : vector<8x1xf32>
    %548 = vector.broadcast %547 : vector<8x1xf32> to vector<8x16xf32>
    %549 = arith.subf %402, %548 : vector<8x16xf32>
    %c0_137 = arith.constant 0 : index
    %c112 = arith.constant 112 : index
    %550 = vector.load %arg8[%c0_137, %c112] : memref<8x144xf32, #tpu.memory_space<vmem>>, vector<8x16xf32>
    tpu.vector_store %arg8[%c0_137, %c112], %549 {strides = array<i32>} : memref<8x144xf32, #tpu.memory_space<vmem>>, vector<8x16xf32>,
    %cst_138 = arith.constant dense<0xFF800000> : vector<8xf32>
    %551 = vector.multi_reduction <maximumf>, %453, %cst_138 [1] : vector<8x16xf32> to vector<8xf32>
    %552 = vector.shape_cast %551 : vector<8xf32> to vector<8x1xf32>
    %553 = vector.broadcast %552 : vector<8x1xf32> to vector<8x16xf32>
    %554 = arith.subf %453, %553 : vector<8x16xf32>
    %555 = math.exp %554 : vector<8x16xf32>
    %cst_139 = arith.constant dense<0.000000e+00> : vector<8xf32>
    %556 = vector.multi_reduction <add>, %555, %cst_139 [1] : vector<8x16xf32> to vector<8xf32>
    %557 = vector.shape_cast %556 : vector<8xf32> to vector<8x1xf32>
    %558 = math.log %557 : vector<8x1xf32>
    %559 = arith.addf %552, %558 : vector<8x1xf32>
    %560 = vector.broadcast %559 : vector<8x1xf32> to vector<8x16xf32>
    %561 = arith.subf %453, %560 : vector<8x16xf32>
    %c0_140 = arith.constant 0 : index
    %c128 = arith.constant 128 : index
    %562 = vector.load %arg8[%c0_140, %c128] : memref<8x144xf32, #tpu.memory_space<vmem>>, vector<8x16xf32>
    tpu.vector_store %arg8[%c0_140, %c128], %561 {strides = array<i32>} : memref<8x144xf32, #tpu.memory_space<vmem>>, vector<8x16xf32>,
    return
  }
}

</mosaic_0001>

<llo_original>
// kernel: num_decoder_forward.1
$region0: #{num_decoder_forward.1}
  #allocation0 [shape = 'u32[]', space=smem, size = 0x4, offset = 0x4, fixed_abs, tag = 'smem constant byte address 0x4 - core index']
  #allocation1 [shape = 'u32[144,128]{1,0:T(1,128)}', space=vmem, size = 0x12000, scoped, tag = 'internal scratch']
  %s0 = inlined_call_operand.vmem [shape: s32[9], index: 0, kind: input, shape index: {}]
  %s1 = inlined_call_operand.vmem [shape: s32[8,9], index: 1, kind: input, shape index: {}]
  %s2 = inlined_call_operand.vmem [shape: f32[8,32], index: 2, kind: input, shape index: {}]
  %s3 = inlined_call_operand.vmem [shape: f32[16,96], index: 3, kind: input, shape index: {}]
  %s4 = inlined_call_operand.vmem [shape: f32[32,96], index: 4, kind: input, shape index: {}]
  %s5 = inlined_call_operand.vmem [shape: f32[1,32], index: 5, kind: input, shape index: {}]
  %s6 = inlined_call_operand.vmem [shape: f32[32,16], index: 6, kind: input, shape index: {}]
  %s7 = inlined_call_operand.vmem [shape: f32[1,16], index: 7, kind: input, shape index: {}]
  %s8 = inlined_call_operand.vmem [shape: f32[8,144], index: 8, kind: output, shape index: {0}]
  %s9 = inlined_call_operand.hbm [shape: f32[8,32], index: 9, kind: output, shape index: {1}]
  %10 = xla_tuple %s8, %s9
  %s11 = sld [smem:[#allocation0]]
  $region54: #{num_decoder_forward.1} parent=0
    _
  %s13 = ssub.s32 1, %s11
  %s14 = scalar_select 0, %s13, %s11
  $region1: #{num_decoder_forward.1} parent=0
    #allocation2 [shape = 'u8[512]{0}', space=smem, size = 0x200, scoped, tag = 'input window, operand 0, single buffered']
    #allocation3 [shape = 's32[1]{0}', space=sflag, size = 0x4, scoped, tag = 'scoped memory for num_decoder_forward.1']
    #allocation4 [shape = 's32[1]{0}', space=sflag, size = 0x4, scoped, tag = 'scoped memory for num_decoder_forward.1']
    #allocation5 [shape = 'u8[4096]{0}', space=vmem, size = 0x1000, scoped, tag = 'output window, operand 1, single buffered']
    %15 = vsyncpa [#allocation4], 0
    %16 = vsyncpa [#allocation3], 0
    // Predicated region
    $region2: #{num_decoder_forward.1} parent=1 // pred_check
      _
    $region3: #{num_decoder_forward.1} parent=1 // pred_check_branch
      %18 = sbr.rel (0) target = $region5
    $region4: #{num_decoder_forward.1} parent=1 // pred_region
      %s20 = ssub.s32 16, 16
      %21 = vsyncadd [#allocation4], %s20
      %s23 = sshll.u32 %s0, 4
      %s24 = int_to_ptr.vmem [resolvable:$true] %s23
      %26 = dma.vmem_to_smem %s24, 16, [#allocation2], [#allocation4]
    $region5: #{num_decoder_forward.1} parent=1 // pred_fallthru
      _
    // Predicated region
    $region6: #{num_decoder_forward.1} parent=1 // pred_check
      _
    $region7: #{num_decoder_forward.1} parent=1 // pred_check_branch
      %28 = sbr.rel (0) target = $region9
    $region8: #{num_decoder_forward.1} parent=1 // pred_region
      _
    $region9: #{num_decoder_forward.1} parent=1 // pred_fallthru
      _
    // Predicated region
    $region10: #{num_decoder_forward.1} parent=1 // pred_check
      _
    $region11: #{num_decoder_forward.1} parent=1 // pred_check_branch
      %30 = sbr.rel (0) target = $region13
    $region12: #{num_decoder_forward.1} parent=1 // pred_region
      _
    $region13: #{num_decoder_forward.1} parent=1 // pred_fallthru
      _
    // Predicated region
    $region14: #{num_decoder_forward.1} parent=1 // pred_check
      _
    $region15: #{num_decoder_forward.1} parent=1 // pred_check_branch
      %32 = sbr.rel (0) target = $region17
    $region16: #{num_decoder_forward.1} parent=1 // pred_region
      _
    $region17: #{num_decoder_forward.1} parent=1 // pred_fallthru
      _
    // Predicated region
    $region18: #{num_decoder_forward.1} parent=1 // pred_check
      _
    $region19: #{num_decoder_forward.1} parent=1 // pred_check_branch
      %34 = sbr.rel (0) target = $region21
    $region20: #{num_decoder_forward.1} parent=1 // pred_region
      _
    $region21: #{num_decoder_forward.1} parent=1 // pred_fallthru
      _
    // Predicated region
    $region22: #{num_decoder_forward.1} parent=1 // pred_check
      _
    $region23: #{num_decoder_forward.1} parent=1 // pred_check_branch
      %36 = sbr.rel (0) target = $region25
    $region24: #{num_decoder_forward.1} parent=1 // pred_region
      _
    $region25: #{num_decoder_forward.1} parent=1 // pred_fallthru
      _
    // Predicated region
    $region26: #{num_decoder_forward.1} parent=1 // pred_check
      _
    $region27: #{num_decoder_forward.1} parent=1 // pred_check_branch
      %38 = sbr.rel (0) target = $region29
    $region28: #{num_decoder_forward.1} parent=1 // pred_region
      _
    $region29: #{num_decoder_forward.1} parent=1 // pred_fallthru
      _
    // Predicated region
    $region30: #{num_decoder_forward.1} parent=1 // pred_check
      _
    $region31: #{num_decoder_forward.1} parent=1 // pred_check_branch
      %40 = sbr.rel (0) target = $region33
    $region32: #{num_decoder_forward.1} parent=1 // pred_region
      _
    $region33: #{num_decoder_forward.1} parent=1 // pred_fallthru
      _
    // Predicated region
    $region34: #{num_decoder_forward.1} parent=1 // pred_check
      _
    $region35: #{num_decoder_forward.1} parent=1 // pred_check_branch
      %42 = sbr.rel (0) target = $region37
    $region36: #{num_decoder_forward.1} parent=1 // pred_region
      %43 = dma.done [#allocation4], 16
    $region37: #{num_decoder_forward.1} parent=1 // pred_fallthru
      _
    %44 = sfence
    %v45 = vld [vmem:[%s3] sm:$0xff]
    %v46 = vld [vmem:[%s3 + $0x8] sm:$0xff]
    %v47 = vld [vmem:[%s4] sm:$0xff]
    %v48 = vld [vmem:[%s4 + $0x8] sm:$0xff]
    %v49 = vld [vmem:[%s4 + $0x10] sm:$0xff]
    %v50 = vld [vmem:[%s4 + $0x18] sm:$0xff]
    %v51 = vld [vmem:[%s6] sm:$0xff]
    %v52 = vld [vmem:[%s6 + $0x8] sm:$0xff]
    %v53 = vld [vmem:[%s6 + $0x10] sm:$0xff]
    %v54 = vld [vmem:[%s6 + $0x18] sm:$0xff]
    %v55 = vld [vmem:[%s5] sm:$0x1]
    %v57 = vlaneseq
    %v58 = vshrl.u32 %v57, 7
    %v59 = vsub.s32 0, %v58
    %v60 = vrot.slane %v55, %v59
    %v61 = vld [vmem:[%s7] sm:$0x1]
    %v63 = vlaneseq
    %v64 = vshrl.u32 %v63, 7
    %v65 = vsub.s32 0, %v64
    %v66 = vrot.slane %v61, %v65
    %v68 = vlaneseq
    %v69 = vand.u32 %v68, 127
    %v70 = vld [vmem:[%s2] sm:$0xff]
    %vm71 = vcmp.eq.s32.totalorder %v69, 2
    %v72 = vsel %vm71, 1, 0
    %v73 = vcvt.s32.f32 %v72
    %vm74 = vcmask 130048
    %v76 = vsel %vm74, %v73, 0
    %78 = vmatprep.subr.mxu0 0.0
    %79 = vmatpush1.msra.mxu0 %v45
    %80 = vmatprep.subr.mxu0 0.0
    %81 = vmatpush1.msra.mxu0 %v46
    %82 = vmatprep.subr.mxu0 0.0
    %83 = vmatpush1.msra.mxu0 0.0
    %84 = vmatprep.subr.mxu0 0.0
    %85 = vmatpush1.msra.mxu0 0.0
    %86 = vmatprep.subr.mxu0 0.0
    %87 = vmatpush1.msra.mxu0 0.0
    %88 = vmatprep.subr.mxu0 0.0
    %89 = vmatpush1.msra.mxu0 0.0
    %90 = vmatprep.subr.mxu0 0.0
    %91 = vmatpush1.msra.mxu0 0.0
    %92 = vmatprep.subr.mxu0 0.0
    %93 = vmatpush1.msra.mxu0 0.0
    %94 = vmatprep.subr.mxu0 0.0
    %95 = vmatpush1.msra.mxu0 0.0
    %96 = vmatprep.subr.mxu0 0.0
    %97 = vmatpush1.msra.mxu0 0.0
    %98 = vmatprep.subr.mxu0 0.0
    %99 = vmatpush1.msra.mxu0 0.0
    %100 = vmatprep.subr.mxu0 0.0
    %101 = vmatpush1.msra.mxu0 0.0
    %102 = vmatprep.subr.mxu0 0.0
    %103 = vmatpush1.msra.mxu0 0.0
    %104 = vmatprep.subr.mxu0 0.0
    %105 = vmatpush1.msra.mxu0 0.0
    %106 = vmatprep.subr.mxu0 0.0
    %107 = vmatpush1.msra.mxu0 0.0
    %108 = vmatprep.subr.mxu0 0.0
    %109 = vmatpush1.msra.mxu0 0.0
    %110 = vmatprep.subr.mxu0 0.0
    %111 = vmatpush1.msra.mxu0 0.0
    %112 = vmatprep.subr.mxu0 0.0
    %113 = vmatpush1.msra.mxu0 0.0
    %114 = vmatprep.subr.mxu0 0.0
    %115 = vmatpush1.msra.mxu0 0.0
    %116 = vmatprep.subr.mxu0 0.0
    %117 = vmatpush1.msra.mxu0 0.0
    %118 = vmatprep.subr.mxu0 0.0
    %119 = vmatpush1.msra.mxu0 0.0
    %120 = vmatprep.subr.mxu0 0.0
    %121 = vmatpush1.msra.mxu0 0.0
    %122 = vmatprep.subr.mxu0 0.0
    %123 = vmatpush1.msra.mxu0 0.0
    %124 = vmatprep.subr.mxu0 0.0
    %125 = vmatpush1.msra.mxu0 0.0
    %126 = vmatprep.subr.mxu0 0.0
    %127 = vmatpush1.msra.mxu0 0.0
    %128 = vmatprep.subr.mxu0 0.0
    %129 = vmatpush1.msra.mxu0 0.0
    %130 = vmatprep.subr.mxu0 0.0
    %131 = vmatpush1.msra.mxu0 0.0
    %132 = vmatprep.subr.mxu0 0.0
    %133 = vmatpush1.msra.mxu0 0.0
    %134 = vmatprep.subr.mxu0 0.0
    %135 = vmatpush1.msra.mxu0 0.0
    %136 = vmatprep.subr.mxu0 0.0
    %137 = vmatpush1.msra.mxu0 0.0
    %138 = vmatprep.subr.mxu0 0.0
    %139 = vmatpush1.msra.mxu0 0.0
    %140 = vmatprep.subr.mxu0 0.0
    %141 = vmatpush1.msra.mxu0 0.0
    %142 = vmatprep.mubr.f32.mxu0 0.0
    %143 = vmatmul.mubr.f32.gmra.mrb[0].mxu0 %v76
    %v144 = vpop.f32.mrb[0].mxu0
    %v145 = vadd.f32 0.0, %v144
    %v146 = vpop.f32.mrb[0].mxu0
    %147 = vdwg.mxu0
    %vm148 = vcmask 261120
    %v150 = vsel %vm148, %v70, 0
    %152 = vmatprep.subr.mxu0 0.0
    %153 = vmatpush1.msra.mxu0 %v47
    %154 = vmatprep.subr.mxu0 0.0
    %155 = vmatpush1.msra.mxu0 %v48
    %156 = vmatprep.subr.mxu0 0.0
    %157 = vmatpush1.msra.mxu0 %v49
    %158 = vmatprep.subr.mxu0 0.0
    %159 = vmatpush1.msra.mxu0 %v50
    %160 = vmatprep.subr.mxu0 0.0
    %161 = vmatpush1.msra.mxu0 0.0
    %162 = vmatprep.subr.mxu0 0.0
    %163 = vmatpush1.msra.mxu0 0.0
    %164 = vmatprep.subr.mxu0 0.0
    %165 = vmatpush1.msra.mxu0 0.0
    %166 = vmatprep.subr.mxu0 0.0
    %167 = vmatpush1.msra.mxu0 0.0
    %168 = vmatprep.subr.mxu0 0.0
    %169 = vmatpush1.msra.mxu0 0.0
    %170 = vmatprep.subr.mxu0 0.0
    %171 = vmatpush1.msra.mxu0 0.0
    %172 = vmatprep.subr.mxu0 0.0
    %173 = vmatpush1.msra.mxu0 0.0
    %174 = vmatprep.subr.mxu0 0.0
    %175 = vmatpush1.msra.mxu0 0.0
    %176 = vmatprep.subr.mxu0 0.0
    %177 = vmatpush1.msra.mxu0 0.0
    %178 = vmatprep.subr.mxu0 0.0
    %179 = vmatpush1.msra.mxu0 0.0
    %180 = vmatprep.subr.mxu0 0.0
    %181 = vmatpush1.msra.mxu0 0.0
    %182 = vmatprep.subr.mxu0 0.0
    %183 = vmatpush1.msra.mxu0 0.0
    %184 = vmatprep.subr.mxu0 0.0
    %185 = vmatpush1.msra.mxu0 0.0
    %186 = vmatprep.subr.mxu0 0.0
    %187 = vmatpush1.msra.mxu0 0.0
    %188 = vmatprep.subr.mxu0 0.0
    %189 = vmatpush1.msra.mxu0 0.0
    %190 = vmatprep.subr.mxu0 0.0
    %191 = vmatpush1.msra.mxu0 0.0
    %192 = vmatprep.subr.mxu0 0.0
    %193 = vmatpush1.msra.mxu0 0.0
    %194 = vmatprep.subr.mxu0 0.0
    %195 = vmatpush1.msra.mxu0 0.0
    %196 = vmatprep.subr.mxu0 0.0
    %197 = vmatpush1.msra.mxu0 0.0
    %198 = vmatprep.subr.mxu0 0.0
    %199 = vmatpush1.msra.mxu0 0.0
    %200 = vmatprep.subr.mxu0 0.0
    %201 = vmatpush1.msra.mxu0 0.0
    %202 = vmatprep.subr.mxu0 0.0
    %203 = vmatpush1.msra.mxu0 0.0
    %204 = vmatprep.subr.mxu0 0.0
    %205 = vmatpush1.msra.mxu0 0.0
    %206 = vmatprep.subr.mxu0 0.0
    %207 = vmatpush1.msra.mxu0 0.0
    %208 = vmatprep.subr.mxu0 0.0
    %209 = vmatpush1.msra.mxu0 0.0
    %210 = vmatprep.subr.mxu0 0.0
    %211 = vmatpush1.msra.mxu0 0.0
    %212 = vmatprep.subr.mxu0 0.0
    %213 = vmatpush1.msra.mxu0 0.0
    %214 = vmatprep.subr.mxu0 0.0
    %215 = vmatpush1.msra.mxu0 0.0
    %216 = vmatprep.mubr.f32.mxu0 0.0
    %217 = vmatmul.mubr.f32.gmra.mrb[0].mxu0 %v150
    %v218 = vpop.f32.mrb[0].mxu0
    %v219 = vadd.f32 0.0, %v218
    %v220 = vpop.f32.mrb[0].mxu0
    %221 = vdwg.mxu0
    %v222 = vadd.f32 %v145, %v219
    %v223 = vxor.u32 %v222, 2147483648
    %v224 = vmul.f32 %v223, 1.442695
    %v225 = vpow.pop %v224
    %v226 = vadd.f32 %v225, 1.0
    %v227 = vrcp.pop %v226
    %v228 = vmul.f32 1.0, %v227
    %229 = vrot.lane.b32.xlu0 %v60, 64
    %v230 = vpop.permute.xlu0 %229
    %v232 = vadd.f32 %v219, %v230
    %234 = vrot.lane.b32.xlu0 %v232, 64
    %v235 = vpop.permute.xlu0 %234
    %v237 = vmul.f32 %v228, %v235
    %239 = vrot.lane.b32.xlu0 %v237, 64
    %v240 = vpop.permute.xlu0 %239
    %v242 = vadd.f32 %v145, %v240
    %v243 = vtanh.pop %v242
    %v244 = vsub.f32 1.0, %v228
    %246 = vrot.lane.b32.xlu0 %v243, 96
    %v247 = vpop.permute.xlu0 %246
    %v249 = vmul.f32 %v244, %v247
    %250 = vrot.lane.b32.xlu0 %v70, 32
    %v251 = vpop.permute.xlu0 %250
    %v253 = vmul.f32 %v228, %v251
    %v254 = vadd.f32 %v249, %v253
    %256 = vrot.lane.b32.xlu0 %v254, 96
    %v257 = vpop.permute.xlu0 %256
    %v258 = vsel %vm148, %v257, 0
    %260 = vmatprep.subr.mxu0 0.0
    %261 = vmatpush1.msra.mxu0 %v51
    %262 = vmatprep.subr.mxu0 0.0
    %263 = vmatpush1.msra.mxu0 %v52
    %264 = vmatprep.subr.mxu0 0.0
    %265 = vmatpush1.msra.mxu0 %v53
    %266 = vmatprep.subr.mxu0 0.0
    %267 = vmatpush1.msra.mxu0 %v54
    %268 = vmatprep.subr.mxu0 0.0
    %269 = vmatpush1.msra.mxu0 0.0
    %270 = vmatprep.subr.mxu0 0.0
    %271 = vmatpush1.msra.mxu0 0.0
    %272 = vmatprep.subr.mxu0 0.0
    %273 = vmatpush1.msra.mxu0 0.0
    %274 = vmatprep.subr.mxu0 0.0
    %275 = vmatpush1.msra.mxu0 0.0
    %276 = vmatprep.subr.mxu0 0.0
    %277 = vmatpush1.msra.mxu0 0.0
    %278 = vmatprep.subr.mxu0 0.0
    %279 = vmatpush1.msra.mxu0 0.0
    %280 = vmatprep.subr.mxu0 0.0
    %281 = vmatpush1.msra.mxu0 0.0
    %282 = vmatprep.subr.mxu0 0.0
    %283 = vmatpush1.msra.mxu0 0.0
    %284 = vmatprep.subr.mxu0 0.0
    %285 = vmatpush1.msra.mxu0 0.0
    %286 = vmatprep.subr.mxu0 0.0
    %287 = vmatpush1.msra.mxu0 0.0
    %288 = vmatprep.subr.mxu0 0.0
    %289 = vmatpush1.msra.mxu0 0.0
    %290 = vmatprep.subr.mxu0 0.0
    %291 = vmatpush1.msra.mxu0 0.0
    %292 = vmatprep.subr.mxu0 0.0
    %293 = vmatpush1.msra.mxu0 0.0
    %294 = vmatprep.subr.mxu0 0.0
    %295 = vmatpush1.msra.mxu0 0.0
    %296 = vmatprep.subr.mxu0 0.0
    %297 = vmatpush1.msra.mxu0 0.0
    %298 = vmatprep.subr.mxu0 0.0
    %299 = vmatpush1.msra.mxu0 0.0
    %300 = vmatprep.subr.mxu0 0.0
    %301 = vmatpush1.msra.mxu0 0.0
    %302 = vmatprep.subr.mxu0 0.0
    %303 = vmatpush1.msra.mxu0 0.0
    %304 = vmatprep.subr.mxu0 0.0
    %305 = vmatpush1.msra.mxu0 0.0
    %306 = vmatprep.subr.mxu0 0.0
    %307 = vmatpush1.msra.mxu0 0.0
    %308 = vmatprep.subr.mxu0 0.0
    %309 = vmatpush1.msra.mxu0 0.0
    %310 = vmatprep.subr.mxu0 0.0
    %311 = vmatpush1.msra.mxu0 0.0
    %312 = vmatprep.subr.mxu0 0.0
    %313 = vmatpush1.msra.mxu0 0.0
    %314 = vmatprep.subr.mxu0 0.0
    %315 = vmatpush1.msra.mxu0 0.0
    %316 = vmatprep.subr.mxu0 0.0
    %317 = vmatpush1.msra.mxu0 0.0
    %318 = vmatprep.subr.mxu0 0.0
    %319 = vmatpush1.msra.mxu0 0.0
    %320 = vmatprep.subr.mxu0 0.0
    %321 = vmatpush1.msra.mxu0 0.0
    %322 = vmatprep.subr.mxu0 0.0
    %323 = vmatpush1.msra.mxu0 0.0
    %324 = vmatprep.mubr.f32.mxu0 0.0
    %325 = vmatmul.mubr.f32.gmra.mrb[0].mxu0 %v258
    %v326 = vpop.f32.mrb[0].mxu0
    %v327 = vadd.f32 %v66, %v326
    %v328 = vpop.f32.mrb[0].mxu0
    %329 = vdwg.mxu0
    %v330 = vsel %vm74, %v327, -inf
    %331 = vmax.xlane.f32.xlu0 %v330
    %v332 = vpop.xlane.xlu0 %331
    %vm333 = vcmp.eq.f32.partialorder %v327, %v332
    %v334 = vsel %vm333, %v69, 16
    %v335 = vsel %vm74, %v334, 2147483647
    %v336 = vand.u32 %v335, 65535
    %v337 = vshra.s32 %v335, 16
    %v338 = vcvt.s32.f32 %v336
    %v339 = vcvt.s32.f32 %v337
    %340 = vmin.xlane.f32.xlu0 %v339
    %v341 = vpop.xlane.xlu0 %340
    %vm342 = vcmp.eq.f32.partialorder %v339, %v341
    %v343 = vsel %vm342, %v338, inf
    %344 = vmin.xlane.f32.xlu0 %v343
    %v345 = vpop.xlane.xlu0 %344
    %v346 = vcvt.f32.s32 %v345
    %v347 = vcvt.f32.s32 %v341
    %v348 = vshll.u32 %v347, 16
    %v349 = vadd.s32 %v348, %v346
    %vm350 = vcmp.eq.s32.totalorder %v69, %v349
    %v351 = vsel %vm350, 1, 0
    %v352 = vcvt.s32.f32 %v351
    %v353 = vld [vmem:[%s1] sm:$0xff]
    %354 = vset.pattern.permute.xlu0 0
    %355 = vperm.xlu0 %354, %v353
    %v356 = vpop.permute.xlu0 %355
    %vm357 = vcmp.eq.s32.totalorder %v69, %v356
    %v358 = vsel %vm357, 1, 0
    %v359 = vcvt.s32.f32 %v358
    %s360 = sld [smem:[#allocation2]]
    %p361 = scmp.gt.s32.totalorder %s360, 0
    %s362 = scalar_select %p361, 1, 0
    %v363 = vstv %s362
    %vm364 = vcmp.eq.s32.totalorder %v363, 1
    %v365 = vsel %vm364, %v359, %v352
    %v367 = vsel %vm74, %v365, 0
    %369 = vmatprep.subr.mxu0 0.0
    %370 = vmatpush1.msra.mxu0 %v45
    %371 = vmatprep.subr.mxu0 0.0
    %372 = vmatpush1.msra.mxu0 %v46
    %373 = vmatprep.subr.mxu0 0.0
    %374 = vmatpush1.msra.mxu0 0.0
    %375 = vmatprep.subr.mxu0 0.0
    %376 = vmatpush1.msra.mxu0 0.0
    %377 = vmatprep.subr.mxu0 0.0
    %378 = vmatpush1.msra.mxu0 0.0
    %379 = vmatprep.subr.mxu0 0.0
    %380 = vmatpush1.msra.mxu0 0.0
    %381 = vmatprep.subr.mxu0 0.0
    %382 = vmatpush1.msra.mxu0 0.0
    %383 = vmatprep.subr.mxu0 0.0
    %384 = vmatpush1.msra.mxu0 0.0
    %385 = vmatprep.subr.mxu0 0.0
    %386 = vmatpush1.msra.mxu0 0.0
    %387 = vmatprep.subr.mxu0 0.0
    %388 = vmatpush1.msra.mxu0 0.0
    %389 = vmatprep.subr.mxu0 0.0
    %390 = vmatpush1.msra.mxu0 0.0
    %391 = vmatprep.subr.mxu0 0.0
    %392 = vmatpush1.msra.mxu0 0.0
    %393 = vmatprep.subr.mxu0 0.0
    %394 = vmatpush1.msra.mxu0 0.0
    %395 = vmatprep.subr.mxu0 0.0
    %396 = vmatpush1.msra.mxu0 0.0
    %397 = vmatprep.subr.mxu0 0.0
    %398 = vmatpush1.msra.mxu0 0.0
    %399 = vmatprep.subr.mxu0 0.0
    %400 = vmatpush1.msra.mxu0 0.0
    %401 = vmatprep.subr.mxu0 0.0
    %402 = vmatpush1.msra.mxu0 0.0
    %403 = vmatprep.subr.mxu0 0.0
    %404 = vmatpush1.msra.mxu0 0.0
    %405 = vmatprep.subr.mxu0 0.0
    %406 = vmatpush1.msra.mxu0 0.0
    %407 = vmatprep.subr.mxu0 0.0
    %408 = vmatpush1.msra.mxu0 0.0
    %409 = vmatprep.subr.mxu0 0.0
    %410 = vmatpush1.msra.mxu0 0.0
    %411 = vmatprep.subr.mxu0 0.0
    %412 = vmatpush1.msra.mxu0 0.0
    %413 = vmatprep.subr.mxu0 0.0
    %414 = vmatpush1.msra.mxu0 0.0
    %415 = vmatprep.subr.mxu0 0.0
    %416 = vmatpush1.msra.mxu0 0.0
    %417 = vmatprep.subr.mxu0 0.0
    %418 = vmatpush1.msra.mxu0 0.0
    %419 = vmatprep.subr.mxu0 0.0
    %420 = vmatpush1.msra.mxu0 0.0
    %421 = vmatprep.subr.mxu0 0.0
    %422 = vmatpush1.msra.mxu0 0.0
    %423 = vmatprep.subr.mxu0 0.0
    %424 = vmatpush1.msra.mxu0 0.0
    %425 = vmatprep.subr.mxu0 0.0
    %426 = vmatpush1.msra.mxu0 0.0
    %427 = vmatprep.subr.mxu0 0.0
    %428 = vmatpush1.msra.mxu0 0.0
    %429 = vmatprep.subr.mxu0 0.0
    %430 = vmatpush1.msra.mxu0 0.0
    %431 = vmatprep.subr.mxu0 0.0
    %432 = vmatpush1.msra.mxu0 0.0
    %433 = vmatprep.mubr.f32.mxu0 0.0
    %434 = vmatmul.mubr.f32.gmra.mrb[0].mxu0 %v367
    %v435 = vpop.f32.mrb[0].mxu0
    %v436 = vadd.f32 0.0, %v435
    %v437 = vpop.f32.mrb[0].mxu0
    %438 = vdwg.mxu0
    %439 = vmatprep.subr.mxu0 0.0
    %440 = vmatpush1.msra.mxu0 %v47
    %441 = vmatprep.subr.mxu0 0.0
    %442 = vmatpush1.msra.mxu0 %v48
    %443 = vmatprep.subr.mxu0 0.0
    %444 = vmatpush1.msra.mxu0 %v49
    %445 = vmatprep.subr.mxu0 0.0
    %446 = vmatpush1.msra.mxu0 %v50
    %447 = vmatprep.subr.mxu0 0.0
    %448 = vmatpush1.msra.mxu0 0.0
    %449 = vmatprep.subr.mxu0 0.0
    %450 = vmatpush1.msra.mxu0 0.0
    %451 = vmatprep.subr.mxu0 0.0
    %452 = vmatpush1.msra.mxu0 0.0
    %453 = vmatprep.subr.mxu0 0.0
    %454 = vmatpush1.msra.mxu0 0.0
    %455 = vmatprep.subr.mxu0 0.0
    %456 = vmatpush1.msra.mxu0 0.0
    %457 = vmatprep.subr.mxu0 0.0
    %458 = vmatpush1.msra.mxu0 0.0
    %459 = vmatprep.subr.mxu0 0.0
    %460 = vmatpush1.msra.mxu0 0.0
    %461 = vmatprep.subr.mxu0 0.0
    %462 = vmatpush1.msra.mxu0 0.0
    %463 = vmatprep.subr.mxu0 0.0
    %464 = vmatpush1.msra.mxu0 0.0
    %465 = vmatprep.subr.mxu0 0.0
    %466 = vmatpush1.msra.mxu0 0.0
    %467 = vmatprep.subr.mxu0 0.0
    %468 = vmatpush1.msra.mxu0 0.0
    %469 = vmatprep.subr.mxu0 0.0
    %470 = vmatpush1.msra.mxu0 0.0
    %471 = vmatprep.subr.mxu0 0.0
    %472 = vmatpush1.msra.mxu0 0.0
    %473 = vmatprep.subr.mxu0 0.0
    %474 = vmatpush1.msra.mxu0 0.0
    %475 = vmatprep.subr.mxu0 0.0
    %476 = vmatpush1.msra.mxu0 0.0
    %477 = vmatprep.subr.mxu0 0.0
    %478 = vmatpush1.msra.mxu0 0.0
    %479 = vmatprep.subr.mxu0 0.0
    %480 = vmatpush1.msra.mxu0 0.0
    %481 = vmatprep.subr.mxu0 0.0
    %482 = vmatpush1.msra.mxu0 0.0
    %483 = vmatprep.subr.mxu0 0.0
    %484 = vmatpush1.msra.mxu0 0.0
    %485 = vmatprep.subr.mxu0 0.0
    %486 = vmatpush1.msra.mxu0 0.0
    %487 = vmatprep.subr.mxu0 0.0
    %488 = vmatpush1.msra.mxu0 0.0
    %489 = vmatprep.subr.mxu0 0.0
    %490 = vmatpush1.msra.mxu0 0.0
    %491 = vmatprep.subr.mxu0 0.0
    %492 = vmatpush1.msra.mxu0 0.0
    %493 = vmatprep.subr.mxu0 0.0
    %494 = vmatpush1.msra.mxu0 0.0
    %495 = vmatprep.subr.mxu0 0.0
    %496 = vmatpush1.msra.mxu0 0.0
    %497 = vmatprep.subr.mxu0 0.0
    %498 = vmatpush1.msra.mxu0 0.0
    %499 = vmatprep.subr.mxu0 0.0
    %500 = vmatpush1.msra.mxu0 0.0
    %501 = vmatprep.subr.mxu0 0.0
    %502 = vmatpush1.msra.mxu0 0.0
    %503 = vmatprep.mubr.f32.mxu0 0.0
    %504 = vmatmul.mubr.f32.gmra.mrb[0].mxu0 %v258
    %v505 = vpop.f32.mrb[0].mxu0
    %v506 = vadd.f32 0.0, %v505
    %v507 = vpop.f32.mrb[0].mxu0
    %508 = vdwg.mxu0
    %v509 = vadd.f32 %v436, %v506
    %v510 = vxor.u32 %v509, 2147483648
    %v511 = vmul.f32 %v510, 1.442695
    %v512 = vpow.pop %v511
    %v513 = vadd.f32 %v512, 1.0
    %v514 = vrcp.pop %v513
    %v515 = vmul.f32 1.0, %v514
    %v516 = vadd.f32 %v506, %v230
    %518 = vrot.lane.b32.xlu0 %v516, 64
    %v519 = vpop.permute.xlu0 %518
    %v521 = vmul.f32 %v515, %v519
    %523 = vrot.lane.b32.xlu0 %v521, 64
    %v524 = vpop.permute.xlu0 %523
    %v526 = vadd.f32 %v436, %v524
    %v527 = vtanh.pop %v526
    %v528 = vsub.f32 1.0, %v515
    %530 = vrot.lane.b32.xlu0 %v527, 96
    %v531 = vpop.permute.xlu0 %530
    %v533 = vmul.f32 %v528, %v531
    %v534 = vmul.f32 %v515, %v254
    %v535 = vadd.f32 %v533, %v534
    %537 = vrot.lane.b32.xlu0 %v535, 96
    %v538 = vpop.permute.xlu0 %537
    %v539 = vsel %vm148, %v538, 0
    %541 = vmatprep.subr.mxu0 0.0
    %542 = vmatpush1.msra.mxu0 %v51
    %543 = vmatprep.subr.mxu0 0.0
    %544 = vmatpush1.msra.mxu0 %v52
    %545 = vmatprep.subr.mxu0 0.0
    %546 = vmatpush1.msra.mxu0 %v53
    %547 = vmatprep.subr.mxu0 0.0
    %548 = vmatpush1.msra.mxu0 %v54
    %549 = vmatprep.subr.mxu0 0.0
    %550 = vmatpush1.msra.mxu0 0.0
    %551 = vmatprep.subr.mxu0 0.0
    %552 = vmatpush1.msra.mxu0 0.0
    %553 = vmatprep.subr.mxu0 0.0
    %554 = vmatpush1.msra.mxu0 0.0
    %555 = vmatprep.subr.mxu0 0.0
    %556 = vmatpush1.msra.mxu0 0.0
    %557 = vmatprep.subr.mxu0 0.0
    %558 = vmatpush1.msra.mxu0 0.0
    %559 = vmatprep.subr.mxu0 0.0
    %560 = vmatpush1.msra.mxu0 0.0
    %561 = vmatprep.subr.mxu0 0.0
    %562 = vmatpush1.msra.mxu0 0.0
    %563 = vmatprep.subr.mxu0 0.0
    %564 = vmatpush1.msra.mxu0 0.0
    %565 = vmatprep.subr.mxu0 0.0
    %566 = vmatpush1.msra.mxu0 0.0
    %567 = vmatprep.subr.mxu0 0.0
    %568 = vmatpush1.msra.mxu0 0.0
    %569 = vmatprep.subr.mxu0 0.0
    %570 = vmatpush1.msra.mxu0 0.0
    %571 = vmatprep.subr.mxu0 0.0
    %572 = vmatpush1.msra.mxu0 0.0
    %573 = vmatprep.subr.mxu0 0.0
    %574 = vmatpush1.msra.mxu0 0.0
    %575 = vmatprep.subr.mxu0 0.0
    %576 = vmatpush1.msra.mxu0 0.0
    %577 = vmatprep.subr.mxu0 0.0
    %578 = vmatpush1.msra.mxu0 0.0
    %579 = vmatprep.subr.mxu0 0.0
    %580 = vmatpush1.msra.mxu0 0.0
    %581 = vmatprep.subr.mxu0 0.0
    %582 = vmatpush1.msra.mxu0 0.0
    %583 = vmatprep.subr.mxu0 0.0
    %584 = vmatpush1.msra.mxu0 0.0
    %585 = vmatprep.subr.mxu0 0.0
    %586 = vmatpush1.msra.mxu0 0.0
    %587 = vmatprep.subr.mxu0 0.0
    %588 = vmatpush1.msra.mxu0 0.0
    %589 = vmatprep.subr.mxu0 0.0
    %590 = vmatpush1.msra.mxu0 0.0
    %591 = vmatprep.subr.mxu0 0.0
    %592 = vmatpush1.msra.mxu0 0.0
    %593 = vmatprep.subr.mxu0 0.0
    %594 = vmatpush1.msra.mxu0 0.0
    %595 = vmatprep.subr.mxu0 0.0
    %596 = vmatpush1.msra.mxu0 0.0
    %597 = vmatprep.subr.mxu0 0.0
    %598 = vmatpush1.msra.mxu0 0.0
    %599 = vmatprep.subr.mxu0 0.0
    %600 = vmatpush1.msra.mxu0 0.0
    %601 = vmatprep.subr.mxu0 0.0
    %602 = vmatpush1.msra.mxu0 0.0
    %603 = vmatprep.subr.mxu0 0.0
    %604 = vmatpush1.msra.mxu0 0.0
    %605 = vmatprep.mubr.f32.mxu0 0.0
    %606 = vmatmul.mubr.f32.gmra.mrb[0].mxu0 %v539
    %v607 = vpop.f32.mrb[0].mxu0
    %v608 = vadd.f32 %v66, %v607
    %v609 = vpop.f32.mrb[0].mxu0
    %610 = vdwg.mxu0
    %v611 = vsel %vm74, %v608, -inf
    %612 = vmax.xlane.f32.xlu0 %v611
    %v613 = vpop.xlane.xlu0 %612
    %vm614 = vcmp.eq.f32.partialorder %v608, %v613
    %v615 = vsel %vm614, %v69, 16
    %v616 = vsel %vm74, %v615, 2147483647
    %v617 = vand.u32 %v616, 65535
    %v618 = vshra.s32 %v616, 16
    %v619 = vcvt.s32.f32 %v617
    %v620 = vcvt.s32.f32 %v618
    %621 = vmin.xlane.f32.xlu0 %v620
    %v622 = vpop.xlane.xlu0 %621
    %vm623 = vcmp.eq.f32.partialorder %v620, %v622
    %v624 = vsel %vm623, %v619, inf
    %625 = vmin.xlane.f32.xlu0 %v624
    %v626 = vpop.xlane.xlu0 %625
    %v627 = vcvt.f32.s32 %v626
    %v628 = vcvt.f32.s32 %v622
    %v629 = vshll.u32 %v628, 16
    %v630 = vadd.s32 %v629, %v627
    %vm631 = vcmp.eq.s32.totalorder %v69, %v630
    %v632 = vsel %vm631, 1, 0
    %v633 = vcvt.s32.f32 %v632
    %634 = vset.pattern.permute.xlu0 1
    %635 = vperm.xlu0 %634, %v353
    %v636 = vpop.permute.xlu0 %635
    %vm637 = vcmp.eq.s32.totalorder %v69, %v636
    %v638 = vsel %vm637, 1, 0
    %v639 = vcvt.s32.f32 %v638
    %s640 = sld [smem:[#allocation2 + $0x1]]
    %p641 = scmp.gt.s32.totalorder %s640, 0
    %s642 = scalar_select %p641, 1, 0
    %v643 = vstv %s642
    %vm644 = vcmp.eq.s32.totalorder %v643, 1
    %v645 = vsel %vm644, %v639, %v633
    %v647 = vsel %vm74, %v645, 0
    %649 = vmatprep.subr.mxu0 0.0
    %650 = vmatpush1.msra.mxu0 %v45
    %651 = vmatprep.subr.mxu0 0.0
    %652 = vmatpush1.msra.mxu0 %v46
    %653 = vmatprep.subr.mxu0 0.0
    %654 = vmatpush1.msra.mxu0 0.0
    %655 = vmatprep.subr.mxu0 0.0
    %656 = vmatpush1.msra.mxu0 0.0
    %657 = vmatprep.subr.mxu0 0.0
    %658 = vmatpush1.msra.mxu0 0.0
    %659 = vmatprep.subr.mxu0 0.0
    %660 = vmatpush1.msra.mxu0 0.0
    %661 = vmatprep.subr.mxu0 0.0
    %662 = vmatpush1.msra.mxu0 0.0
    %663 = vmatprep.subr.mxu0 0.0
    %664 = vmatpush1.msra.mxu0 0.0
    %665 = vmatprep.subr.mxu0 0.0
    %666 = vmatpush1.msra.mxu0 0.0
    %667 = vmatprep.subr.mxu0 0.0
    %668 = vmatpush1.msra.mxu0 0.0
    %669 = vmatprep.subr.mxu0 0.0
    %670 = vmatpush1.msra.mxu0 0.0
    %671 = vmatprep.subr.mxu0 0.0
    %672 = vmatpush1.msra.mxu0 0.0
    %673 = vmatprep.subr.mxu0 0.0
    %674 = vmatpush1.msra.mxu0 0.0
    %675 = vmatprep.subr.mxu0 0.0
    %676 = vmatpush1.msra.mxu0 0.0
    %677 = vmatprep.subr.mxu0 0.0
    %678 = vmatpush1.msra.mxu0 0.0
    %679 = vmatprep.subr.mxu0 0.0
    %680 = vmatpush1.msra.mxu0 0.0
    %681 = vmatprep.subr.mxu0 0.0
    %682 = vmatpush1.msra.mxu0 0.0
    %683 = vmatprep.subr.mxu0 0.0
    %684 = vmatpush1.msra.mxu0 0.0
    %685 = vmatprep.subr.mxu0 0.0
    %686 = vmatpush1.msra.mxu0 0.0
    %687 = vmatprep.subr.mxu0 0.0
    %688 = vmatpush1.msra.mxu0 0.0
    %689 = vmatprep.subr.mxu0 0.0
    %690 = vmatpush1.msra.mxu0 0.0
    %691 = vmatprep.subr.mxu0 0.0
    %692 = vmatpush1.msra.mxu0 0.0
    %693 = vmatprep.subr.mxu0 0.0
    %694 = vmatpush1.msra.mxu0 0.0
    %695 = vmatprep.subr.mxu0 0.0
    %696 = vmatpush1.msra.mxu0 0.0
    %697 = vmatprep.subr.mxu0 0.0
    %698 = vmatpush1.msra.mxu0 0.0
    %699 = vmatprep.subr.mxu0 0.0
    %700 = vmatpush1.msra.mxu0 0.0
    %701 = vmatprep.subr.mxu0 0.0
    %702 = vmatpush1.msra.mxu0 0.0
    %703 = vmatprep.subr.mxu0 0.0
    %704 = vmatpush1.msra.mxu0 0.0
    %705 = vmatprep.subr.mxu0 0.0
    %706 = vmatpush1.msra.mxu0 0.0
    %707 = vmatprep.subr.mxu0 0.0
    %708 = vmatpush1.msra.mxu0 0.0
    %709 = vmatprep.subr.mxu0 0.0
    %710 = vmatpush1.msra.mxu0 0.0
    %711 = vmatprep.subr.mxu0 0.0
    %712 = vmatpush1.msra.mxu0 0.0
    %713 = vmatprep.mubr.f32.mxu0 0.0
    %714 = vmatmul.mubr.f32.gmra.mrb[0].mxu0 %v647
    %v715 = vpop.f32.mrb[0].mxu0
    %v716 = vadd.f32 0.0, %v715
    %v717 = vpop.f32.mrb[0].mxu0
    %718 = vdwg.mxu0
    %719 = vmatprep.subr.mxu0 0.0
    %720 = vmatpush1.msra.mxu0 %v47
    %721 = vmatprep.subr.mxu0 0.0
    %722 = vmatpush1.msra.mxu0 %v48
    %723 = vmatprep.subr.mxu0 0.0
    %724 = vmatpush1.msra.mxu0 %v49
    %725 = vmatprep.subr.mxu0 0.0
    %726 = vmatpush1.msra.mxu0 %v50
    %727 = vmatprep.subr.mxu0 0.0
    %728 = vmatpush1.msra.mxu0 0.0
    %729 = vmatprep.subr.mxu0 0.0
    %730 = vmatpush1.msra.mxu0 0.0
    %731 = vmatprep.subr.mxu0 0.0
    %732 = vmatpush1.msra.mxu0 0.0
    %733 = vmatprep.subr.mxu0 0.0
    %734 = vmatpush1.msra.mxu0 0.0
    %735 = vmatprep.subr.mxu0 0.0
    %736 = vmatpush1.msra.mxu0 0.0
    %737 = vmatprep.subr.mxu0 0.0
    %738 = vmatpush1.msra.mxu0 0.0
    %739 = vmatprep.subr.mxu0 0.0
    %740 = vmatpush1.msra.mxu0 0.0
    %741 = vmatprep.subr.mxu0 0.0
    %742 = vmatpush1.msra.mxu0 0.0
    %743 = vmatprep.subr.mxu0 0.0
    %744 = vmatpush1.msra.mxu0 0.0
    %745 = vmatprep.subr.mxu0 0.0
    %746 = vmatpush1.msra.mxu0 0.0
    %747 = vmatprep.subr.mxu0 0.0
    %748 = vmatpush1.msra.mxu0 0.0
    %749 = vmatprep.subr.mxu0 0.0
    %750 = vmatpush1.msra.mxu0 0.0
    %751 = vmatprep.subr.mxu0 0.0
    %752 = vmatpush1.msra.mxu0 0.0
    %753 = vmatprep.subr.mxu0 0.0
    %754 = vmatpush1.msra.mxu0 0.0
    %755 = vmatprep.subr.mxu0 0.0
    %756 = vmatpush1.msra.mxu0 0.0
    %757 = vmatprep.subr.mxu0 0.0
    %758 = vmatpush1.msra.mxu0 0.0
    %759 = vmatprep.subr.mxu0 0.0
    %760 = vmatpush1.msra.mxu0 0.0
    %761 = vmatprep.subr.mxu0 0.0
    %762 = vmatpush1.msra.mxu0 0.0
    %763 = vmatprep.subr.mxu0 0.0
    %764 = vmatpush1.msra.mxu0 0.0
    %765 = vmatprep.subr.mxu0 0.0
    %766 = vmatpush1.msra.mxu0 0.0
    %767 = vmatprep.subr.mxu0 0.0
    %768 = vmatpush1.msra.mxu0 0.0
    %769 = vmatprep.subr.mxu0 0.0
    %770 = vmatpush1.msra.mxu0 0.0
    %771 = vmatprep.subr.mxu0 0.0
    %772 = vmatpush1.msra.mxu0 0.0
    %773 = vmatprep.subr.mxu0 0.0
    %774 = vmatpush1.msra.mxu0 0.0
    %775 = vmatprep.subr.mxu0 0.0
    %776 = vmatpush1.msra.mxu0 0.0
    %777 = vmatprep.subr.mxu0 0.0
    %778 = vmatpush1.msra.mxu0 0.0
    %779 = vmatprep.subr.mxu0 0.0
    %780 = vmatpush1.msra.mxu0 0.0
    %781 = vmatprep.subr.mxu0 0.0
    %782 = vmatpush1.msra.mxu0 0.0
    %783 = vmatprep.mubr.f32.mxu0 0.0
    %784 = vmatmul.mubr.f32.gmra.mrb[0].mxu0 %v539
    %v785 = vpop.f32.mrb[0].mxu0
    %v786 = vadd.f32 0.0, %v785
    %v787 = vpop.f32.mrb[0].mxu0
    %788 = vdwg.mxu0
    %v789 = vadd.f32 %v716, %v786
    %v790 = vxor.u32 %v789, 2147483648
    %v791 = vmul.f32 %v790, 1.442695
    %v792 = vpow.pop %v791
    %v793 = vadd.f32 %v792, 1.0
    %v794 = vrcp.pop %v793
    %v795 = vmul.f32 1.0, %v794
    %v796 = vadd.f32 %v786, %v230
    %798 = vrot.lane.b32.xlu0 %v796, 64
    %v799 = vpop.permute.xlu0 %798
    %v801 = vmul.f32 %v795, %v799
    %803 = vrot.lane.b32.xlu0 %v801, 64
    %v804 = vpop.permute.xlu0 %803
    %v806 = vadd.f32 %v716, %v804
    %v807 = vtanh.pop %v806
    %v808 = vsub.f32 1.0, %v795
    %810 = vrot.lane.b32.xlu0 %v807, 96
    %v811 = vpop.permute.xlu0 %810
    %v813 = vmul.f32 %v808, %v811
    %v814 = vmul.f32 %v795, %v535
    %v815 = vadd.f32 %v813, %v814
    %817 = vrot.lane.b32.xlu0 %v815, 96
    %v818 = vpop.permute.xlu0 %817
    %v819 = vsel %vm148, %v818, 0
    %821 = vmatprep.subr.mxu0 0.0
    %822 = vmatpush1.msra.mxu0 %v51
    %823 = vmatprep.subr.mxu0 0.0
    %824 = vmatpush1.msra.mxu0 %v52
    %825 = vmatprep.subr.mxu0 0.0
    %826 = vmatpush1.msra.mxu0 %v53
    %827 = vmatprep.subr.mxu0 0.0
    %828 = vmatpush1.msra.mxu0 %v54
    %829 = vmatprep.subr.mxu0 0.0
    %830 = vmatpush1.msra.mxu0 0.0
    %831 = vmatprep.subr.mxu0 0.0
    %832 = vmatpush1.msra.mxu0 0.0
    %833 = vmatprep.subr.mxu0 0.0
    %834 = vmatpush1.msra.mxu0 0.0
    %835 = vmatprep.subr.mxu0 0.0
    %836 = vmatpush1.msra.mxu0 0.0
    %837 = vmatprep.subr.mxu0 0.0
    %838 = vmatpush1.msra.mxu0 0.0
    %839 = vmatprep.subr.mxu0 0.0
    %840 = vmatpush1.msra.mxu0 0.0
    %841 = vmatprep.subr.mxu0 0.0
    %842 = vmatpush1.msra.mxu0 0.0
    %843 = vmatprep.subr.mxu0 0.0
    %844 = vmatpush1.msra.mxu0 0.0
    %845 = vmatprep.subr.mxu0 0.0
    %846 = vmatpush1.msra.mxu0 0.0
    %847 = vmatprep.subr.mxu0 0.0
    %848 = vmatpush1.msra.mxu0 0.0
    %849 = vmatprep.subr.mxu0 0.0
    %850 = vmatpush1.msra.mxu0 0.0
    %851 = vmatprep.subr.mxu0 0.0
    %852 = vmatpush1.msra.mxu0 0.0
    %853 = vmatprep.subr.mxu0 0.0
    %854 = vmatpush1.msra.mxu0 0.0
    %855 = vmatprep.subr.mxu0 0.0
    %856 = vmatpush1.msra.mxu0 0.0
    %857 = vmatprep.subr.mxu0 0.0
    %858 = vmatpush1.msra.mxu0 0.0
    %859 = vmatprep.subr.mxu0 0.0
    %860 = vmatpush1.msra.mxu0 0.0
    %861 = vmatprep.subr.mxu0 0.0
    %862 = vmatpush1.msra.mxu0 0.0
    %863 = vmatprep.subr.mxu0 0.0
    %864 = vmatpush1.msra.mxu0 0.0
    %865 = vmatprep.subr.mxu0 0.0
    %866 = vmatpush1.msra.mxu0 0.0
    %867 = vmatprep.subr.mxu0 0.0
    %868 = vmatpush1.msra.mxu0 0.0
    %869 = vmatprep.subr.mxu0 0.0
    %870 = vmatpush1.msra.mxu0 0.0
    %871 = vmatprep.subr.mxu0 0.0
    %872 = vmatpush1.msra.mxu0 0.0
    %873 = vmatprep.subr.mxu0 0.0
    %874 = vmatpush1.msra.mxu0 0.0
    %875 = vmatprep.subr.mxu0 0.0
    %876 = vmatpush1.msra.mxu0 0.0
    %877 = vmatprep.subr.mxu0 0.0
    %878 = vmatpush1.msra.mxu0 0.0
    %879 = vmatprep.subr.mxu0 0.0
    %880 = vmatpush1.msra.mxu0 0.0
    %881 = vmatprep.subr.mxu0 0.0
    %882 = vmatpush1.msra.mxu0 0.0
    %883 = vmatprep.subr.mxu0 0.0
    %884 = vmatpush1.msra.mxu0 0.0
    %885 = vmatprep.mubr.f32.mxu0 0.0
    %886 = vmatmul.mubr.f32.gmra.mrb[0].mxu0 %v819
    %v887 = vpop.f32.mrb[0].mxu0
    %v888 = vadd.f32 %v66, %v887
    %v889 = vpop.f32.mrb[0].mxu0
    %890 = vdwg.mxu0
    %v891 = vsel %vm74, %v888, -inf
    %892 = vmax.xlane.f32.xlu0 %v891
    %v893 = vpop.xlane.xlu0 %892
    %vm894 = vcmp.eq.f32.partialorder %v888, %v893
    %v895 = vsel %vm894, %v69, 16
    %v896 = vsel %vm74, %v895, 2147483647
    %v897 = vand.u32 %v896, 65535
    %v898 = vshra.s32 %v896, 16
    %v899 = vcvt.s32.f32 %v897
    %v900 = vcvt.s32.f32 %v898
    %901 = vmin.xlane.f32.xlu0 %v900
    %v902 = vpop.xlane.xlu0 %901
    %vm903 = vcmp.eq.f32.partialorder %v900, %v902
    %v904 = vsel %vm903, %v899, inf
    %905 = vmin.xlane.f32.xlu0 %v904
    %v906 = vpop.xlane.xlu0 %905
    %v907 = vcvt.f32.s32 %v906
    %v908 = vcvt.f32.s32 %v902
    %v909 = vshll.u32 %v908, 16
    %v910 = vadd.s32 %v909, %v907
    %vm911 = vcmp.eq.s32.totalorder %v69, %v910
    %v912 = vsel %vm911, 1, 0
    %v913 = vcvt.s32.f32 %v912
    %914 = vset.pattern.permute.xlu0 2
    %915 = vperm.xlu0 %914, %v353
    %v916 = vpop.permute.xlu0 %915
    %vm917 = vcmp.eq.s32.totalorder %v69, %v916
    %v918 = vsel %vm917, 1, 0
    %v919 = vcvt.s32.f32 %v918
    %s920 = sld [smem:[#allocation2 + $0x2]]
    %p921 = scmp.gt.s32.totalorder %s920, 0
    %s922 = scalar_select %p921, 1, 0
    %v923 = vstv %s922
    %vm924 = vcmp.eq.s32.totalorder %v923, 1
    %v925 = vsel %vm924, %v919, %v913
    %v927 = vsel %vm74, %v925, 0
    %929 = vmatprep.subr.mxu0 0.0
    %930 = vmatpush1.msra.mxu0 %v45
    %931 = vmatprep.subr.mxu0 0.0
    %932 = vmatpush1.msra.mxu0 %v46
    %933 = vmatprep.subr.mxu0 0.0
    %934 = vmatpush1.msra.mxu0 0.0
    %935 = vmatprep.subr.mxu0 0.0
    %936 = vmatpush1.msra.mxu0 0.0
    %937 = vmatprep.subr.mxu0 0.0
    %938 = vmatpush1.msra.mxu0 0.0
    %939 = vmatprep.subr.mxu0 0.0
    %940 = vmatpush1.msra.mxu0 0.0
    %941 = vmatprep.subr.mxu0 0.0
    %942 = vmatpush1.msra.mxu0 0.0
    %943 = vmatprep.subr.mxu0 0.0
    %944 = vmatpush1.msra.mxu0 0.0
    %945 = vmatprep.subr.mxu0 0.0
    %946 = vmatpush1.msra.mxu0 0.0
    %947 = vmatprep.subr.mxu0 0.0
    %948 = vmatpush1.msra.mxu0 0.0
    %949 = vmatprep.subr.mxu0 0.0
    %950 = vmatpush1.msra.mxu0 0.0
    %951 = vmatprep.subr.mxu0 0.0
    %952 = vmatpush1.msra.mxu0 0.0
    %953 = vmatprep.subr.mxu0 0.0
    %954 = vmatpush1.msra.mxu0 0.0
    %955 = vmatprep.subr.mxu0 0.0
    %956 = vmatpush1.msra.mxu0 0.0
    %957 = vmatprep.subr.mxu0 0.0
    %958 = vmatpush1.msra.mxu0 0.0
    %959 = vmatprep.subr.mxu0 0.0
    %960 = vmatpush1.msra.mxu0 0.0
    %961 = vmatprep.subr.mxu0 0.0
    %962 = vmatpush1.msra.mxu0 0.0
    %963 = vmatprep.subr.mxu0 0.0
    %964 = vmatpush1.msra.mxu0 0.0
    %965 = vmatprep.subr.mxu0 0.0
    %966 = vmatpush1.msra.mxu0 0.0
    %967 = vmatprep.subr.mxu0 0.0
    %968 = vmatpush1.msra.mxu0 0.0
    %969 = vmatprep.subr.mxu0 0.0
    %970 = vmatpush1.msra.mxu0 0.0
    %971 = vmatprep.subr.mxu0 0.0
    %972 = vmatpush1.msra.mxu0 0.0
    %973 = vmatprep.subr.mxu0 0.0
    %974 = vmatpush1.msra.mxu0 0.0
    %975 = vmatprep.subr.mxu0 0.0
    %976 = vmatpush1.msra.mxu0 0.0
    %977 = vmatprep.subr.mxu0 0.0
    %978 = vmatpush1.msra.mxu0 0.0
    %979 = vmatprep.subr.mxu0 0.0
    %980 = vmatpush1.msra.mxu0 0.0
    %981 = vmatprep.subr.mxu0 0.0
    %982 = vmatpush1.msra.mxu0 0.0
    %983 = vmatprep.subr.mxu0 0.0
    %984 = vmatpush1.msra.mxu0 0.0
    %985 = vmatprep.subr.mxu0 0.0
    %986 = vmatpush1.msra.mxu0 0.0
    %987 = vmatprep.subr.mxu0 0.0
    %988 = vmatpush1.msra.mxu0 0.0
    %989 = vmatprep.subr.mxu0 0.0
    %990 = vmatpush1.msra.mxu0 0.0
    %991 = vmatprep.subr.mxu0 0.0
    %992 = vmatpush1.msra.mxu0 0.0
    %993 = vmatprep.mubr.f32.mxu0 0.0
    %994 = vmatmul.mubr.f32.gmra.mrb[0].mxu0 %v927
    %v995 = vpop.f32.mrb[0].mxu0
    %v996 = vadd.f32 0.0, %v995
    %v997 = vpop.f32.mrb[0].mxu0
    %998 = vdwg.mxu0
    %999 = vmatprep.subr.mxu0 0.0
    %1000 = vmatpush1.msra.mxu0 %v47
    %1001 = vmatprep.subr.mxu0 0.0
    %1002 = vmatpush1.msra.mxu0 %v48
    %1003 = vmatprep.subr.mxu0 0.0
    %1004 = vmatpush1.msra.mxu0 %v49
    %1005 = vmatprep.subr.mxu0 0.0
    %1006 = vmatpush1.msra.mxu0 %v50
    %1007 = vmatprep.subr.mxu0 0.0
    %1008 = vmatpush1.msra.mxu0 0.0
    %1009 = vmatprep.subr.mxu0 0.0
    %1010 = vmatpush1.msra.mxu0 0.0
    %1011 = vmatprep.subr.mxu0 0.0
    %1012 = vmatpush1.msra.mxu0 0.0
    %1013 = vmatprep.subr.mxu0 0.0
    %1014 = vmatpush1.msra.mxu0 0.0
    %1015 = vmatprep.subr.mxu0 0.0
    %1016 = vmatpush1.msra.mxu0 0.0
    %1017 = vmatprep.subr.mxu0 0.0
    %1018 = vmatpush1.msra.mxu0 0.0
    %1019 = vmatprep.subr.mxu0 0.0
    %1020 = vmatpush1.msra.mxu0 0.0
    %1021 = vmatprep.subr.mxu0 0.0
    %1022 = vmatpush1.msra.mxu0 0.0
    %1023 = vmatprep.subr.mxu0 0.0
    %1024 = vmatpush1.msra.mxu0 0.0
    %1025 = vmatprep.subr.mxu0 0.0
    %1026 = vmatpush1.msra.mxu0 0.0
    %1027 = vmatprep.subr.mxu0 0.0
    %1028 = vmatpush1.msra.mxu0 0.0
    %1029 = vmatprep.subr.mxu0 0.0
    %1030 = vmatpush1.msra.mxu0 0.0
    %1031 = vmatprep.subr.mxu0 0.0
    %1032 = vmatpush1.msra.mxu0 0.0
    %1033 = vmatprep.subr.mxu0 0.0
    %1034 = vmatpush1.msra.mxu0 0.0
    %1035 = vmatprep.subr.mxu0 0.0
    %1036 = vmatpush1.msra.mxu0 0.0
    %1037 = vmatprep.subr.mxu0 0.0
    %1038 = vmatpush1.msra.mxu0 0.0
    %1039 = vmatprep.subr.mxu0 0.0
    %1040 = vmatpush1.msra.mxu0 0.0
    %1041 = vmatprep.subr.mxu0 0.0
    %1042 = vmatpush1.msra.mxu0 0.0
    %1043 = vmatprep.subr.mxu0 0.0
    %1044 = vmatpush1.msra.mxu0 0.0
    %1045 = vmatprep.subr.mxu0 0.0
    %1046 = vmatpush1.msra.mxu0 0.0
    %1047 = vmatprep.subr.mxu0 0.0
    %1048 = vmatpush1.msra.mxu0 0.0
    %1049 = vmatprep.subr.mxu0 0.0
    %1050 = vmatpush1.msra.mxu0 0.0
    %1051 = vmatprep.subr.mxu0 0.0
    %1052 = vmatpush1.msra.mxu0 0.0
    %1053 = vmatprep.subr.mxu0 0.0
    %1054 = vmatpush1.msra.mxu0 0.0
    %1055 = vmatprep.subr.mxu0 0.0
    %1056 = vmatpush1.msra.mxu0 0.0
    %1057 = vmatprep.subr.mxu0 0.0
    %1058 = vmatpush1.msra.mxu0 0.0
    %1059 = vmatprep.subr.mxu0 0.0
    %1060 = vmatpush1.msra.mxu0 0.0
    %1061 = vmatprep.subr.mxu0 0.0
    %1062 = vmatpush1.msra.mxu0 0.0
    %1063 = vmatprep.mubr.f32.mxu0 0.0
    %1064 = vmatmul.mubr.f32.gmra.mrb[0].mxu0 %v819
    %v1065 = vpop.f32.mrb[0].mxu0
    %v1066 = vadd.f32 0.0, %v1065
    %v1067 = vpop.f32.mrb[0].mxu0
    %1068 = vdwg.mxu0
    %v1069 = vadd.f32 %v996, %v1066
    %v1070 = vxor.u32 %v1069, 2147483648
    %v1071 = vmul.f32 %v1070, 1.442695
    %v1072 = vpow.pop %v1071
    %v1073 = vadd.f32 %v1072, 1.0
    %v1074 = vrcp.pop %v1073
    %v1075 = vmul.f32 1.0, %v1074
    %v1076 = vadd.f32 %v1066, %v230
    %1078 = vrot.lane.b32.xlu0 %v1076, 64
    %v1079 = vpop.permute.xlu0 %1078
    %v1081 = vmul.f32 %v1075, %v1079
    %1083 = vrot.lane.b32.xlu0 %v1081, 64
    %v1084 = vpop.permute.xlu0 %1083
    %v1086 = vadd.f32 %v996, %v1084
    %v1087 = vtanh.pop %v1086
    %v1088 = vsub.f32 1.0, %v1075
    %1090 = vrot.lane.b32.xlu0 %v1087, 96
    %v1091 = vpop.permute.xlu0 %1090
    %v1093 = vmul.f32 %v1088, %v1091
    %v1094 = vmul.f32 %v1075, %v815
    %v1095 = vadd.f32 %v1093, %v1094
    %1097 = vrot.lane.b32.xlu0 %v1095, 96
    %v1098 = vpop.permute.xlu0 %1097
    %v1099 = vsel %vm148, %v1098, 0
    %1101 = vmatprep.subr.mxu0 0.0
    %1102 = vmatpush1.msra.mxu0 %v51
    %1103 = vmatprep.subr.mxu0 0.0
    %1104 = vmatpush1.msra.mxu0 %v52
    %1105 = vmatprep.subr.mxu0 0.0
    %1106 = vmatpush1.msra.mxu0 %v53
    %1107 = vmatprep.subr.mxu0 0.0
    %1108 = vmatpush1.msra.mxu0 %v54
    %1109 = vmatprep.subr.mxu0 0.0
    %1110 = vmatpush1.msra.mxu0 0.0
    %1111 = vmatprep.subr.mxu0 0.0
    %1112 = vmatpush1.msra.mxu0 0.0
    %1113 = vmatprep.subr.mxu0 0.0
    %1114 = vmatpush1.msra.mxu0 0.0
    %1115 = vmatprep.subr.mxu0 0.0
    %1116 = vmatpush1.msra.mxu0 0.0
    %1117 = vmatprep.subr.mxu0 0.0
    %1118 = vmatpush1.msra.mxu0 0.0
    %1119 = vmatprep.subr.mxu0 0.0
    %1120 = vmatpush1.msra.mxu0 0.0
    %1121 = vmatprep.subr.mxu0 0.0
    %1122 = vmatpush1.msra.mxu0 0.0
    %1123 = vmatprep.subr.mxu0 0.0
    %1124 = vmatpush1.msra.mxu0 0.0
    %1125 = vmatprep.subr.mxu0 0.0
    %1126 = vmatpush1.msra.mxu0 0.0
    %1127 = vmatprep.subr.mxu0 0.0
    %1128 = vmatpush1.msra.mxu0 0.0
    %1129 = vmatprep.subr.mxu0 0.0
    %1130 = vmatpush1.msra.mxu0 0.0
    %1131 = vmatprep.subr.mxu0 0.0
    %1132 = vmatpush1.msra.mxu0 0.0
    %1133 = vmatprep.subr.mxu0 0.0
    %1134 = vmatpush1.msra.mxu0 0.0
    %1135 = vmatprep.subr.mxu0 0.0
    %1136 = vmatpush1.msra.mxu0 0.0
    %1137 = vmatprep.subr.mxu0 0.0
    %1138 = vmatpush1.msra.mxu0 0.0
    %1139 = vmatprep.subr.mxu0 0.0
    %1140 = vmatpush1.msra.mxu0 0.0
    %1141 = vmatprep.subr.mxu0 0.0
    %1142 = vmatpush1.msra.mxu0 0.0
    %1143 = vmatprep.subr.mxu0 0.0
    %1144 = vmatpush1.msra.mxu0 0.0
    %1145 = vmatprep.subr.mxu0 0.0
    %1146 = vmatpush1.msra.mxu0 0.0
    %1147 = vmatprep.subr.mxu0 0.0
    %1148 = vmatpush1.msra.mxu0 0.0
    %1149 = vmatprep.subr.mxu0 0.0
    %1150 = vmatpush1.msra.mxu0 0.0
    %1151 = vmatprep.subr.mxu0 0.0
    %1152 = vmatpush1.msra.mxu0 0.0
    %1153 = vmatprep.subr.mxu0 0.0
    %1154 = vmatpush1.msra.mxu0 0.0
    %1155 = vmatprep.subr.mxu0 0.0
    %1156 = vmatpush1.msra.mxu0 0.0
    %1157 = vmatprep.subr.mxu0 0.0
    %1158 = vmatpush1.msra.mxu0 0.0
    %1159 = vmatprep.subr.mxu0 0.0
    %1160 = vmatpush1.msra.mxu0 0.0
    %1161 = vmatprep.subr.mxu0 0.0
    %1162 = vmatpush1.msra.mxu0 0.0
    %1163 = vmatprep.subr.mxu0 0.0
    %1164 = vmatpush1.msra.mxu0 0.0
    %1165 = vmatprep.mubr.f32.mxu0 0.0
    %1166 = vmatmul.mubr.f32.gmra.mrb[0].mxu0 %v1099
    %v1167 = vpop.f32.mrb[0].mxu0
    %v1168 = vadd.f32 %v66, %v1167
    %v1169 = vpop.f32.mrb[0].mxu0
    %1170 = vdwg.mxu0
    %v1171 = vsel %vm74, %v1168, -inf
    %1172 = vmax.xlane.f32.xlu0 %v1171
    %v1173 = vpop.xlane.xlu0 %1172
    %vm1174 = vcmp.eq.f32.partialorder %v1168, %v1173
    %v1175 = vsel %vm1174, %v69, 16
    %v1176 = vsel %vm74, %v1175, 2147483647
    %v1177 = vand.u32 %v1176, 65535
    %v1178 = vshra.s32 %v1176, 16
    %v1179 = vcvt.s32.f32 %v1177
    %v1180 = vcvt.s32.f32 %v1178
    %1181 = vmin.xlane.f32.xlu0 %v1180
    %v1182 = vpop.xlane.xlu0 %1181
    %vm1183 = vcmp.eq.f32.partialorder %v1180, %v1182
    %v1184 = vsel %vm1183, %v1179, inf
    %1185 = vmin.xlane.f32.xlu0 %v1184
    %v1186 = vpop.xlane.xlu0 %1185
    %v1187 = vcvt.f32.s32 %v1186
    %v1188 = vcvt.f32.s32 %v1182
    %v1189 = vshll.u32 %v1188, 16
    %v1190 = vadd.s32 %v1189, %v1187
    %vm1191 = vcmp.eq.s32.totalorder %v69, %v1190
    %v1192 = vsel %vm1191, 1, 0
    %v1193 = vcvt.s32.f32 %v1192
    %1194 = vset.pattern.permute.xlu0 3
    %1195 = vperm.xlu0 %1194, %v353
    %v1196 = vpop.permute.xlu0 %1195
    %vm1197 = vcmp.eq.s32.totalorder %v69, %v1196
    %v1198 = vsel %vm1197, 1, 0
    %v1199 = vcvt.s32.f32 %v1198
    %s1200 = sld [smem:[#allocation2 + $0x3]]
    %p1201 = scmp.gt.s32.totalorder %s1200, 0
    %s1202 = scalar_select %p1201, 1, 0
    %v1203 = vstv %s1202
    %vm1204 = vcmp.eq.s32.totalorder %v1203, 1
    %v1205 = vsel %vm1204, %v1199, %v1193
    %v1207 = vsel %vm74, %v1205, 0
    %1209 = vmatprep.subr.mxu0 0.0
    %1210 = vmatpush1.msra.mxu0 %v45
    %1211 = vmatprep.subr.mxu0 0.0
    %1212 = vmatpush1.msra.mxu0 %v46
    %1213 = vmatprep.subr.mxu0 0.0
    %1214 = vmatpush1.msra.mxu0 0.0
    %1215 = vmatprep.subr.mxu0 0.0
    %1216 = vmatpush1.msra.mxu0 0.0
    %1217 = vmatprep.subr.mxu0 0.0
    %1218 = vmatpush1.msra.mxu0 0.0
    %1219 = vmatprep.subr.mxu0 0.0
    %1220 = vmatpush1.msra.mxu0 0.0
    %1221 = vmatprep.subr.mxu0 0.0
    %1222 = vmatpush1.msra.mxu0 0.0
    %1223 = vmatprep.subr.mxu0 0.0
    %1224 = vmatpush1.msra.mxu0 0.0
    %1225 = vmatprep.subr.mxu0 0.0
    %1226 = vmatpush1.msra.mxu0 0.0
    %1227 = vmatprep.subr.mxu0 0.0
    %1228 = vmatpush1.msra.mxu0 0.0
    %1229 = vmatprep.subr.mxu0 0.0
    %1230 = vmatpush1.msra.mxu0 0.0
    %1231 = vmatprep.subr.mxu0 0.0
    %1232 = vmatpush1.msra.mxu0 0.0
    %1233 = vmatprep.subr.mxu0 0.0
    %1234 = vmatpush1.msra.mxu0 0.0
    %1235 = vmatprep.subr.mxu0 0.0
    %1236 = vmatpush1.msra.mxu0 0.0
    %1237 = vmatprep.subr.mxu0 0.0
    %1238 = vmatpush1.msra.mxu0 0.0
    %1239 = vmatprep.subr.mxu0 0.0
    %1240 = vmatpush1.msra.mxu0 0.0
    %1241 = vmatprep.subr.mxu0 0.0
    %1242 = vmatpush1.msra.mxu0 0.0
    %1243 = vmatprep.subr.mxu0 0.0
    %1244 = vmatpush1.msra.mxu0 0.0
    %1245 = vmatprep.subr.mxu0 0.0
    %1246 = vmatpush1.msra.mxu0 0.0
    %1247 = vmatprep.subr.mxu0 0.0
    %1248 = vmatpush1.msra.mxu0 0.0
    %1249 = vmatprep.subr.mxu0 0.0
    %1250 = vmatpush1.msra.mxu0 0.0
    %1251 = vmatprep.subr.mxu0 0.0
    %1252 = vmatpush1.msra.mxu0 0.0
    %1253 = vmatprep.subr.mxu0 0.0
    %1254 = vmatpush1.msra.mxu0 0.0
    %1255 = vmatprep.subr.mxu0 0.0
    %1256 = vmatpush1.msra.mxu0 0.0
    %1257 = vmatprep.subr.mxu0 0.0
    %1258 = vmatpush1.msra.mxu0 0.0
    %1259 = vmatprep.subr.mxu0 0.0
    %1260 = vmatpush1.msra.mxu0 0.0
    %1261 = vmatprep.subr.mxu0 0.0
    %1262 = vmatpush1.msra.mxu0 0.0
    %1263 = vmatprep.subr.mxu0 0.0
    %1264 = vmatpush1.msra.mxu0 0.0
    %1265 = vmatprep.subr.mxu0 0.0
    %1266 = vmatpush1.msra.mxu0 0.0
    %1267 = vmatprep.subr.mxu0 0.0
    %1268 = vmatpush1.msra.mxu0 0.0
    %1269 = vmatprep.subr.mxu0 0.0
    %1270 = vmatpush1.msra.mxu0 0.0
    %1271 = vmatprep.subr.mxu0 0.0
    %1272 = vmatpush1.msra.mxu0 0.0
    %1273 = vmatprep.mubr.f32.mxu0 0.0
    %1274 = vmatmul.mubr.f32.gmra.mrb[0].mxu0 %v1207
    %v1275 = vpop.f32.mrb[0].mxu0
    %v1276 = vadd.f32 0.0, %v1275
    %v1277 = vpop.f32.mrb[0].mxu0
    %1278 = vdwg.mxu0
    %1279 = vmatprep.subr.mxu0 0.0
    %1280 = vmatpush1.msra.mxu0 %v47
    %1281 = vmatprep.subr.mxu0 0.0
    %1282 = vmatpush1.msra.mxu0 %v48
    %1283 = vmatprep.subr.mxu0 0.0
    %1284 = vmatpush1.msra.mxu0 %v49
    %1285 = vmatprep.subr.mxu0 0.0
    %1286 = vmatpush1.msra.mxu0 %v50
    %1287 = vmatprep.subr.mxu0 0.0
    %1288 = vmatpush1.msra.mxu0 0.0
    %1289 = vmatprep.subr.mxu0 0.0
    %1290 = vmatpush1.msra.mxu0 0.0
    %1291 = vmatprep.subr.mxu0 0.0
    %1292 = vmatpush1.msra.mxu0 0.0
    %1293 = vmatprep.subr.mxu0 0.0
    %1294 = vmatpush1.msra.mxu0 0.0
    %1295 = vmatprep.subr.mxu0 0.0
    %1296 = vmatpush1.msra.mxu0 0.0
    %1297 = vmatprep.subr.mxu0 0.0
    %1298 = vmatpush1.msra.mxu0 0.0
    %1299 = vmatprep.subr.mxu0 0.0
    %1300 = vmatpush1.msra.mxu0 0.0
    %1301 = vmatprep.subr.mxu0 0.0
    %1302 = vmatpush1.msra.mxu0 0.0
    %1303 = vmatprep.subr.mxu0 0.0
    %1304 = vmatpush1.msra.mxu0 0.0
    %1305 = vmatprep.subr.mxu0 0.0
    %1306 = vmatpush1.msra.mxu0 0.0
    %1307 = vmatprep.subr.mxu0 0.0
    %1308 = vmatpush1.msra.mxu0 0.0
    %1309 = vmatprep.subr.mxu0 0.0
    %1310 = vmatpush1.msra.mxu0 0.0
    %1311 = vmatprep.subr.mxu0 0.0
    %1312 = vmatpush1.msra.mxu0 0.0
    %1313 = vmatprep.subr.mxu0 0.0
    %1314 = vmatpush1.msra.mxu0 0.0
    %1315 = vmatprep.subr.mxu0 0.0
    %1316 = vmatpush1.msra.mxu0 0.0
    %1317 = vmatprep.subr.mxu0 0.0
    %1318 = vmatpush1.msra.mxu0 0.0
    %1319 = vmatprep.subr.mxu0 0.0
    %1320 = vmatpush1.msra.mxu0 0.0
    %1321 = vmatprep.subr.mxu0 0.0
    %1322 = vmatpush1.msra.mxu0 0.0
    %1323 = vmatprep.subr.mxu0 0.0
    %1324 = vmatpush1.msra.mxu0 0.0
    %1325 = vmatprep.subr.mxu0 0.0
    %1326 = vmatpush1.msra.mxu0 0.0
    %1327 = vmatprep.subr.mxu0 0.0
    %1328 = vmatpush1.msra.mxu0 0.0
    %1329 = vmatprep.subr.mxu0 0.0
    %1330 = vmatpush1.msra.mxu0 0.0
    %1331 = vmatprep.subr.mxu0 0.0
    %1332 = vmatpush1.msra.mxu0 0.0
    %1333 = vmatprep.subr.mxu0 0.0
    %1334 = vmatpush1.msra.mxu0 0.0
    %1335 = vmatprep.subr.mxu0 0.0
    %1336 = vmatpush1.msra.mxu0 0.0
    %1337 = vmatprep.subr.mxu0 0.0
    %1338 = vmatpush1.msra.mxu0 0.0
    %1339 = vmatprep.subr.mxu0 0.0
    %1340 = vmatpush1.msra.mxu0 0.0
    %1341 = vmatprep.subr.mxu0 0.0
    %1342 = vmatpush1.msra.mxu0 0.0
    %1343 = vmatprep.mubr.f32.mxu0 0.0
    %1344 = vmatmul.mubr.f32.gmra.mrb[0].mxu0 %v1099
    %v1345 = vpop.f32.mrb[0].mxu0
    %v1346 = vadd.f32 0.0, %v1345
    %v1347 = vpop.f32.mrb[0].mxu0
    %1348 = vdwg.mxu0
    %v1349 = vadd.f32 %v1276, %v1346
    %v1350 = vxor.u32 %v1349, 2147483648
    %v1351 = vmul.f32 %v1350, 1.442695
    %v1352 = vpow.pop %v1351
    %v1353 = vadd.f32 %v1352, 1.0
    %v1354 = vrcp.pop %v1353
    %v1355 = vmul.f32 1.0, %v1354
    %v1356 = vadd.f32 %v1346, %v230
    %1358 = vrot.lane.b32.xlu0 %v1356, 64
    %v1359 = vpop.permute.xlu0 %1358
    %v1361 = vmul.f32 %v1355, %v1359
    %1363 = vrot.lane.b32.xlu0 %v1361, 64
    %v1364 = vpop.permute.xlu0 %1363
    %v1366 = vadd.f32 %v1276, %v1364
    %v1367 = vtanh.pop %v1366
    %v1368 = vsub.f32 1.0, %v1355
    %1370 = vrot.lane.b32.xlu0 %v1367, 96
    %v1371 = vpop.permute.xlu0 %1370
    %v1373 = vmul.f32 %v1368, %v1371
    %v1374 = vmul.f32 %v1355, %v1095
    %v1375 = vadd.f32 %v1373, %v1374
    %1377 = vrot.lane.b32.xlu0 %v1375, 96
    %v1378 = vpop.permute.xlu0 %1377
    %v1379 = vsel %vm148, %v1378, 0
    %1381 = vmatprep.subr.mxu0 0.0
    %1382 = vmatpush1.msra.mxu0 %v51
    %1383 = vmatprep.subr.mxu0 0.0
    %1384 = vmatpush1.msra.mxu0 %v52
    %1385 = vmatprep.subr.mxu0 0.0
    %1386 = vmatpush1.msra.mxu0 %v53
    %1387 = vmatprep.subr.mxu0 0.0
    %1388 = vmatpush1.msra.mxu0 %v54
    %1389 = vmatprep.subr.mxu0 0.0
    %1390 = vmatpush1.msra.mxu0 0.0
    %1391 = vmatprep.subr.mxu0 0.0
    %1392 = vmatpush1.msra.mxu0 0.0
    %1393 = vmatprep.subr.mxu0 0.0
    %1394 = vmatpush1.msra.mxu0 0.0
    %1395 = vmatprep.subr.mxu0 0.0
    %1396 = vmatpush1.msra.mxu0 0.0
    %1397 = vmatprep.subr.mxu0 0.0
    %1398 = vmatpush1.msra.mxu0 0.0
    %1399 = vmatprep.subr.mxu0 0.0
    %1400 = vmatpush1.msra.mxu0 0.0
    %1401 = vmatprep.subr.mxu0 0.0
    %1402 = vmatpush1.msra.mxu0 0.0
    %1403 = vmatprep.subr.mxu0 0.0
    %1404 = vmatpush1.msra.mxu0 0.0
    %1405 = vmatprep.subr.mxu0 0.0
    %1406 = vmatpush1.msra.mxu0 0.0
    %1407 = vmatprep.subr.mxu0 0.0
    %1408 = vmatpush1.msra.mxu0 0.0
    %1409 = vmatprep.subr.mxu0 0.0
    %1410 = vmatpush1.msra.mxu0 0.0
    %1411 = vmatprep.subr.mxu0 0.0
    %1412 = vmatpush1.msra.mxu0 0.0
    %1413 = vmatprep.subr.mxu0 0.0
    %1414 = vmatpush1.msra.mxu0 0.0
    %1415 = vmatprep.subr.mxu0 0.0
    %1416 = vmatpush1.msra.mxu0 0.0
    %1417 = vmatprep.subr.mxu0 0.0
    %1418 = vmatpush1.msra.mxu0 0.0
    %1419 = vmatprep.subr.mxu0 0.0
    %1420 = vmatpush1.msra.mxu0 0.0
    %1421 = vmatprep.subr.mxu0 0.0
    %1422 = vmatpush1.msra.mxu0 0.0
    %1423 = vmatprep.subr.mxu0 0.0
    %1424 = vmatpush1.msra.mxu0 0.0
    %1425 = vmatprep.subr.mxu0 0.0
    %1426 = vmatpush1.msra.mxu0 0.0
    %1427 = vmatprep.subr.mxu0 0.0
    %1428 = vmatpush1.msra.mxu0 0.0
    %1429 = vmatprep.subr.mxu0 0.0
    %1430 = vmatpush1.msra.mxu0 0.0
    %1431 = vmatprep.subr.mxu0 0.0
    %1432 = vmatpush1.msra.mxu0 0.0
    %1433 = vmatprep.subr.mxu0 0.0
    %1434 = vmatpush1.msra.mxu0 0.0
    %1435 = vmatprep.subr.mxu0 0.0
    %1436 = vmatpush1.msra.mxu0 0.0
    %1437 = vmatprep.subr.mxu0 0.0
    %1438 = vmatpush1.msra.mxu0 0.0
    %1439 = vmatprep.subr.mxu0 0.0
    %1440 = vmatpush1.msra.mxu0 0.0
    %1441 = vmatprep.subr.mxu0 0.0
    %1442 = vmatpush1.msra.mxu0 0.0
    %1443 = vmatprep.subr.mxu0 0.0
    %1444 = vmatpush1.msra.mxu0 0.0
    %1445 = vmatprep.mubr.f32.mxu0 0.0
    %1446 = vmatmul.mubr.f32.gmra.mrb[0].mxu0 %v1379
    %v1447 = vpop.f32.mrb[0].mxu0
    %v1448 = vadd.f32 %v66, %v1447
    %v1449 = vpop.f32.mrb[0].mxu0
    %1450 = vdwg.mxu0
    %v1451 = vsel %vm74, %v1448, -inf
    %1452 = vmax.xlane.f32.xlu0 %v1451
    %v1453 = vpop.xlane.xlu0 %1452
    %vm1454 = vcmp.eq.f32.partialorder %v1448, %v1453
    %v1455 = vsel %vm1454, %v69, 16
    %v1456 = vsel %vm74, %v1455, 2147483647
    %v1457 = vand.u32 %v1456, 65535
    %v1458 = vshra.s32 %v1456, 16
    %v1459 = vcvt.s32.f32 %v1457
    %v1460 = vcvt.s32.f32 %v1458
    %1461 = vmin.xlane.f32.xlu0 %v1460
    %v1462 = vpop.xlane.xlu0 %1461
    %vm1463 = vcmp.eq.f32.partialorder %v1460, %v1462
    %v1464 = vsel %vm1463, %v1459, inf
    %1465 = vmin.xlane.f32.xlu0 %v1464
    %v1466 = vpop.xlane.xlu0 %1465
    %v1467 = vcvt.f32.s32 %v1466
    %v1468 = vcvt.f32.s32 %v1462
    %v1469 = vshll.u32 %v1468, 16
    %v1470 = vadd.s32 %v1469, %v1467
    %vm1471 = vcmp.eq.s32.totalorder %v69, %v1470
    %v1472 = vsel %vm1471, 1, 0
    %v1473 = vcvt.s32.f32 %v1472
    %1474 = vset.pattern.permute.xlu0 4
    %1475 = vperm.xlu0 %1474, %v353
    %v1476 = vpop.permute.xlu0 %1475
    %vm1477 = vcmp.eq.s32.totalorder %v69, %v1476
    %v1478 = vsel %vm1477, 1, 0
    %v1479 = vcvt.s32.f32 %v1478
    %s1480 = sld [smem:[#allocation2 + $0x4]]
    %p1481 = scmp.gt.s32.totalorder %s1480, 0
    %s1482 = scalar_select %p1481, 1, 0
    %v1483 = vstv %s1482
    %vm1484 = vcmp.eq.s32.totalorder %v1483, 1
    %v1485 = vsel %vm1484, %v1479, %v1473
    %v1487 = vsel %vm74, %v1485, 0
    %1489 = vmatprep.subr.mxu0 0.0
    %1490 = vmatpush1.msra.mxu0 %v45
    %1491 = vmatprep.subr.mxu0 0.0
    %1492 = vmatpush1.msra.mxu0 %v46
    %1493 = vmatprep.subr.mxu0 0.0
    %1494 = vmatpush1.msra.mxu0 0.0
    %1495 = vmatprep.subr.mxu0 0.0
    %1496 = vmatpush1.msra.mxu0 0.0
    %1497 = vmatprep.subr.mxu0 0.0
    %1498 = vmatpush1.msra.mxu0 0.0
    %1499 = vmatprep.subr.mxu0 0.0
    %1500 = vmatpush1.msra.mxu0 0.0
    %1501 = vmatprep.subr.mxu0 0.0
    %1502 = vmatpush1.msra.mxu0 0.0
    %1503 = vmatprep.subr.mxu0 0.0
    %1504 = vmatpush1.msra.mxu0 0.0
    %1505 = vmatprep.subr.mxu0 0.0
    %1506 = vmatpush1.msra.mxu0 0.0
    %1507 = vmatprep.subr.mxu0 0.0
    %1508 = vmatpush1.msra.mxu0 0.0
    %1509 = vmatprep.subr.mxu0 0.0
    %1510 = vmatpush1.msra.mxu0 0.0
    %1511 = vmatprep.subr.mxu0 0.0
    %1512 = vmatpush1.msra.mxu0 0.0
    %1513 = vmatprep.subr.mxu0 0.0
    %1514 = vmatpush1.msra.mxu0 0.0
    %1515 = vmatprep.subr.mxu0 0.0
    %1516 = vmatpush1.msra.mxu0 0.0
    %1517 = vmatprep.subr.mxu0 0.0
    %1518 = vmatpush1.msra.mxu0 0.0
    %1519 = vmatprep.subr.mxu0 0.0
    %1520 = vmatpush1.msra.mxu0 0.0
    %1521 = vmatprep.subr.mxu0 0.0
    %1522 = vmatpush1.msra.mxu0 0.0
    %1523 = vmatprep.subr.mxu0 0.0
    %1524 = vmatpush1.msra.mxu0 0.0
    %1525 = vmatprep.subr.mxu0 0.0
    %1526 = vmatpush1.msra.mxu0 0.0
    %1527 = vmatprep.subr.mxu0 0.0
    %1528 = vmatpush1.msra.mxu0 0.0
    %1529 = vmatprep.subr.mxu0 0.0
    %1530 = vmatpush1.msra.mxu0 0.0
    %1531 = vmatprep.subr.mxu0 0.0
    %1532 = vmatpush1.msra.mxu0 0.0
    %1533 = vmatprep.subr.mxu0 0.0
    %1534 = vmatpush1.msra.mxu0 0.0
    %1535 = vmatprep.subr.mxu0 0.0
    %1536 = vmatpush1.msra.mxu0 0.0
    %1537 = vmatprep.subr.mxu0 0.0
    %1538 = vmatpush1.msra.mxu0 0.0
    %1539 = vmatprep.subr.mxu0 0.0
    %1540 = vmatpush1.msra.mxu0 0.0
    %1541 = vmatprep.subr.mxu0 0.0
    %1542 = vmatpush1.msra.mxu0 0.0
    %1543 = vmatprep.subr.mxu0 0.0
    %1544 = vmatpush1.msra.mxu0 0.0
    %1545 = vmatprep.subr.mxu0 0.0
    %1546 = vmatpush1.msra.mxu0 0.0
    %1547 = vmatprep.subr.mxu0 0.0
    %1548 = vmatpush1.msra.mxu0 0.0
    %1549 = vmatprep.subr.mxu0 0.0
    %1550 = vmatpush1.msra.mxu0 0.0
    %1551 = vmatprep.subr.mxu0 0.0
    %1552 = vmatpush1.msra.mxu0 0.0
    %1553 = vmatprep.mubr.f32.mxu0 0.0
    %1554 = vmatmul.mubr.f32.gmra.mrb[0].mxu0 %v1487
    %v1555 = vpop.f32.mrb[0].mxu0
    %v1556 = vadd.f32 0.0, %v1555
    %v1557 = vpop.f32.mrb[0].mxu0
    %1558 = vdwg.mxu0
    %1559 = vmatprep.subr.mxu0 0.0
    %1560 = vmatpush1.msra.mxu0 %v47
    %1561 = vmatprep.subr.mxu0 0.0
    %1562 = vmatpush1.msra.mxu0 %v48
    %1563 = vmatprep.subr.mxu0 0.0
    %1564 = vmatpush1.msra.mxu0 %v49
    %1565 = vmatprep.subr.mxu0 0.0
    %1566 = vmatpush1.msra.mxu0 %v50
    %1567 = vmatprep.subr.mxu0 0.0
    %1568 = vmatpush1.msra.mxu0 0.0
    %1569 = vmatprep.subr.mxu0 0.0
    %1570 = vmatpush1.msra.mxu0 0.0
    %1571 = vmatprep.subr.mxu0 0.0
    %1572 = vmatpush1.msra.mxu0 0.0
    %1573 = vmatprep.subr.mxu0 0.0
    %1574 = vmatpush1.msra.mxu0 0.0
    %1575 = vmatprep.subr.mxu0 0.0
    %1576 = vmatpush1.msra.mxu0 0.0
    %1577 = vmatprep.subr.mxu0 0.0
    %1578 = vmatpush1.msra.mxu0 0.0
    %1579 = vmatprep.subr.mxu0 0.0
    %1580 = vmatpush1.msra.mxu0 0.0
    %1581 = vmatprep.subr.mxu0 0.0
    %1582 = vmatpush1.msra.mxu0 0.0
    %1583 = vmatprep.subr.mxu0 0.0
    %1584 = vmatpush1.msra.mxu0 0.0
    %1585 = vmatprep.subr.mxu0 0.0
    %1586 = vmatpush1.msra.mxu0 0.0
    %1587 = vmatprep.subr.mxu0 0.0
    %1588 = vmatpush1.msra.mxu0 0.0
    %1589 = vmatprep.subr.mxu0 0.0
    %1590 = vmatpush1.msra.mxu0 0.0
    %1591 = vmatprep.subr.mxu0 0.0
    %1592 = vmatpush1.msra.mxu0 0.0
    %1593 = vmatprep.subr.mxu0 0.0
    %1594 = vmatpush1.msra.mxu0 0.0
    %1595 = vmatprep.subr.mxu0 0.0
    %1596 = vmatpush1.msra.mxu0 0.0
    %1597 = vmatprep.subr.mxu0 0.0
    %1598 = vmatpush1.msra.mxu0 0.0
    %1599 = vmatprep.subr.mxu0 0.0
    %1600 = vmatpush1.msra.mxu0 0.0
    %1601 = vmatprep.subr.mxu0 0.0
    %1602 = vmatpush1.msra.mxu0 0.0
    %1603 = vmatprep.subr.mxu0 0.0
    %1604 = vmatpush1.msra.mxu0 0.0
    %1605 = vmatprep.subr.mxu0 0.0
    %1606 = vmatpush1.msra.mxu0 0.0
    %1607 = vmatprep.subr.mxu0 0.0
    %1608 = vmatpush1.msra.mxu0 0.0
    %1609 = vmatprep.subr.mxu0 0.0
    %1610 = vmatpush1.msra.mxu0 0.0
    %1611 = vmatprep.subr.mxu0 0.0
    %1612 = vmatpush1.msra.mxu0 0.0
    %1613 = vmatprep.subr.mxu0 0.0
    %1614 = vmatpush1.msra.mxu0 0.0
    %1615 = vmatprep.subr.mxu0 0.0
    %1616 = vmatpush1.msra.mxu0 0.0
    %1617 = vmatprep.subr.mxu0 0.0
    %1618 = vmatpush1.msra.mxu0 0.0
    %1619 = vmatprep.subr.mxu0 0.0
    %1620 = vmatpush1.msra.mxu0 0.0
    %1621 = vmatprep.subr.mxu0 0.0
    %1622 = vmatpush1.msra.mxu0 0.0
    %1623 = vmatprep.mubr.f32.mxu0 0.0
    %1624 = vmatmul.mubr.f32.gmra.mrb[0].mxu0 %v1379
    %v1625 = vpop.f32.mrb[0].mxu0
    %v1626 = vadd.f32 0.0, %v1625
    %v1627 = vpop.f32.mrb[0].mxu0
    %1628 = vdwg.mxu0
    %v1629 = vadd.f32 %v1556, %v1626
    %v1630 = vxor.u32 %v1629, 2147483648
    %v1631 = vmul.f32 %v1630, 1.442695
    %v1632 = vpow.pop %v1631
    %v1633 = vadd.f32 %v1632, 1.0
    %v1634 = vrcp.pop %v1633
    %v1635 = vmul.f32 1.0, %v1634
    %v1636 = vadd.f32 %v1626, %v230
    %1638 = vrot.lane.b32.xlu0 %v1636, 64
    %v1639 = vpop.permute.xlu0 %1638
    %v1641 = vmul.f32 %v1635, %v1639
    %1643 = vrot.lane.b32.xlu0 %v1641, 64
    %v1644 = vpop.permute.xlu0 %1643
    %v1646 = vadd.f32 %v1556, %v1644
    %v1647 = vtanh.pop %v1646
    %v1648 = vsub.f32 1.0, %v1635
    %1650 = vrot.lane.b32.xlu0 %v1647, 96
    %v1651 = vpop.permute.xlu0 %1650
    %v1653 = vmul.f32 %v1648, %v1651
    %v1654 = vmul.f32 %v1635, %v1375
    %v1655 = vadd.f32 %v1653, %v1654
    %1657 = vrot.lane.b32.xlu0 %v1655, 96
    %v1658 = vpop.permute.xlu0 %1657
    %v1659 = vsel %vm148, %v1658, 0
    %1661 = vmatprep.subr.mxu0 0.0
    %1662 = vmatpush1.msra.mxu0 %v51
    %1663 = vmatprep.subr.mxu0 0.0
    %1664 = vmatpush1.msra.mxu0 %v52
    %1665 = vmatprep.subr.mxu0 0.0
    %1666 = vmatpush1.msra.mxu0 %v53
    %1667 = vmatprep.subr.mxu0 0.0
    %1668 = vmatpush1.msra.mxu0 %v54
    %1669 = vmatprep.subr.mxu0 0.0
    %1670 = vmatpush1.msra.mxu0 0.0
    %1671 = vmatprep.subr.mxu0 0.0
    %1672 = vmatpush1.msra.mxu0 0.0
    %1673 = vmatprep.subr.mxu0 0.0
    %1674 = vmatpush1.msra.mxu0 0.0
    %1675 = vmatprep.subr.mxu0 0.0
    %1676 = vmatpush1.msra.mxu0 0.0
    %1677 = vmatprep.subr.mxu0 0.0
    %1678 = vmatpush1.msra.mxu0 0.0
    %1679 = vmatprep.subr.mxu0 0.0
    %1680 = vmatpush1.msra.mxu0 0.0
    %1681 = vmatprep.subr.mxu0 0.0
    %1682 = vmatpush1.msra.mxu0 0.0
    %1683 = vmatprep.subr.mxu0 0.0
    %1684 = vmatpush1.msra.mxu0 0.0
    %1685 = vmatprep.subr.mxu0 0.0
    %1686 = vmatpush1.msra.mxu0 0.0
    %1687 = vmatprep.subr.mxu0 0.0
    %1688 = vmatpush1.msra.mxu0 0.0
    %1689 = vmatprep.subr.mxu0 0.0
    %1690 = vmatpush1.msra.mxu0 0.0
    %1691 = vmatprep.subr.mxu0 0.0
    %1692 = vmatpush1.msra.mxu0 0.0
    %1693 = vmatprep.subr.mxu0 0.0
    %1694 = vmatpush1.msra.mxu0 0.0
    %1695 = vmatprep.subr.mxu0 0.0
    %1696 = vmatpush1.msra.mxu0 0.0
    %1697 = vmatprep.subr.mxu0 0.0
    %1698 = vmatpush1.msra.mxu0 0.0
    %1699 = vmatprep.subr.mxu0 0.0
    %1700 = vmatpush1.msra.mxu0 0.0
    %1701 = vmatprep.subr.mxu0 0.0
    %1702 = vmatpush1.msra.mxu0 0.0
    %1703 = vmatprep.subr.mxu0 0.0
    %1704 = vmatpush1.msra.mxu0 0.0
    %1705 = vmatprep.subr.mxu0 0.0
    %1706 = vmatpush1.msra.mxu0 0.0
    %1707 = vmatprep.subr.mxu0 0.0
    %1708 = vmatpush1.msra.mxu0 0.0
    %1709 = vmatprep.subr.mxu0 0.0
    %1710 = vmatpush1.msra.mxu0 0.0
    %1711 = vmatprep.subr.mxu0 0.0
    %1712 = vmatpush1.msra.mxu0 0.0
    %1713 = vmatprep.subr.mxu0 0.0
    %1714 = vmatpush1.msra.mxu0 0.0
    %1715 = vmatprep.subr.mxu0 0.0
    %1716 = vmatpush1.msra.mxu0 0.0
    %1717 = vmatprep.subr.mxu0 0.0
    %1718 = vmatpush1.msra.mxu0 0.0
    %1719 = vmatprep.subr.mxu0 0.0
    %1720 = vmatpush1.msra.mxu0 0.0
    %1721 = vmatprep.subr.mxu0 0.0
    %1722 = vmatpush1.msra.mxu0 0.0
    %1723 = vmatprep.subr.mxu0 0.0
    %1724 = vmatpush1.msra.mxu0 0.0
    %1725 = vmatprep.mubr.f32.mxu0 0.0
    %1726 = vmatmul.mubr.f32.gmra.mrb[0].mxu0 %v1659
    %v1727 = vpop.f32.mrb[0].mxu0
    %v1728 = vadd.f32 %v66, %v1727
    %v1729 = vpop.f32.mrb[0].mxu0
    %1730 = vdwg.mxu0
    %v1731 = vsel %vm74, %v1728, -inf
    %1732 = vmax.xlane.f32.xlu0 %v1731
    %v1733 = vpop.xlane.xlu0 %1732
    %vm1734 = vcmp.eq.f32.partialorder %v1728, %v1733
    %v1735 = vsel %vm1734, %v69, 16
    %v1736 = vsel %vm74, %v1735, 2147483647
    %v1737 = vand.u32 %v1736, 65535
    %v1738 = vshra.s32 %v1736, 16
    %v1739 = vcvt.s32.f32 %v1737
    %v1740 = vcvt.s32.f32 %v1738
    %1741 = vmin.xlane.f32.xlu0 %v1740
    %v1742 = vpop.xlane.xlu0 %1741
    %vm1743 = vcmp.eq.f32.partialorder %v1740, %v1742
    %v1744 = vsel %vm1743, %v1739, inf
    %1745 = vmin.xlane.f32.xlu0 %v1744
    %v1746 = vpop.xlane.xlu0 %1745
    %v1747 = vcvt.f32.s32 %v1746
    %v1748 = vcvt.f32.s32 %v1742
    %v1749 = vshll.u32 %v1748, 16
    %v1750 = vadd.s32 %v1749, %v1747
    %vm1751 = vcmp.eq.s32.totalorder %v69, %v1750
    %v1752 = vsel %vm1751, 1, 0
    %v1753 = vcvt.s32.f32 %v1752
    %1754 = vset.pattern.permute.xlu0 5
    %1755 = vperm.xlu0 %1754, %v353
    %v1756 = vpop.permute.xlu0 %1755
    %vm1757 = vcmp.eq.s32.totalorder %v69, %v1756
    %v1758 = vsel %vm1757, 1, 0
    %v1759 = vcvt.s32.f32 %v1758
    %s1760 = sld [smem:[#allocation2 + $0x5]]
    %p1761 = scmp.gt.s32.totalorder %s1760, 0
    %s1762 = scalar_select %p1761, 1, 0
    %v1763 = vstv %s1762
    %vm1764 = vcmp.eq.s32.totalorder %v1763, 1
    %v1765 = vsel %vm1764, %v1759, %v1753
    %v1767 = vsel %vm74, %v1765, 0
    %1769 = vmatprep.subr.mxu0 0.0
    %1770 = vmatpush1.msra.mxu0 %v45
    %1771 = vmatprep.subr.mxu0 0.0
    %1772 = vmatpush1.msra.mxu0 %v46
    %1773 = vmatprep.subr.mxu0 0.0
    %1774 = vmatpush1.msra.mxu0 0.0
    %1775 = vmatprep.subr.mxu0 0.0
    %1776 = vmatpush1.msra.mxu0 0.0
    %1777 = vmatprep.subr.mxu0 0.0
    %1778 = vmatpush1.msra.mxu0 0.0
    %1779 = vmatprep.subr.mxu0 0.0
    %1780 = vmatpush1.msra.mxu0 0.0
    %1781 = vmatprep.subr.mxu0 0.0
    %1782 = vmatpush1.msra.mxu0 0.0
    %1783 = vmatprep.subr.mxu0 0.0
    %1784 = vmatpush1.msra.mxu0 0.0
    %1785 = vmatprep.subr.mxu0 0.0
    %1786 = vmatpush1.msra.mxu0 0.0
    %1787 = vmatprep.subr.mxu0 0.0
    %1788 = vmatpush1.msra.mxu0 0.0
    %1789 = vmatprep.subr.mxu0 0.0
    %1790 = vmatpush1.msra.mxu0 0.0
    %1791 = vmatprep.subr.mxu0 0.0
    %1792 = vmatpush1.msra.mxu0 0.0
    %1793 = vmatprep.subr.mxu0 0.0
    %1794 = vmatpush1.msra.mxu0 0.0
    %1795 = vmatprep.subr.mxu0 0.0
    %1796 = vmatpush1.msra.mxu0 0.0
    %1797 = vmatprep.subr.mxu0 0.0
    %1798 = vmatpush1.msra.mxu0 0.0
    %1799 = vmatprep.subr.mxu0 0.0
    %1800 = vmatpush1.msra.mxu0 0.0
    %1801 = vmatprep.subr.mxu0 0.0
    %1802 = vmatpush1.msra.mxu0 0.0
    %1803 = vmatprep.subr.mxu0 0.0
    %1804 = vmatpush1.msra.mxu0 0.0
    %1805 = vmatprep.subr.mxu0 0.0
    %1806 = vmatpush1.msra.mxu0 0.0
    %1807 = vmatprep.subr.mxu0 0.0
    %1808 = vmatpush1.msra.mxu0 0.0
    %1809 = vmatprep.subr.mxu0 0.0
    %1810 = vmatpush1.msra.mxu0 0.0
    %1811 = vmatprep.subr.mxu0 0.0
    %1812 = vmatpush1.msra.mxu0 0.0
    %1813 = vmatprep.subr.mxu0 0.0
    %1814 = vmatpush1.msra.mxu0 0.0
    %1815 = vmatprep.subr.mxu0 0.0
    %1816 = vmatpush1.msra.mxu0 0.0
    %1817 = vmatprep.subr.mxu0 0.0
    %1818 = vmatpush1.msra.mxu0 0.0
    %1819 = vmatprep.subr.mxu0 0.0
    %1820 = vmatpush1.msra.mxu0 0.0
    %1821 = vmatprep.subr.mxu0 0.0
    %1822 = vmatpush1.msra.mxu0 0.0
    %1823 = vmatprep.subr.mxu0 0.0
    %1824 = vmatpush1.msra.mxu0 0.0
    %1825 = vmatprep.subr.mxu0 0.0
    %1826 = vmatpush1.msra.mxu0 0.0
    %1827 = vmatprep.subr.mxu0 0.0
    %1828 = vmatpush1.msra.mxu0 0.0
    %1829 = vmatprep.subr.mxu0 0.0
    %1830 = vmatpush1.msra.mxu0 0.0
    %1831 = vmatprep.subr.mxu0 0.0
    %1832 = vmatpush1.msra.mxu0 0.0
    %1833 = vmatprep.mubr.f32.mxu0 0.0
    %1834 = vmatmul.mubr.f32.gmra.mrb[0].mxu0 %v1767
    %v1835 = vpop.f32.mrb[0].mxu0
    %v1836 = vadd.f32 0.0, %v1835
    %v1837 = vpop.f32.mrb[0].mxu0
    %1838 = vdwg.mxu0
    %1839 = vmatprep.subr.mxu0 0.0
    %1840 = vmatpush1.msra.mxu0 %v47
    %1841 = vmatprep.subr.mxu0 0.0
    %1842 = vmatpush1.msra.mxu0 %v48
    %1843 = vmatprep.subr.mxu0 0.0
    %1844 = vmatpush1.msra.mxu0 %v49
    %1845 = vmatprep.subr.mxu0 0.0
    %1846 = vmatpush1.msra.mxu0 %v50
    %1847 = vmatprep.subr.mxu0 0.0
    %1848 = vmatpush1.msra.mxu0 0.0
    %1849 = vmatprep.subr.mxu0 0.0
    %1850 = vmatpush1.msra.mxu0 0.0
    %1851 = vmatprep.subr.mxu0 0.0
    %1852 = vmatpush1.msra.mxu0 0.0
    %1853 = vmatprep.subr.mxu0 0.0
    %1854 = vmatpush1.msra.mxu0 0.0
    %1855 = vmatprep.subr.mxu0 0.0
    %1856 = vmatpush1.msra.mxu0 0.0
    %1857 = vmatprep.subr.mxu0 0.0
    %1858 = vmatpush1.msra.mxu0 0.0
    %1859 = vmatprep.subr.mxu0 0.0
    %1860 = vmatpush1.msra.mxu0 0.0
    %1861 = vmatprep.subr.mxu0 0.0
    %1862 = vmatpush1.msra.mxu0 0.0
    %1863 = vmatprep.subr.mxu0 0.0
    %1864 = vmatpush1.msra.mxu0 0.0
    %1865 = vmatprep.subr.mxu0 0.0
    %1866 = vmatpush1.msra.mxu0 0.0
    %1867 = vmatprep.subr.mxu0 0.0
    %1868 = vmatpush1.msra.mxu0 0.0
    %1869 = vmatprep.subr.mxu0 0.0
    %1870 = vmatpush1.msra.mxu0 0.0
    %1871 = vmatprep.subr.mxu0 0.0
    %1872 = vmatpush1.msra.mxu0 0.0
    %1873 = vmatprep.subr.mxu0 0.0
    %1874 = vmatpush1.msra.mxu0 0.0
    %1875 = vmatprep.subr.mxu0 0.0
    %1876 = vmatpush1.msra.mxu0 0.0
    %1877 = vmatprep.subr.mxu0 0.0
    %1878 = vmatpush1.msra.mxu0 0.0
    %1879 = vmatprep.subr.mxu0 0.0
    %1880 = vmatpush1.msra.mxu0 0.0
    %1881 = vmatprep.subr.mxu0 0.0
    %1882 = vmatpush1.msra.mxu0 0.0
    %1883 = vmatprep.subr.mxu0 0.0
    %1884 = vmatpush1.msra.mxu0 0.0
    %1885 = vmatprep.subr.mxu0 0.0
    %1886 = vmatpush1.msra.mxu0 0.0
    %1887 = vmatprep.subr.mxu0 0.0
    %1888 = vmatpush1.msra.mxu0 0.0
    %1889 = vmatprep.subr.mxu0 0.0
    %1890 = vmatpush1.msra.mxu0 0.0
    %1891 = vmatprep.subr.mxu0 0.0
    %1892 = vmatpush1.msra.mxu0 0.0
    %1893 = vmatprep.subr.mxu0 0.0
    %1894 = vmatpush1.msra.mxu0 0.0
    %1895 = vmatprep.subr.mxu0 0.0
    %1896 = vmatpush1.msra.mxu0 0.0
    %1897 = vmatprep.subr.mxu0 0.0
    %1898 = vmatpush1.msra.mxu0 0.0
    %1899 = vmatprep.subr.mxu0 0.0
    %1900 = vmatpush1.msra.mxu0 0.0
    %1901 = vmatprep.subr.mxu0 0.0
    %1902 = vmatpush1.msra.mxu0 0.0
    %1903 = vmatprep.mubr.f32.mxu0 0.0
    %1904 = vmatmul.mubr.f32.gmra.mrb[0].mxu0 %v1659
    %v1905 = vpop.f32.mrb[0].mxu0
    %v1906 = vadd.f32 0.0, %v1905
    %v1907 = vpop.f32.mrb[0].mxu0
    %1908 = vdwg.mxu0
    %v1909 = vadd.f32 %v1836, %v1906
    %v1910 = vxor.u32 %v1909, 2147483648
    %v1911 = vmul.f32 %v1910, 1.442695
    %v1912 = vpow.pop %v1911
    %v1913 = vadd.f32 %v1912, 1.0
    %v1914 = vrcp.pop %v1913
    %v1915 = vmul.f32 1.0, %v1914
    %v1916 = vadd.f32 %v1906, %v230
    %1918 = vrot.lane.b32.xlu0 %v1916, 64
    %v1919 = vpop.permute.xlu0 %1918
    %v1921 = vmul.f32 %v1915, %v1919
    %1923 = vrot.lane.b32.xlu0 %v1921, 64
    %v1924 = vpop.permute.xlu0 %1923
    %v1926 = vadd.f32 %v1836, %v1924
    %v1927 = vtanh.pop %v1926
    %v1928 = vsub.f32 1.0, %v1915
    %1930 = vrot.lane.b32.xlu0 %v1927, 96
    %v1931 = vpop.permute.xlu0 %1930
    %v1933 = vmul.f32 %v1928, %v1931
    %v1934 = vmul.f32 %v1915, %v1655
    %v1935 = vadd.f32 %v1933, %v1934
    %1937 = vrot.lane.b32.xlu0 %v1935, 96
    %v1938 = vpop.permute.xlu0 %1937
    %v1939 = vsel %vm148, %v1938, 0
    %1941 = vmatprep.subr.mxu0 0.0
    %1942 = vmatpush1.msra.mxu0 %v51
    %1943 = vmatprep.subr.mxu0 0.0
    %1944 = vmatpush1.msra.mxu0 %v52
    %1945 = vmatprep.subr.mxu0 0.0
    %1946 = vmatpush1.msra.mxu0 %v53
    %1947 = vmatprep.subr.mxu0 0.0
    %1948 = vmatpush1.msra.mxu0 %v54
    %1949 = vmatprep.subr.mxu0 0.0
    %1950 = vmatpush1.msra.mxu0 0.0
    %1951 = vmatprep.subr.mxu0 0.0
    %1952 = vmatpush1.msra.mxu0 0.0
    %1953 = vmatprep.subr.mxu0 0.0
    %1954 = vmatpush1.msra.mxu0 0.0
    %1955 = vmatprep.subr.mxu0 0.0
    %1956 = vmatpush1.msra.mxu0 0.0
    %1957 = vmatprep.subr.mxu0 0.0
    %1958 = vmatpush1.msra.mxu0 0.0
    %1959 = vmatprep.subr.mxu0 0.0
    %1960 = vmatpush1.msra.mxu0 0.0
    %1961 = vmatprep.subr.mxu0 0.0
    %1962 = vmatpush1.msra.mxu0 0.0
    %1963 = vmatprep.subr.mxu0 0.0
    %1964 = vmatpush1.msra.mxu0 0.0
    %1965 = vmatprep.subr.mxu0 0.0
    %1966 = vmatpush1.msra.mxu0 0.0
    %1967 = vmatprep.subr.mxu0 0.0
    %1968 = vmatpush1.msra.mxu0 0.0
    %1969 = vmatprep.subr.mxu0 0.0
    %1970 = vmatpush1.msra.mxu0 0.0
    %1971 = vmatprep.subr.mxu0 0.0
    %1972 = vmatpush1.msra.mxu0 0.0
    %1973 = vmatprep.subr.mxu0 0.0
    %1974 = vmatpush1.msra.mxu0 0.0
    %1975 = vmatprep.subr.mxu0 0.0
    %1976 = vmatpush1.msra.mxu0 0.0
    %1977 = vmatprep.subr.mxu0 0.0
    %1978 = vmatpush1.msra.mxu0 0.0
    %1979 = vmatprep.subr.mxu0 0.0
    %1980 = vmatpush1.msra.mxu0 0.0
    %1981 = vmatprep.subr.mxu0 0.0
    %1982 = vmatpush1.msra.mxu0 0.0
    %1983 = vmatprep.subr.mxu0 0.0
    %1984 = vmatpush1.msra.mxu0 0.0
    %1985 = vmatprep.subr.mxu0 0.0
    %1986 = vmatpush1.msra.mxu0 0.0
    %1987 = vmatprep.subr.mxu0 0.0
    %1988 = vmatpush1.msra.mxu0 0.0
    %1989 = vmatprep.subr.mxu0 0.0
    %1990 = vmatpush1.msra.mxu0 0.0
    %1991 = vmatprep.subr.mxu0 0.0
    %1992 = vmatpush1.msra.mxu0 0.0
    %1993 = vmatprep.subr.mxu0 0.0
    %1994 = vmatpush1.msra.mxu0 0.0
    %1995 = vmatprep.subr.mxu0 0.0
    %1996 = vmatpush1.msra.mxu0 0.0
    %1997 = vmatprep.subr.mxu0 0.0
    %1998 = vmatpush1.msra.mxu0 0.0
    %1999 = vmatprep.subr.mxu0 0.0
    %2000 = vmatpush1.msra.mxu0 0.0
    %2001 = vmatprep.subr.mxu0 0.0
    %2002 = vmatpush1.msra.mxu0 0.0
    %2003 = vmatprep.subr.mxu0 0.0
    %2004 = vmatpush1.msra.mxu0 0.0
    %2005 = vmatprep.mubr.f32.mxu0 0.0
    %2006 = vmatmul.mubr.f32.gmra.mrb[0].mxu0 %v1939
    %v2007 = vpop.f32.mrb[0].mxu0
    %v2008 = vadd.f32 %v66, %v2007
    %v2009 = vpop.f32.mrb[0].mxu0
    %2010 = vdwg.mxu0
    %v2011 = vsel %vm74, %v2008, -inf
    %2012 = vmax.xlane.f32.xlu0 %v2011
    %v2013 = vpop.xlane.xlu0 %2012
    %vm2014 = vcmp.eq.f32.partialorder %v2008, %v2013
    %v2015 = vsel %vm2014, %v69, 16
    %v2016 = vsel %vm74, %v2015, 2147483647
    %v2017 = vand.u32 %v2016, 65535
    %v2018 = vshra.s32 %v2016, 16
    %v2019 = vcvt.s32.f32 %v2017
    %v2020 = vcvt.s32.f32 %v2018
    %2021 = vmin.xlane.f32.xlu0 %v2020
    %v2022 = vpop.xlane.xlu0 %2021
    %vm2023 = vcmp.eq.f32.partialorder %v2020, %v2022
    %v2024 = vsel %vm2023, %v2019, inf
    %2025 = vmin.xlane.f32.xlu0 %v2024
    %v2026 = vpop.xlane.xlu0 %2025
    %v2027 = vcvt.f32.s32 %v2026
    %v2028 = vcvt.f32.s32 %v2022
    %v2029 = vshll.u32 %v2028, 16
    %v2030 = vadd.s32 %v2029, %v2027
    %vm2031 = vcmp.eq.s32.totalorder %v69, %v2030
    %v2032 = vsel %vm2031, 1, 0
    %v2033 = vcvt.s32.f32 %v2032
    %2034 = vset.pattern.permute.xlu0 6
    %2035 = vperm.xlu0 %2034, %v353
    %v2036 = vpop.permute.xlu0 %2035
    %vm2037 = vcmp.eq.s32.totalorder %v69, %v2036
    %v2038 = vsel %vm2037, 1, 0
    %v2039 = vcvt.s32.f32 %v2038
    %s2040 = sld [smem:[#allocation2 + $0x6]]
    %p2041 = scmp.gt.s32.totalorder %s2040, 0
    %s2042 = scalar_select %p2041, 1, 0
    %v2043 = vstv %s2042
    %vm2044 = vcmp.eq.s32.totalorder %v2043, 1
    %v2045 = vsel %vm2044, %v2039, %v2033
    %v2047 = vsel %vm74, %v2045, 0
    %2049 = vmatprep.subr.mxu0 0.0
    %2050 = vmatpush1.msra.mxu0 %v45
    %2051 = vmatprep.subr.mxu0 0.0
    %2052 = vmatpush1.msra.mxu0 %v46
    %2053 = vmatprep.subr.mxu0 0.0
    %2054 = vmatpush1.msra.mxu0 0.0
    %2055 = vmatprep.subr.mxu0 0.0
    %2056 = vmatpush1.msra.mxu0 0.0
    %2057 = vmatprep.subr.mxu0 0.0
    %2058 = vmatpush1.msra.mxu0 0.0
    %2059 = vmatprep.subr.mxu0 0.0
    %2060 = vmatpush1.msra.mxu0 0.0
    %2061 = vmatprep.subr.mxu0 0.0
    %2062 = vmatpush1.msra.mxu0 0.0
    %2063 = vmatprep.subr.mxu0 0.0
    %2064 = vmatpush1.msra.mxu0 0.0
    %2065 = vmatprep.subr.mxu0 0.0
    %2066 = vmatpush1.msra.mxu0 0.0
    %2067 = vmatprep.subr.mxu0 0.0
    %2068 = vmatpush1.msra.mxu0 0.0
    %2069 = vmatprep.subr.mxu0 0.0
    %2070 = vmatpush1.msra.mxu0 0.0
    %2071 = vmatprep.subr.mxu0 0.0
    %2072 = vmatpush1.msra.mxu0 0.0
    %2073 = vmatprep.subr.mxu0 0.0
    %2074 = vmatpush1.msra.mxu0 0.0
    %2075 = vmatprep.subr.mxu0 0.0
    %2076 = vmatpush1.msra.mxu0 0.0
    %2077 = vmatprep.subr.mxu0 0.0
    %2078 = vmatpush1.msra.mxu0 0.0
    %2079 = vmatprep.subr.mxu0 0.0
    %2080 = vmatpush1.msra.mxu0 0.0
    %2081 = vmatprep.subr.mxu0 0.0
    %2082 = vmatpush1.msra.mxu0 0.0
    %2083 = vmatprep.subr.mxu0 0.0
    %2084 = vmatpush1.msra.mxu0 0.0
    %2085 = vmatprep.subr.mxu0 0.0
    %2086 = vmatpush1.msra.mxu0 0.0
    %2087 = vmatprep.subr.mxu0 0.0
    %2088 = vmatpush1.msra.mxu0 0.0
    %2089 = vmatprep.subr.mxu0 0.0
    %2090 = vmatpush1.msra.mxu0 0.0
    %2091 = vmatprep.subr.mxu0 0.0
    %2092 = vmatpush1.msra.mxu0 0.0
    %2093 = vmatprep.subr.mxu0 0.0
    %2094 = vmatpush1.msra.mxu0 0.0
    %2095 = vmatprep.subr.mxu0 0.0
    %2096 = vmatpush1.msra.mxu0 0.0
    %2097 = vmatprep.subr.mxu0 0.0
    %2098 = vmatpush1.msra.mxu0 0.0
    %2099 = vmatprep.subr.mxu0 0.0
    %2100 = vmatpush1.msra.mxu0 0.0
    %2101 = vmatprep.subr.mxu0 0.0
    %2102 = vmatpush1.msra.mxu0 0.0
    %2103 = vmatprep.subr.mxu0 0.0
    %2104 = vmatpush1.msra.mxu0 0.0
    %2105 = vmatprep.subr.mxu0 0.0
    %2106 = vmatpush1.msra.mxu0 0.0
    %2107 = vmatprep.subr.mxu0 0.0
    %2108 = vmatpush1.msra.mxu0 0.0
    %2109 = vmatprep.subr.mxu0 0.0
    %2110 = vmatpush1.msra.mxu0 0.0
    %2111 = vmatprep.subr.mxu0 0.0
    %2112 = vmatpush1.msra.mxu0 0.0
    %2113 = vmatprep.mubr.f32.mxu0 0.0
    %2114 = vmatmul.mubr.f32.gmra.mrb[0].mxu0 %v2047
    %v2115 = vpop.f32.mrb[0].mxu0
    %v2116 = vadd.f32 0.0, %v2115
    %v2117 = vpop.f32.mrb[0].mxu0
    %2118 = vdwg.mxu0
    %2119 = vmatprep.subr.mxu0 0.0
    %2120 = vmatpush1.msra.mxu0 %v47
    %2121 = vmatprep.subr.mxu0 0.0
    %2122 = vmatpush1.msra.mxu0 %v48
    %2123 = vmatprep.subr.mxu0 0.0
    %2124 = vmatpush1.msra.mxu0 %v49
    %2125 = vmatprep.subr.mxu0 0.0
    %2126 = vmatpush1.msra.mxu0 %v50
    %2127 = vmatprep.subr.mxu0 0.0
    %2128 = vmatpush1.msra.mxu0 0.0
    %2129 = vmatprep.subr.mxu0 0.0
    %2130 = vmatpush1.msra.mxu0 0.0
    %2131 = vmatprep.subr.mxu0 0.0
    %2132 = vmatpush1.msra.mxu0 0.0
    %2133 = vmatprep.subr.mxu0 0.0
    %2134 = vmatpush1.msra.mxu0 0.0
    %2135 = vmatprep.subr.mxu0 0.0
    %2136 = vmatpush1.msra.mxu0 0.0
    %2137 = vmatprep.subr.mxu0 0.0
    %2138 = vmatpush1.msra.mxu0 0.0
    %2139 = vmatprep.subr.mxu0 0.0
    %2140 = vmatpush1.msra.mxu0 0.0
    %2141 = vmatprep.subr.mxu0 0.0
    %2142 = vmatpush1.msra.mxu0 0.0
    %2143 = vmatprep.subr.mxu0 0.0
    %2144 = vmatpush1.msra.mxu0 0.0
    %2145 = vmatprep.subr.mxu0 0.0
    %2146 = vmatpush1.msra.mxu0 0.0
    %2147 = vmatprep.subr.mxu0 0.0
    %2148 = vmatpush1.msra.mxu0 0.0
    %2149 = vmatprep.subr.mxu0 0.0
    %2150 = vmatpush1.msra.mxu0 0.0
    %2151 = vmatprep.subr.mxu0 0.0
    %2152 = vmatpush1.msra.mxu0 0.0
    %2153 = vmatprep.subr.mxu0 0.0
    %2154 = vmatpush1.msra.mxu0 0.0
    %2155 = vmatprep.subr.mxu0 0.0
    %2156 = vmatpush1.msra.mxu0 0.0
    %2157 = vmatprep.subr.mxu0 0.0
    %2158 = vmatpush1.msra.mxu0 0.0
    %2159 = vmatprep.subr.mxu0 0.0
    %2160 = vmatpush1.msra.mxu0 0.0
    %2161 = vmatprep.subr.mxu0 0.0
    %2162 = vmatpush1.msra.mxu0 0.0
    %2163 = vmatprep.subr.mxu0 0.0
    %2164 = vmatpush1.msra.mxu0 0.0
    %2165 = vmatprep.subr.mxu0 0.0
    %2166 = vmatpush1.msra.mxu0 0.0
    %2167 = vmatprep.subr.mxu0 0.0
    %2168 = vmatpush1.msra.mxu0 0.0
    %2169 = vmatprep.subr.mxu0 0.0
    %2170 = vmatpush1.msra.mxu0 0.0
    %2171 = vmatprep.subr.mxu0 0.0
    %2172 = vmatpush1.msra.mxu0 0.0
    %2173 = vmatprep.subr.mxu0 0.0
    %2174 = vmatpush1.msra.mxu0 0.0
    %2175 = vmatprep.subr.mxu0 0.0
    %2176 = vmatpush1.msra.mxu0 0.0
    %2177 = vmatprep.subr.mxu0 0.0
    %2178 = vmatpush1.msra.mxu0 0.0
    %2179 = vmatprep.subr.mxu0 0.0
    %2180 = vmatpush1.msra.mxu0 0.0
    %2181 = vmatprep.subr.mxu0 0.0
    %2182 = vmatpush1.msra.mxu0 0.0
    %2183 = vmatprep.mubr.f32.mxu0 0.0
    %2184 = vmatmul.mubr.f32.gmra.mrb[0].mxu0 %v1939
    %v2185 = vpop.f32.mrb[0].mxu0
    %v2186 = vadd.f32 0.0, %v2185
    %v2187 = vpop.f32.mrb[0].mxu0
    %2188 = vdwg.mxu0
    %v2189 = vadd.f32 %v2116, %v2186
    %v2190 = vxor.u32 %v2189, 2147483648
    %v2191 = vmul.f32 %v2190, 1.442695
    %v2192 = vpow.pop %v2191
    %v2193 = vadd.f32 %v2192, 1.0
    %v2194 = vrcp.pop %v2193
    %v2195 = vmul.f32 1.0, %v2194
    %v2196 = vadd.f32 %v2186, %v230
    %2198 = vrot.lane.b32.xlu0 %v2196, 64
    %v2199 = vpop.permute.xlu0 %2198
    %v2201 = vmul.f32 %v2195, %v2199
    %2203 = vrot.lane.b32.xlu0 %v2201, 64
    %v2204 = vpop.permute.xlu0 %2203
    %v2206 = vadd.f32 %v2116, %v2204
    %v2207 = vtanh.pop %v2206
    %v2208 = vsub.f32 1.0, %v2195
    %2210 = vrot.lane.b32.xlu0 %v2207, 96
    %v2211 = vpop.permute.xlu0 %2210
    %v2213 = vmul.f32 %v2208, %v2211
    %v2214 = vmul.f32 %v2195, %v1935
    %v2215 = vadd.f32 %v2213, %v2214
    %2217 = vrot.lane.b32.xlu0 %v2215, 96
    %v2218 = vpop.permute.xlu0 %2217
    %v2219 = vsel %vm148, %v2218, 0
    %2221 = vmatprep.subr.mxu0 0.0
    %2222 = vmatpush1.msra.mxu0 %v51
    %2223 = vmatprep.subr.mxu0 0.0
    %2224 = vmatpush1.msra.mxu0 %v52
    %2225 = vmatprep.subr.mxu0 0.0
    %2226 = vmatpush1.msra.mxu0 %v53
    %2227 = vmatprep.subr.mxu0 0.0
    %2228 = vmatpush1.msra.mxu0 %v54
    %2229 = vmatprep.subr.mxu0 0.0
    %2230 = vmatpush1.msra.mxu0 0.0
    %2231 = vmatprep.subr.mxu0 0.0
    %2232 = vmatpush1.msra.mxu0 0.0
    %2233 = vmatprep.subr.mxu0 0.0
    %2234 = vmatpush1.msra.mxu0 0.0
    %2235 = vmatprep.subr.mxu0 0.0
    %2236 = vmatpush1.msra.mxu0 0.0
    %2237 = vmatprep.subr.mxu0 0.0
    %2238 = vmatpush1.msra.mxu0 0.0
    %2239 = vmatprep.subr.mxu0 0.0
    %2240 = vmatpush1.msra.mxu0 0.0
    %2241 = vmatprep.subr.mxu0 0.0
    %2242 = vmatpush1.msra.mxu0 0.0
    %2243 = vmatprep.subr.mxu0 0.0
    %2244 = vmatpush1.msra.mxu0 0.0
    %2245 = vmatprep.subr.mxu0 0.0
    %2246 = vmatpush1.msra.mxu0 0.0
    %2247 = vmatprep.subr.mxu0 0.0
    %2248 = vmatpush1.msra.mxu0 0.0
    %2249 = vmatprep.subr.mxu0 0.0
    %2250 = vmatpush1.msra.mxu0 0.0
    %2251 = vmatprep.subr.mxu0 0.0
    %2252 = vmatpush1.msra.mxu0 0.0
    %2253 = vmatprep.subr.mxu0 0.0
    %2254 = vmatpush1.msra.mxu0 0.0
    %2255 = vmatprep.subr.mxu0 0.0
    %2256 = vmatpush1.msra.mxu0 0.0
    %2257 = vmatprep.subr.mxu0 0.0
    %2258 = vmatpush1.msra.mxu0 0.0
    %2259 = vmatprep.subr.mxu0 0.0
    %2260 = vmatpush1.msra.mxu0 0.0
    %2261 = vmatprep.subr.mxu0 0.0
    %2262 = vmatpush1.msra.mxu0 0.0
    %2263 = vmatprep.subr.mxu0 0.0
    %2264 = vmatpush1.msra.mxu0 0.0
    %2265 = vmatprep.subr.mxu0 0.0
    %2266 = vmatpush1.msra.mxu0 0.0
    %2267 = vmatprep.subr.mxu0 0.0
    %2268 = vmatpush1.msra.mxu0 0.0
    %2269 = vmatprep.subr.mxu0 0.0
    %2270 = vmatpush1.msra.mxu0 0.0
    %2271 = vmatprep.subr.mxu0 0.0
    %2272 = vmatpush1.msra.mxu0 0.0
    %2273 = vmatprep.subr.mxu0 0.0
    %2274 = vmatpush1.msra.mxu0 0.0
    %2275 = vmatprep.subr.mxu0 0.0
    %2276 = vmatpush1.msra.mxu0 0.0
    %2277 = vmatprep.subr.mxu0 0.0
    %2278 = vmatpush1.msra.mxu0 0.0
    %2279 = vmatprep.subr.mxu0 0.0
    %2280 = vmatpush1.msra.mxu0 0.0
    %2281 = vmatprep.subr.mxu0 0.0
    %2282 = vmatpush1.msra.mxu0 0.0
    %2283 = vmatprep.subr.mxu0 0.0
    %2284 = vmatpush1.msra.mxu0 0.0
    %2285 = vmatprep.mubr.f32.mxu0 0.0
    %2286 = vmatmul.mubr.f32.gmra.mrb[0].mxu0 %v2219
    %v2287 = vpop.f32.mrb[0].mxu0
    %v2288 = vadd.f32 %v66, %v2287
    %v2289 = vpop.f32.mrb[0].mxu0
    %2290 = vdwg.mxu0
    %v2291 = vsel %vm74, %v2288, -inf
    %2292 = vmax.xlane.f32.xlu0 %v2291
    %v2293 = vpop.xlane.xlu0 %2292
    %vm2294 = vcmp.eq.f32.partialorder %v2288, %v2293
    %v2295 = vsel %vm2294, %v69, 16
    %v2296 = vsel %vm74, %v2295, 2147483647
    %v2297 = vand.u32 %v2296, 65535
    %v2298 = vshra.s32 %v2296, 16
    %v2299 = vcvt.s32.f32 %v2297
    %v2300 = vcvt.s32.f32 %v2298
    %2301 = vmin.xlane.f32.xlu0 %v2300
    %v2302 = vpop.xlane.xlu0 %2301
    %vm2303 = vcmp.eq.f32.partialorder %v2300, %v2302
    %v2304 = vsel %vm2303, %v2299, inf
    %2305 = vmin.xlane.f32.xlu0 %v2304
    %v2306 = vpop.xlane.xlu0 %2305
    %v2307 = vcvt.f32.s32 %v2306
    %v2308 = vcvt.f32.s32 %v2302
    %v2309 = vshll.u32 %v2308, 16
    %v2310 = vadd.s32 %v2309, %v2307
    %vm2311 = vcmp.eq.s32.totalorder %v69, %v2310
    %v2312 = vsel %vm2311, 1, 0
    %v2313 = vcvt.s32.f32 %v2312
    %2314 = vset.pattern.permute.xlu0 7
    %2315 = vperm.xlu0 %2314, %v353
    %v2316 = vpop.permute.xlu0 %2315
    %vm2317 = vcmp.eq.s32.totalorder %v69, %v2316
    %v2318 = vsel %vm2317, 1, 0
    %v2319 = vcvt.s32.f32 %v2318
    %s2320 = sld [smem:[#allocation2 + $0x7]]
    %p2321 = scmp.gt.s32.totalorder %s2320, 0
    %s2322 = scalar_select %p2321, 1, 0
    %v2323 = vstv %s2322
    %vm2324 = vcmp.eq.s32.totalorder %v2323, 1
    %v2325 = vsel %vm2324, %v2319, %v2313
    %v2327 = vsel %vm74, %v2325, 0
    %2329 = vmatprep.subr.mxu0 0.0
    %2330 = vmatpush1.msra.mxu0 %v45
    %2331 = vmatprep.subr.mxu0 0.0
    %2332 = vmatpush1.msra.mxu0 %v46
    %2333 = vmatprep.subr.mxu0 0.0
    %2334 = vmatpush1.msra.mxu0 0.0
    %2335 = vmatprep.subr.mxu0 0.0
    %2336 = vmatpush1.msra.mxu0 0.0
    %2337 = vmatprep.subr.mxu0 0.0
    %2338 = vmatpush1.msra.mxu0 0.0
    %2339 = vmatprep.subr.mxu0 0.0
    %2340 = vmatpush1.msra.mxu0 0.0
    %2341 = vmatprep.subr.mxu0 0.0
    %2342 = vmatpush1.msra.mxu0 0.0
    %2343 = vmatprep.subr.mxu0 0.0
    %2344 = vmatpush1.msra.mxu0 0.0
    %2345 = vmatprep.subr.mxu0 0.0
    %2346 = vmatpush1.msra.mxu0 0.0
    %2347 = vmatprep.subr.mxu0 0.0
    %2348 = vmatpush1.msra.mxu0 0.0
    %2349 = vmatprep.subr.mxu0 0.0
    %2350 = vmatpush1.msra.mxu0 0.0
    %2351 = vmatprep.subr.mxu0 0.0
    %2352 = vmatpush1.msra.mxu0 0.0
    %2353 = vmatprep.subr.mxu0 0.0
    %2354 = vmatpush1.msra.mxu0 0.0
    %2355 = vmatprep.subr.mxu0 0.0
    %2356 = vmatpush1.msra.mxu0 0.0
    %2357 = vmatprep.subr.mxu0 0.0
    %2358 = vmatpush1.msra.mxu0 0.0
    %2359 = vmatprep.subr.mxu0 0.0
    %2360 = vmatpush1.msra.mxu0 0.0
    %2361 = vmatprep.subr.mxu0 0.0
    %2362 = vmatpush1.msra.mxu0 0.0
    %2363 = vmatprep.subr.mxu0 0.0
    %2364 = vmatpush1.msra.mxu0 0.0
    %2365 = vmatprep.subr.mxu0 0.0
    %2366 = vmatpush1.msra.mxu0 0.0
    %2367 = vmatprep.subr.mxu0 0.0
    %2368 = vmatpush1.msra.mxu0 0.0
    %2369 = vmatprep.subr.mxu0 0.0
    %2370 = vmatpush1.msra.mxu0 0.0
    %2371 = vmatprep.subr.mxu0 0.0
    %2372 = vmatpush1.msra.mxu0 0.0
    %2373 = vmatprep.subr.mxu0 0.0
    %2374 = vmatpush1.msra.mxu0 0.0
    %2375 = vmatprep.subr.mxu0 0.0
    %2376 = vmatpush1.msra.mxu0 0.0
    %2377 = vmatprep.subr.mxu0 0.0
    %2378 = vmatpush1.msra.mxu0 0.0
    %2379 = vmatprep.subr.mxu0 0.0
    %2380 = vmatpush1.msra.mxu0 0.0
    %2381 = vmatprep.subr.mxu0 0.0
    %2382 = vmatpush1.msra.mxu0 0.0
    %2383 = vmatprep.subr.mxu0 0.0
    %2384 = vmatpush1.msra.mxu0 0.0
    %2385 = vmatprep.subr.mxu0 0.0
    %2386 = vmatpush1.msra.mxu0 0.0
    %2387 = vmatprep.subr.mxu0 0.0
    %2388 = vmatpush1.msra.mxu0 0.0
    %2389 = vmatprep.subr.mxu0 0.0
    %2390 = vmatpush1.msra.mxu0 0.0
    %2391 = vmatprep.subr.mxu0 0.0
    %2392 = vmatpush1.msra.mxu0 0.0
    %2393 = vmatprep.mubr.f32.mxu0 0.0
    %2394 = vmatmul.mubr.f32.gmra.mrb[0].mxu0 %v2327
    %v2395 = vpop.f32.mrb[0].mxu0
    %v2396 = vadd.f32 0.0, %v2395
    %v2397 = vpop.f32.mrb[0].mxu0
    %2398 = vdwg.mxu0
    %2399 = vmatprep.subr.mxu0 0.0
    %2400 = vmatpush1.msra.mxu0 %v47
    %2401 = vmatprep.subr.mxu0 0.0
    %2402 = vmatpush1.msra.mxu0 %v48
    %2403 = vmatprep.subr.mxu0 0.0
    %2404 = vmatpush1.msra.mxu0 %v49
    %2405 = vmatprep.subr.mxu0 0.0
    %2406 = vmatpush1.msra.mxu0 %v50
    %2407 = vmatprep.subr.mxu0 0.0
    %2408 = vmatpush1.msra.mxu0 0.0
    %2409 = vmatprep.subr.mxu0 0.0
    %2410 = vmatpush1.msra.mxu0 0.0
    %2411 = vmatprep.subr.mxu0 0.0
    %2412 = vmatpush1.msra.mxu0 0.0
    %2413 = vmatprep.subr.mxu0 0.0
    %2414 = vmatpush1.msra.mxu0 0.0
    %2415 = vmatprep.subr.mxu0 0.0
    %2416 = vmatpush1.msra.mxu0 0.0
    %2417 = vmatprep.subr.mxu0 0.0
    %2418 = vmatpush1.msra.mxu0 0.0
    %2419 = vmatprep.subr.mxu0 0.0
    %2420 = vmatpush1.msra.mxu0 0.0
    %2421 = vmatprep.subr.mxu0 0.0
    %2422 = vmatpush1.msra.mxu0 0.0
    %2423 = vmatprep.subr.mxu0 0.0
    %2424 = vmatpush1.msra.mxu0 0.0
    %2425 = vmatprep.subr.mxu0 0.0
    %2426 = vmatpush1.msra.mxu0 0.0
    %2427 = vmatprep.subr.mxu0 0.0
    %2428 = vmatpush1.msra.mxu0 0.0
    %2429 = vmatprep.subr.mxu0 0.0
    %2430 = vmatpush1.msra.mxu0 0.0
    %2431 = vmatprep.subr.mxu0 0.0
    %2432 = vmatpush1.msra.mxu0 0.0
    %2433 = vmatprep.subr.mxu0 0.0
    %2434 = vmatpush1.msra.mxu0 0.0
    %2435 = vmatprep.subr.mxu0 0.0
    %2436 = vmatpush1.msra.mxu0 0.0
    %2437 = vmatprep.subr.mxu0 0.0
    %2438 = vmatpush1.msra.mxu0 0.0
    %2439 = vmatprep.subr.mxu0 0.0
    %2440 = vmatpush1.msra.mxu0 0.0
    %2441 = vmatprep.subr.mxu0 0.0
    %2442 = vmatpush1.msra.mxu0 0.0
    %2443 = vmatprep.subr.mxu0 0.0
    %2444 = vmatpush1.msra.mxu0 0.0
    %2445 = vmatprep.subr.mxu0 0.0
    %2446 = vmatpush1.msra.mxu0 0.0
    %2447 = vmatprep.subr.mxu0 0.0
    %2448 = vmatpush1.msra.mxu0 0.0
    %2449 = vmatprep.subr.mxu0 0.0
    %2450 = vmatpush1.msra.mxu0 0.0
    %2451 = vmatprep.subr.mxu0 0.0
    %2452 = vmatpush1.msra.mxu0 0.0
    %2453 = vmatprep.subr.mxu0 0.0
    %2454 = vmatpush1.msra.mxu0 0.0
    %2455 = vmatprep.subr.mxu0 0.0
    %2456 = vmatpush1.msra.mxu0 0.0
    %2457 = vmatprep.subr.mxu0 0.0
    %2458 = vmatpush1.msra.mxu0 0.0
    %2459 = vmatprep.subr.mxu0 0.0
    %2460 = vmatpush1.msra.mxu0 0.0
    %2461 = vmatprep.subr.mxu0 0.0
    %2462 = vmatpush1.msra.mxu0 0.0
    %2463 = vmatprep.mubr.f32.mxu0 0.0
    %2464 = vmatmul.mubr.f32.gmra.mrb[0].mxu0 %v2219
    %v2465 = vpop.f32.mrb[0].mxu0
    %v2466 = vadd.f32 0.0, %v2465
    %v2467 = vpop.f32.mrb[0].mxu0
    %2468 = vdwg.mxu0
    %v2469 = vadd.f32 %v2396, %v2466
    %v2470 = vxor.u32 %v2469, 2147483648
    %v2471 = vmul.f32 %v2470, 1.442695
    %v2472 = vpow.pop %v2471
    %v2473 = vadd.f32 %v2472, 1.0
    %v2474 = vrcp.pop %v2473
    %v2475 = vmul.f32 1.0, %v2474
    %v2476 = vadd.f32 %v2466, %v230
    %2478 = vrot.lane.b32.xlu0 %v2476, 64
    %v2479 = vpop.permute.xlu0 %2478
    %v2481 = vmul.f32 %v2475, %v2479
    %2483 = vrot.lane.b32.xlu0 %v2481, 64
    %v2484 = vpop.permute.xlu0 %2483
    %v2486 = vadd.f32 %v2396, %v2484
    %v2487 = vtanh.pop %v2486
    %v2488 = vsub.f32 1.0, %v2475
    %2490 = vrot.lane.b32.xlu0 %v2487, 96
    %v2491 = vpop.permute.xlu0 %2490
    %v2493 = vmul.f32 %v2488, %v2491
    %v2494 = vmul.f32 %v2475, %v2215
    %v2495 = vadd.f32 %v2493, %v2494
    %2497 = vrot.lane.b32.xlu0 %v2495, 96
    %v2498 = vpop.permute.xlu0 %2497
    %v2499 = vsel %vm148, %v2498, 0
    %2501 = vmatprep.subr.mxu0 0.0
    %2502 = vmatpush1.msra.mxu0 %v51
    %2503 = vmatprep.subr.mxu0 0.0
    %2504 = vmatpush1.msra.mxu0 %v52
    %2505 = vmatprep.subr.mxu0 0.0
    %2506 = vmatpush1.msra.mxu0 %v53
    %2507 = vmatprep.subr.mxu0 0.0
    %2508 = vmatpush1.msra.mxu0 %v54
    %2509 = vmatprep.subr.mxu0 0.0
    %2510 = vmatpush1.msra.mxu0 0.0
    %2511 = vmatprep.subr.mxu0 0.0
    %2512 = vmatpush1.msra.mxu0 0.0
    %2513 = vmatprep.subr.mxu0 0.0
    %2514 = vmatpush1.msra.mxu0 0.0
    %2515 = vmatprep.subr.mxu0 0.0
    %2516 = vmatpush1.msra.mxu0 0.0
    %2517 = vmatprep.subr.mxu0 0.0
    %2518 = vmatpush1.msra.mxu0 0.0
    %2519 = vmatprep.subr.mxu0 0.0
    %2520 = vmatpush1.msra.mxu0 0.0
    %2521 = vmatprep.subr.mxu0 0.0
    %2522 = vmatpush1.msra.mxu0 0.0
    %2523 = vmatprep.subr.mxu0 0.0
    %2524 = vmatpush1.msra.mxu0 0.0
    %2525 = vmatprep.subr.mxu0 0.0
    %2526 = vmatpush1.msra.mxu0 0.0
    %2527 = vmatprep.subr.mxu0 0.0
    %2528 = vmatpush1.msra.mxu0 0.0
    %2529 = vmatprep.subr.mxu0 0.0
    %2530 = vmatpush1.msra.mxu0 0.0
    %2531 = vmatprep.subr.mxu0 0.0
    %2532 = vmatpush1.msra.mxu0 0.0
    %2533 = vmatprep.subr.mxu0 0.0
    %2534 = vmatpush1.msra.mxu0 0.0
    %2535 = vmatprep.subr.mxu0 0.0
    %2536 = vmatpush1.msra.mxu0 0.0
    %2537 = vmatprep.subr.mxu0 0.0
    %2538 = vmatpush1.msra.mxu0 0.0
    %2539 = vmatprep.subr.mxu0 0.0
    %2540 = vmatpush1.msra.mxu0 0.0
    %2541 = vmatprep.subr.mxu0 0.0
    %2542 = vmatpush1.msra.mxu0 0.0
    %2543 = vmatprep.subr.mxu0 0.0
    %2544 = vmatpush1.msra.mxu0 0.0
    %2545 = vmatprep.subr.mxu0 0.0
    %2546 = vmatpush1.msra.mxu0 0.0
    %2547 = vmatprep.subr.mxu0 0.0
    %2548 = vmatpush1.msra.mxu0 0.0
    %2549 = vmatprep.subr.mxu0 0.0
    %2550 = vmatpush1.msra.mxu0 0.0
    %2551 = vmatprep.subr.mxu0 0.0
    %2552 = vmatpush1.msra.mxu0 0.0
    %2553 = vmatprep.subr.mxu0 0.0
    %2554 = vmatpush1.msra.mxu0 0.0
    %2555 = vmatprep.subr.mxu0 0.0
    %2556 = vmatpush1.msra.mxu0 0.0
    %2557 = vmatprep.subr.mxu0 0.0
    %2558 = vmatpush1.msra.mxu0 0.0
    %2559 = vmatprep.subr.mxu0 0.0
    %2560 = vmatpush1.msra.mxu0 0.0
    %2561 = vmatprep.subr.mxu0 0.0
    %2562 = vmatpush1.msra.mxu0 0.0
    %2563 = vmatprep.subr.mxu0 0.0
    %2564 = vmatpush1.msra.mxu0 0.0
    %2565 = vmatprep.mubr.f32.mxu0 0.0
    %2566 = vmatmul.mubr.f32.gmra.mrb[0].mxu0 %v2499
    %v2567 = vpop.f32.mrb[0].mxu0
    %v2568 = vadd.f32 %v66, %v2567
    %v2569 = vpop.f32.mrb[0].mxu0
    %2570 = vdwg.mxu0
    %2572 = vst.msk [vmem:[#allocation5] sm:$0xff] %vm148, %v2498
    %v2573 = vsub.f32 %v327, %v332
    %v2574 = vmul.f32 %v2573, 1.442695
    %v2575 = vpow.pop %v2574
    %v2576 = vsel %vm74, %v2575, 0.0
    %2577 = vadd.xlane.f32.xlu0 %v2576
    %v2578 = vpop.xlane.xlu0 %2577
    %v2579 = vlog2.pop %v2578
    %v2580 = vmul.f32 %v2579, 0.6931472
    %v2581 = vadd.f32 %v332, %v2580
    %v2582 = vsub.f32 %v327, %v2581
    %2583 = vst.msk [vmem:[%s8] sm:$0xff] %vm74, %v2582
    %v2584 = vsub.f32 %v608, %v613
    %v2585 = vmul.f32 %v2584, 1.442695
    %v2586 = vpow.pop %v2585
    %v2587 = vsel %vm74, %v2586, 0.0
    %2588 = vadd.xlane.f32.xlu0 %v2587
    %v2589 = vpop.xlane.xlu0 %2588
    %v2590 = vlog2.pop %v2589
    %v2591 = vmul.f32 %v2590, 0.6931472
    %v2592 = vadd.f32 %v613, %v2591
    %v2593 = vsub.f32 %v608, %v2592
    %2595 = vrot.lane.b32.xlu0 %v2593, 16
    %v2596 = vpop.permute.xlu0 %2595
    %vm2598 = vcmask 261248
    %2599 = vst.msk [vmem:[%s8] sm:$0xff] %vm2598, %v2596
    %v2600 = vsub.f32 %v888, %v893
    %v2601 = vmul.f32 %v2600, 1.442695
    %v2602 = vpow.pop %v2601
    %v2603 = vsel %vm74, %v2602, 0.0
    %2604 = vadd.xlane.f32.xlu0 %v2603
    %v2605 = vpop.xlane.xlu0 %2604
    %v2606 = vlog2.pop %v2605
    %v2607 = vmul.f32 %v2606, 0.6931472
    %v2608 = vadd.f32 %v893, %v2607
    %v2609 = vsub.f32 %v888, %v2608
    %2611 = vrot.lane.b32.xlu0 %v2609, 32
    %v2612 = vpop.permute.xlu0 %2611
    %vm2614 = vcmask 392448
    %2615 = vst.msk [vmem:[%s8] sm:$0xff] %vm2614, %v2612
    %v2616 = vsub.f32 %v1168, %v1173
    %v2617 = vmul.f32 %v2616, 1.442695
    %v2618 = vpow.pop %v2617
    %v2619 = vsel %vm74, %v2618, 0.0
    %2620 = vadd.xlane.f32.xlu0 %v2619
    %v2621 = vpop.xlane.xlu0 %2620
    %v2622 = vlog2.pop %v2621
    %v2623 = vmul.f32 %v2622, 0.6931472
    %v2624 = vadd.f32 %v1173, %v2623
    %v2625 = vsub.f32 %v1168, %v2624
    %2627 = vrot.lane.b32.xlu0 %v2625, 48
    %v2628 = vpop.permute.xlu0 %2627
    %vm2630 = vcmask 523648
    %2631 = vst.msk [vmem:[%s8] sm:$0xff] %vm2630, %v2628
    %v2632 = vsub.f32 %v1448, %v1453
    %v2633 = vmul.f32 %v2632, 1.442695
    %v2634 = vpow.pop %v2633
    %v2635 = vsel %vm74, %v2634, 0.0
    %2636 = vadd.xlane.f32.xlu0 %v2635
    %v2637 = vpop.xlane.xlu0 %2636
    %v2638 = vlog2.pop %v2637
    %v2639 = vmul.f32 %v2638, 0.6931472
    %v2640 = vadd.f32 %v1453, %v2639
    %v2641 = vsub.f32 %v1448, %v2640
    %2643 = vrot.lane.b32.xlu0 %v2641, 64
    %v2644 = vpop.permute.xlu0 %2643
    %vm2646 = vcmask 654848
    %2647 = vst.msk [vmem:[%s8] sm:$0xff] %vm2646, %v2644
    %v2648 = vsub.f32 %v1728, %v1733
    %v2649 = vmul.f32 %v2648, 1.442695
    %v2650 = vpow.pop %v2649
    %v2651 = vsel %vm74, %v2650, 0.0
    %2652 = vadd.xlane.f32.xlu0 %v2651
    %v2653 = vpop.xlane.xlu0 %2652
    %v2654 = vlog2.pop %v2653
    %v2655 = vmul.f32 %v2654, 0.6931472
    %v2656 = vadd.f32 %v1733, %v2655
    %v2657 = vsub.f32 %v1728, %v2656
    %2659 = vrot.lane.b32.xlu0 %v2657, 80
    %v2660 = vpop.permute.xlu0 %2659
    %vm2662 = vcmask 786048
    %2663 = vst.msk [vmem:[%s8] sm:$0xff] %vm2662, %v2660
    %v2664 = vsub.f32 %v2008, %v2013
    %v2665 = vmul.f32 %v2664, 1.442695
    %v2666 = vpow.pop %v2665
    %v2667 = vsel %vm74, %v2666, 0.0
    %2668 = vadd.xlane.f32.xlu0 %v2667
    %v2669 = vpop.xlane.xlu0 %2668
    %v2670 = vlog2.pop %v2669
    %v2671 = vmul.f32 %v2670, 0.6931472
    %v2672 = vadd.f32 %v2013, %v2671
    %v2673 = vsub.f32 %v2008, %v2672
    %2675 = vrot.lane.b32.xlu0 %v2673, 96
    %v2676 = vpop.permute.xlu0 %2675
    %vm2678 = vcmask 917248
    %2679 = vst.msk [vmem:[%s8] sm:$0xff] %vm2678, %v2676
    %v2680 = vsub.f32 %v2288, %v2293
    %v2681 = vmul.f32 %v2680, 1.442695
    %v2682 = vpow.pop %v2681
    %v2683 = vsel %vm74, %v2682, 0.0
    %2684 = vadd.xlane.f32.xlu0 %v2683
    %v2685 = vpop.xlane.xlu0 %2684
    %v2686 = vlog2.pop %v2685
    %v2687 = vmul.f32 %v2686, 0.6931472
    %v2688 = vadd.f32 %v2293, %v2687
    %v2689 = vsub.f32 %v2288, %v2688
    %2691 = vrot.lane.b32.xlu0 %v2689, 112
    %v2692 = vpop.permute.xlu0 %2691
    %vm2694 = vcmask 1048448
    %2695 = vst.msk [vmem:[%s8] sm:$0xff] %vm2694, %v2692
    %v2696 = vsel %vm74, %v2568, -inf
    %2697 = vmax.xlane.f32.xlu0 %v2696
    %v2698 = vpop.xlane.xlu0 %2697
    %v2699 = vsub.f32 %v2568, %v2698
    %v2700 = vmul.f32 %v2699, 1.442695
    %v2701 = vpow.pop %v2700
    %v2702 = vsel %vm74, %v2701, 0.0
    %2703 = vadd.xlane.f32.xlu0 %v2702
    %v2704 = vpop.xlane.xlu0 %2703
    %v2705 = vlog2.pop %v2704
    %v2706 = vmul.f32 %v2705, 0.6931472
    %v2707 = vadd.f32 %v2698, %v2706
    %v2708 = vsub.f32 %v2568, %v2707
    %2709 = vst.msk [vmem:[%s8 + $0x8] sm:$0xff] %vm74, %v2708
    // Predicated region
    $region38: #{num_decoder_forward.1} parent=1 // pred_check
      _
    $region39: #{num_decoder_forward.1} parent=1 // pred_check_branch
      %2711 = sbr.rel (0) target = $region41
    $region40: #{num_decoder_forward.1} parent=1 // pred_region
      _
    $region41: #{num_decoder_forward.1} parent=1 // pred_fallthru
      _
    // Predicated region
    $region42: #{num_decoder_forward.1} parent=1 // pred_check
      _
    $region43: #{num_decoder_forward.1} parent=1 // pred_check_branch
      %2713 = sbr.rel (0) target = $region45
    $region44: #{num_decoder_forward.1} parent=1 // pred_region
      %s2715 = ssub.s32 128, 128
      %2716 = vsyncadd [#allocation3], %s2715
      %s2718 = sshll.u32 [#allocation5], 4
      %s2719 = int_to_ptr.vmem [resolvable:$true] %s2718
      %2721 = dma.vmem_to_hbm [thread:$0]  %s2719, 128, %s9, [#allocation3]
    $region45: #{num_decoder_forward.1} parent=1 // pred_fallthru
      _
    // Predicated region
    $region46: #{num_decoder_forward.1} parent=1 // pred_check
      _
    $region47: #{num_decoder_forward.1} parent=1 // pred_check_branch
      %2723 = sbr.rel (0) target = $region49
    $region48: #{num_decoder_forward.1} parent=1 // pred_region
      _
    $region49: #{num_decoder_forward.1} parent=1 // pred_fallthru
      _
    // Predicated region
    $region50: #{num_decoder_forward.1} parent=1 // pred_check
      _
    $region51: #{num_decoder_forward.1} parent=1 // pred_check_branch
      %2725 = sbr.rel (0) target = $region53
    $region52: #{num_decoder_forward.1} parent=1 // pred_region
      %2726 = dma.done [#allocation3], 128
    $region53: #{num_decoder_forward.1} parent=1 // pred_fallthru
      _
    %2727 = vsyncpa [#allocation3], 1
    %2728 = vsyncpa [#allocation4], 1

</llo_original>
